<compile_context>
chip_gen: v5e
topology: v5e:2x2
jax: 0.10.0
libtpu: 0.0.40
codegen_flags: <defaults>
</compile_context>

<pallas_src>
import functools

import jax
import jax.numpy as jnp
from jax import lax
from jax.experimental import pallas as pl
from jax.experimental.pallas import tpu as pltpu


# Architecture constants of the PyTorch module.
_K1, _P1 = 9, 2
_K2, _P2 = 1, 2
_K3, _P3 = 5, 2
_C_IN, _C1, _C2, _C_OUT = 3, 128, 64, 3

_LANE = 128     # K and N of every GEMM are padded to a multiple of this
_SUBLANE = 8


def _round_up(x, m):
    return (x + m - 1) // m * m


# ----------------------------- Pallas GEMM kernel ---------------------------
def _gemm_bias_act_kernel(a_ref, b_ref, bias_ref, o_ref, acc_ref, *, relu):
    """One (tm,tk)x(tk,tn) step of a K-accumulated GEMM, fused bias (+ReLU)."""
    @pl.when(pl.program_id(2) == 0)
    def _init():
        acc_ref[...] = jnp.zeros_like(acc_ref)

    acc_ref[...] += jnp.dot(a_ref[...], b_ref[...],
                            preferred_element_type=jnp.float32)

    @pl.when(pl.program_id(2) == pl.num_programs(2) - 1)
    def _finalize():
        out = acc_ref[...] + bias_ref[...]          # f32 epilogue (v5e-safe)
        if relu:
            out = jnp.maximum(out, 0.0)
        o_ref[...] = out.astype(o_ref.dtype)


def _pick_tile_m(m):
    # Two M tiles when possible so the "parallel" M axis can be sharded across
    # the two TensorCores of a v7x chip; keep it a multiple of the sublane tile.
    tm = _round_up(pl.cdiv(m, 2), _SUBLANE)
    return min(tm, 256, _round_up(m, _SUBLANE))


def _pick_tile_k(k):
    for cand in (640, 512, 256, 128):
        if cand <= k and k % cand == 0:
            return cand
    return k    # K is a multiple of 128 by construction


def matmul_bias_act(a, b, bias, *, relu, out_dtype):
    """out = act(a @ b + bias); a:(M,K) bf16, b:(K,N) bf16, bias:(1,N) f32."""
    m, k = a.shape
    k2, n = b.shape
    assert k == k2 and bias.shape == (1, n)
    assert k % _LANE == 0 and n % _LANE == 0, (k, n)   # lane-aligned by construction

    tm = _pick_tile_m(m)
    tn = _LANE
    tk = _pick_tile_k(k)
    grid = (pl.cdiv(m, tm), n // tn, k // tk)

    kern = functools.partial(_gemm_bias_act_kernel, relu=relu)
    cost = pl.CostEstimate(
        flops=2 * m * n * k,
        transcendentals=0,
        bytes_accessed=(a.size * a.dtype.itemsize + b.size * b.dtype.itemsize
                        + bias.size * bias.dtype.itemsize
                        + m * n * jnp.dtype(out_dtype).itemsize))

    return pl.pallas_call(
        kern,
        out_shape=jax.ShapeDtypeStruct((m, n), out_dtype),
        grid_spec=pltpu.PrefetchScalarGridSpec(
            num_scalar_prefetch=0,
            grid=grid,
            in_specs=[
                pl.BlockSpec((tm, tk), lambda i, j, kk: (i, kk)),
                pl.BlockSpec((tk, tn), lambda i, j, kk: (kk, j)),
                pl.BlockSpec((1, tn), lambda i, j, kk: (0, j)),
            ],
            out_specs=pl.BlockSpec((tm, tn), lambda i, j, kk: (i, j)),
            scratch_shapes=[pltpu.VMEM((tm, tn), jnp.float32)],
        ),
        compiler_params=pltpu.CompilerParams(
            dimension_semantics=("parallel", "parallel", "arbitrary"),
            # ~1.5 MiB of double-buffered blocks at these tile sizes; stay far
            # below v7x's 64 MiB physical VMEM / 32 MiB scoped default.
            vmem_limit_bytes=32 * 1024 * 1024,
        ),
        cost_estimate=cost,
    )(a, b, bias)


# ------------------------- patches / weight packing --------------------------
# TODO(synk): patch extraction (im2col) stays a single XLA op outside the
# kernel; fully in-kernel patch gather + 3-layer fusion left for a follow-up.
def _patches_nhwc(x, k, pad):
    """im2col in NHWC via one XLA op (no Python slice/stack loop)."""
    return lax.conv_general_dilated_patches(
        x, (k, k), (1, 1), [(pad, pad), (pad, pad)],
        dimension_numbers=("NHWC", "HWIO", "NHWC"))


def _patch_perm(c_in, k):
    """K-index permutation used by conv_general_dilated_patches (NHWC), probed
    numerically so the packed weights can never drift from the patch layout.
    perm[kidx] = ci*k*k + di*k + dj of the input element in patch column kidx."""
    kk = k * k
    ch_code = jnp.broadcast_to(jnp.arange(c_in, dtype=jnp.float32), (k, k, c_in))
    sp_code = jnp.broadcast_to(
        jnp.arange(kk, dtype=jnp.float32).reshape(k, k, 1), (k, k, c_in))
    probe = jnp.stack([ch_code, sp_code])                        # (2, k, k, c_in)
    p = lax.conv_general_dilated_patches(
        probe, (k, k), (1, 1), "VALID",
        dimension_numbers=("NHWC", "HWIO", "NHWC"),
        precision=lax.Precision.HIGHEST)                         # (2, 1, 1, kk*c_in)
    p = jnp.round(p).astype(jnp.int32).reshape(2, kk * c_in)
    return p[0] * kk + p[1]


def prepare_params(params):
    """One-time packing: OIHW conv weights -> lane-aligned bf16 GEMM matrices
    (K and N padded to multiples of 128) + f32 bias rows.  Keeps every
    reshape/pad/cast out of the per-forward path."""
    w1, b1 = params["conv1"]
    w2, b2 = params["conv2"]
    w3, b3 = params["conv3"]
    c1, ci1, k1, _ = w1.shape
    c2, ci2, _, _ = w2.shape
    c3, ci3, k3, _ = w3.shape

    n1p = _round_up(c1, _LANE)          # 128
    n2p = _round_up(c2, _LANE)          # 64 -> 128 (padding carried into conv3)
    n3p = _round_up(c3, _LANE)          # 3  -> 128 (sliced off after the GEMM)

    # conv1: weight rows indexed by ci*k*k + di*k + dj, reordered to patch layout.
    kd1 = ci1 * k1 * k1
    k1p = _round_up(kd1, _LANE)
    rows1 = w1.reshape(c1, kd1).T[_patch_perm(ci1, k1)]
    w1m = jnp.zeros((k1p, n1p), jnp.float32).at[:kd1, :c1].set(rows1)
    b1m = jnp.zeros((1, n1p), jnp.float32).at[0, :c1].set(b1)

    # conv2 (1x1): plain GEMM over the (padded) conv1 channels.
    w2m = jnp.zeros((n1p, n2p), jnp.float32).at[:ci2, :c2].set(
        w2.reshape(c2, ci2).T)
    b2m = jnp.zeros((1, n2p), jnp.float32).at[0, :c2].set(b2)

    # conv3: K runs over the n2p *padded* conv2 channels (zero weights there).
    kk3 = k3 * k3
    rows3 = jnp.zeros((n2p * kk3, c3), jnp.float32).at[: ci3 * kk3, :].set(
        w3.reshape(c3, ci3 * kk3).T)
    rows3 = rows3[_patch_perm(n2p, k3)]
    w3m = jnp.zeros((n2p * kk3, n3p), jnp.float32).at[:, :c3].set(rows3)
    b3m = jnp.zeros((1, n3p), jnp.float32).at[0, :c3].set(b3)

    return {
        "w1": w1m.astype(jnp.bfloat16), "b1": b1m,
        "w2": w2m.astype(jnp.bfloat16), "b2": b2m,
        "w3": w3m.astype(jnp.bfloat16), "b3": b3m,
    }


# ------------------------------- forward pass --------------------------------
@jax.jit
def cnn_forward(pp, x_nchw):
    n = x_nchw.shape[0]
    k1p = pp["w1"].shape[0]
    c1p = pp["w2"].shape[0]
    c2p = pp["w3"].shape[0] // (_K3 * _K3)

    # Single NCHW -> NHWC conversion at the input boundary; bf16 MXU operands.
    x = jnp.transpose(x_nchw, (0, 2, 3, 1)).astype(jnp.bfloat16)

    # conv1 (9x9, pad 2) + ReLU
    p1 = _patches_nhwc(x, _K1, _P1)                          # (n, h1, w1, ci*81)
    h1o, w1o, kd1 = p1.shape[1], p1.shape[2], p1.shape[3]
    p1 = jnp.pad(p1, ((0, 0), (0, 0), (0, 0), (0, k1p - kd1)))
    h1 = matmul_bias_act(p1.reshape(n * h1o * w1o, k1p), pp["w1"], pp["b1"],
                         relu=True, out_dtype=jnp.bfloat16)

    # conv2 (1x1, pad 2) + ReLU: zero-pad spatially, then it is a plain GEMM
    # (padded rows see zero input and therefore produce relu(b2) exactly).
    h1 = jnp.pad(h1.reshape(n, h1o, w1o, c1p),
                 ((0, 0), (_P2, _P2), (_P2, _P2), (0, 0)))
    h2o, w2o = h1.shape[1], h1.shape[2]
    h2 = matmul_bias_act(h1.reshape(n * h2o * w2o, c1p), pp["w2"], pp["b2"],
                         relu=True, out_dtype=jnp.bfloat16)

    # conv3 (5x5, pad 2), no activation
    p3 = _patches_nhwc(h2.reshape(n, h2o, w2o, c2p), _K3, _P3)
    h3o, w3o = p3.shape[1], p3.shape[2]
    out = matmul_bias_act(p3.reshape(n * h3o * w3o, c2p * _K3 * _K3),
                          pp["w3"], pp["b3"], relu=False, out_dtype=jnp.float32)

    # Drop channel padding and convert back to NCHW once, at the output.
    out = out.reshape(n, h3o, w3o, -1)[..., :_C_OUT]
    return jnp.transpose(out, (0, 3, 1, 2))


# ----------------------- init + pure-JAX reference ---------------------------
def init_params(key):
    """PyTorch Conv2d default init (uniform +-1/sqrt(fan_in)), OIHW layout."""
    def conv_init(k, c_out, c_in, ksize):
        kw, kb = jax.random.split(k)
        bound = 1.0 / float(c_in * ksize * ksize) ** 0.5
        w = jax.random.uniform(kw, (c_out, c_in, ksize, ksize), jnp.float32,
                               -bound, bound)
        b = jax.random.uniform(kb, (c_out,), jnp.float32, -bound, bound)
        return w, b

    k1, k2, k3 = jax.random.split(key, 3)
    return {"conv1": conv_init(k1, _C1, _C_IN, _K1),
            "conv2": conv_init(k2, _C2, _C1, _K2),
            "conv3": conv_init(k3, _C_OUT, _C2, _K3)}


def _conv_ref(x, w, b, pad):
    out = lax.conv_general_dilated(
        x, w, window_strides=(1, 1), padding=[(pad, pad), (pad, pad)],
        dimension_numbers=("NCHW", "OIHW", "NCHW"),
        precision=lax.Precision.HIGHEST)
    return out + b[None, :, None, None]


@jax.jit
def cnn_forward_ref(params, x):
    w1, b1 = params["conv1"]
    w2, b2 = params["conv2"]
    w3, b3 = params["conv3"]
    x = jnp.maximum(_conv_ref(x, w1, b1, _P1), 0.0)
    x = jnp.maximum(_conv_ref(x, w2, b2, _P2), 0.0)
    return _conv_ref(x, w3, b3, _P3)


if __name__ == "__main__":
    key = jax.random.PRNGKey(0)
    kp, kx = jax.random.split(key)
    params = init_params(kp)
    packed = prepare_params(params)
    x = jax.random.normal(kx, (2, _C_IN, 16, 16), jnp.float32)   # NCHW input

    out = jax.block_until_ready(cnn_forward(packed, x))
    assert out.shape == (2, _C_OUT, 16, 16), out.shape

    ref = jax.block_until_ready(cnn_forward_ref(params, x))
    err = float(jnp.max(jnp.abs(out - ref)))
    # bf16 MXU operands (per perf review): tolerance loosened from 1e-4.
    assert jnp.allclose(out, ref, atol=2e-2, rtol=2e-2), err

    print("KERNEL_OK")
</pallas_src>

<mosaic_0001>
module attributes {stable_mosaic.version = 11 : i64} {
  func.func @_gemm_bias_act_kernel(%arg0: i32, %arg1: i32, %arg2: i32, %arg3: memref<144x256xbf16, #tpu.memory_space<vmem>>, %arg4: memref<256x128xbf16, #tpu.memory_space<vmem>>, %arg5: memref<1x128xf32, #tpu.memory_space<vmem>>, %arg6: memref<144x128xbf16, #tpu.memory_space<vmem>>, %arg7: memref<144x128xf32, #tpu.memory_space<vmem>>) attributes {dimension_semantics = [#tpu.dimension_semantics<parallel>, #tpu.dimension_semantics<parallel>, #tpu.dimension_semantics<arbitrary>], iteration_bounds = array<i64: 2, 1, 1>, scalar_prefetch = 0 : i64, scratch_operands = 1 : i64, tpu.core_type = #tpu.core_type<tc>, window_params = [{transform_indices = @transform_0, window_bounds = array<i64: 144, 256>}, {transform_indices = @transform_1, window_bounds = array<i64: 256, 128>}, {transform_indices = @transform_2, window_bounds = array<i64: 1, 128>}, {transform_indices = @transform_3, window_bounds = array<i64: 144, 128>}]} {
    %c0_i32 = arith.constant 0 : i32
    %0 = arith.cmpi eq, %arg2, %c0_i32 : i32
    %1 = arith.extui %0 : i1 to i32
    %c0_i32_0 = arith.constant 0 : i32
    %2 = arith.cmpi ne, %1, %c0_i32_0 : i32
    scf.if %2 {
      %cst_10 = arith.constant 0.000000e+00 : f32
      %12 = vector.broadcast %cst_10 : f32 to vector<144x128xf32>
      %c0_11 = arith.constant 0 : index
      %c0_12 = arith.constant 0 : index
      %13 = vector.load %arg7[%c0_11, %c0_12] : memref<144x128xf32, #tpu.memory_space<vmem>>, vector<144x128xf32>
      tpu.vector_store %arg7[%c0_11, %c0_12], %12 {strides = array<i32>} : memref<144x128xf32, #tpu.memory_space<vmem>>, vector<144x128xf32>,
    } else {
    }
    %c0 = arith.constant 0 : index
    %c0_1 = arith.constant 0 : index
    %3 = vector.load %arg7[%c0, %c0_1] : memref<144x128xf32, #tpu.memory_space<vmem>>, vector<144x128xf32>
    %c0_2 = arith.constant 0 : index
    %c0_3 = arith.constant 0 : index
    %4 = vector.load %arg3[%c0_2, %c0_3] : memref<144x256xbf16, #tpu.memory_space<vmem>>, vector<144x256xbf16>
    %c0_4 = arith.constant 0 : index
    %c0_5 = arith.constant 0 : index
    %5 = vector.load %arg4[%c0_4, %c0_5] : memref<256x128xbf16, #tpu.memory_space<vmem>>, vector<256x128xbf16>
    %cst = arith.constant dense<0.000000e+00> : vector<144x128xf32>
    %6 = tpu.matmul %4, %5, %cst {dimension_numbers = #tpu.dot_dimension_numbers<[1], [0], [0], [1], [0, 0, 1, 1], [], []>} : vector<144x256xbf16>, vector<256x128xbf16>, vector<144x128xf32> -> vector<144x128xf32>
    %7 = arith.addf %3, %6 : vector<144x128xf32>
    %c0_6 = arith.constant 0 : index
    %c0_7 = arith.constant 0 : index
    %8 = vector.load %arg7[%c0_6, %c0_7] : memref<144x128xf32, #tpu.memory_space<vmem>>, vector<144x128xf32>
    tpu.vector_store %arg7[%c0_6, %c0_7], %7 {strides = array<i32>} : memref<144x128xf32, #tpu.memory_space<vmem>>, vector<144x128xf32>,
    %c0_i32_8 = arith.constant 0 : i32
    %9 = arith.cmpi eq, %arg2, %c0_i32_8 : i32
    %10 = arith.extui %9 : i1 to i32
    %c0_i32_9 = arith.constant 0 : i32
    %11 = arith.cmpi ne, %10, %c0_i32_9 : i32
    scf.if %11 {
      %c0_10 = arith.constant 0 : index
      %c0_11 = arith.constant 0 : index
      %12 = vector.load %arg7[%c0_10, %c0_11] : memref<144x128xf32, #tpu.memory_space<vmem>>, vector<144x128xf32>
      %c0_12 = arith.constant 0 : index
      %c0_13 = arith.constant 0 : index
      %13 = vector.load %arg5[%c0_12, %c0_13] : memref<1x128xf32, #tpu.memory_space<vmem>>, vector<1x128xf32>
      %14 = vector.broadcast %13 : vector<1x128xf32> to vector<144x128xf32>
      %15 = arith.addf %12, %14 : vector<144x128xf32>
      %cst_14 = arith.constant 0.000000e+00 : f32
      %16 = vector.broadcast %cst_14 : f32 to vector<144x128xf32>
      %17 = arith.maximumf %15, %16 : vector<144x128xf32>
      %18 = arith.truncf %17 : vector<144x128xf32> to vector<144x128xbf16>
      %c0_15 = arith.constant 0 : index
      %c0_16 = arith.constant 0 : index
      %19 = vector.load %arg6[%c0_15, %c0_16] : memref<144x128xbf16, #tpu.memory_space<vmem>>, vector<144x128xbf16>
      tpu.vector_store %arg6[%c0_15, %c0_16], %18 {strides = array<i32>} : memref<144x128xbf16, #tpu.memory_space<vmem>>, vector<144x128xbf16>,
    } else {
    }
    return
  }
  func.func @transform_0(%arg0: i32, %arg1: i32, %arg2: i32) -> (i32, i32) {
    %c0_i32 = arith.constant 0 : i32
    return %arg0, %arg2 : i32, i32
  }
  func.func @transform_1(%arg0: i32, %arg1: i32, %arg2: i32) -> (i32, i32) {
    %c0_i32 = arith.constant 0 : i32
    return %arg2, %arg1 : i32, i32
  }
  func.func @transform_2(%arg0: i32, %arg1: i32, %arg2: i32) -> (i32, i32) {
    %c0_i32 = arith.constant 0 : i32
    %c0_i32_0 = arith.constant 0 : i32
    return %c0_i32, %arg1 : i32, i32
  }
  func.func @transform_3(%arg0: i32, %arg1: i32, %arg2: i32) -> (i32, i32) {
    %c0_i32 = arith.constant 0 : i32
    return %arg0, %arg1 : i32, i32
  }
}

module attributes {stable_mosaic.version = 11 : i64} {
  func.func @_gemm_bias_act_kernel(%arg0: i32, %arg1: i32, %arg2: i32, %arg3: memref<256x128xbf16, #tpu.memory_space<vmem>>, %arg4: memref<128x128xbf16, #tpu.memory_space<vmem>>, %arg5: memref<1x128xf32, #tpu.memory_space<vmem>>, %arg6: memref<256x128xbf16, #tpu.memory_space<vmem>>, %arg7: memref<256x128xf32, #tpu.memory_space<vmem>>) attributes {dimension_semantics = [#tpu.dimension_semantics<parallel>, #tpu.dimension_semantics<parallel>, #tpu.dimension_semantics<arbitrary>], iteration_bounds = array<i64: 2, 1, 1>, scalar_prefetch = 0 : i64, scratch_operands = 1 : i64, tpu.core_type = #tpu.core_type<tc>, window_params = [{transform_indices = @transform_0, window_bounds = array<i64: 256, 128>}, {transform_indices = @transform_1, window_bounds = array<i64: 128, 128>}, {transform_indices = @transform_2, window_bounds = array<i64: 1, 128>}, {transform_indices = @transform_3, window_bounds = array<i64: 256, 128>}]} {
    %c0_i32 = arith.constant 0 : i32
    %0 = arith.cmpi eq, %arg2, %c0_i32 : i32
    %1 = arith.extui %0 : i1 to i32
    %c0_i32_0 = arith.constant 0 : i32
    %2 = arith.cmpi ne, %1, %c0_i32_0 : i32
    scf.if %2 {
      %cst_10 = arith.constant 0.000000e+00 : f32
      %12 = vector.broadcast %cst_10 : f32 to vector<256x128xf32>
      %c0_11 = arith.constant 0 : index
      %c0_12 = arith.constant 0 : index
      %13 = vector.load %arg7[%c0_11, %c0_12] : memref<256x128xf32, #tpu.memory_space<vmem>>, vector<256x128xf32>
      tpu.vector_store %arg7[%c0_11, %c0_12], %12 {strides = array<i32>} : memref<256x128xf32, #tpu.memory_space<vmem>>, vector<256x128xf32>,
    } else {
    }
    %c0 = arith.constant 0 : index
    %c0_1 = arith.constant 0 : index
    %3 = vector.load %arg7[%c0, %c0_1] : memref<256x128xf32, #tpu.memory_space<vmem>>, vector<256x128xf32>
    %c0_2 = arith.constant 0 : index
    %c0_3 = arith.constant 0 : index
    %4 = vector.load %arg3[%c0_2, %c0_3] : memref<256x128xbf16, #tpu.memory_space<vmem>>, vector<256x128xbf16>
    %c0_4 = arith.constant 0 : index
    %c0_5 = arith.constant 0 : index
    %5 = vector.load %arg4[%c0_4, %c0_5] : memref<128x128xbf16, #tpu.memory_space<vmem>>, vector<128x128xbf16>
    %cst = arith.constant dense<0.000000e+00> : vector<256x128xf32>
    %6 = tpu.matmul %4, %5, %cst {dimension_numbers = #tpu.dot_dimension_numbers<[1], [0], [0], [1], [0, 0, 1, 1], [], []>} : vector<256x128xbf16>, vector<128x128xbf16>, vector<256x128xf32> -> vector<256x128xf32>
    %7 = arith.addf %3, %6 : vector<256x128xf32>
    %c0_6 = arith.constant 0 : index
    %c0_7 = arith.constant 0 : index
    %8 = vector.load %arg7[%c0_6, %c0_7] : memref<256x128xf32, #tpu.memory_space<vmem>>, vector<256x128xf32>
    tpu.vector_store %arg7[%c0_6, %c0_7], %7 {strides = array<i32>} : memref<256x128xf32, #tpu.memory_space<vmem>>, vector<256x128xf32>,
    %c0_i32_8 = arith.constant 0 : i32
    %9 = arith.cmpi eq, %arg2, %c0_i32_8 : i32
    %10 = arith.extui %9 : i1 to i32
    %c0_i32_9 = arith.constant 0 : i32
    %11 = arith.cmpi ne, %10, %c0_i32_9 : i32
    scf.if %11 {
      %c0_10 = arith.constant 0 : index
      %c0_11 = arith.constant 0 : index
      %12 = vector.load %arg7[%c0_10, %c0_11] : memref<256x128xf32, #tpu.memory_space<vmem>>, vector<256x128xf32>
      %c0_12 = arith.constant 0 : index
      %c0_13 = arith.constant 0 : index
      %13 = vector.load %arg5[%c0_12, %c0_13] : memref<1x128xf32, #tpu.memory_space<vmem>>, vector<1x128xf32>
      %14 = vector.broadcast %13 : vector<1x128xf32> to vector<256x128xf32>
      %15 = arith.addf %12, %14 : vector<256x128xf32>
      %cst_14 = arith.constant 0.000000e+00 : f32
      %16 = vector.broadcast %cst_14 : f32 to vector<256x128xf32>
      %17 = arith.maximumf %15, %16 : vector<256x128xf32>
      %18 = arith.truncf %17 : vector<256x128xf32> to vector<256x128xbf16>
      %c0_15 = arith.constant 0 : index
      %c0_16 = arith.constant 0 : index
      %19 = vector.load %arg6[%c0_15, %c0_16] : memref<256x128xbf16, #tpu.memory_space<vmem>>, vector<256x128xbf16>
      tpu.vector_store %arg6[%c0_15, %c0_16], %18 {strides = array<i32>} : memref<256x128xbf16, #tpu.memory_space<vmem>>, vector<256x128xbf16>,
    } else {
    }
    return
  }
  func.func @transform_0(%arg0: i32, %arg1: i32, %arg2: i32) -> (i32, i32) {
    %c0_i32 = arith.constant 0 : i32
    return %arg0, %arg2 : i32, i32
  }
  func.func @transform_1(%arg0: i32, %arg1: i32, %arg2: i32) -> (i32, i32) {
    %c0_i32 = arith.constant 0 : i32
    return %arg2, %arg1 : i32, i32
  }
  func.func @transform_2(%arg0: i32, %arg1: i32, %arg2: i32) -> (i32, i32) {
    %c0_i32 = arith.constant 0 : i32
    %c0_i32_0 = arith.constant 0 : i32
    return %c0_i32, %arg1 : i32, i32
  }
  func.func @transform_3(%arg0: i32, %arg1: i32, %arg2: i32) -> (i32, i32) {
    %c0_i32 = arith.constant 0 : i32
    return %arg0, %arg1 : i32, i32
  }
}

module attributes {stable_mosaic.version = 11 : i64} {
  func.func @_gemm_bias_act_kernel(%arg0: i32, %arg1: i32, %arg2: i32, %arg3: memref<256x640xbf16, #tpu.memory_space<vmem>>, %arg4: memref<640x128xbf16, #tpu.memory_space<vmem>>, %arg5: memref<1x128xf32, #tpu.memory_space<vmem>>, %arg6: memref<256x128xf32, #tpu.memory_space<vmem>>, %arg7: memref<256x128xf32, #tpu.memory_space<vmem>>) attributes {dimension_semantics = [#tpu.dimension_semantics<parallel>, #tpu.dimension_semantics<parallel>, #tpu.dimension_semantics<arbitrary>], iteration_bounds = array<i64: 2, 1, 5>, scalar_prefetch = 0 : i64, scratch_operands = 1 : i64, tpu.core_type = #tpu.core_type<tc>, window_params = [{transform_indices = @transform_0, window_bounds = array<i64: 256, 640>}, {transform_indices = @transform_1, window_bounds = array<i64: 640, 128>}, {transform_indices = @transform_2, window_bounds = array<i64: 1, 128>}, {transform_indices = @transform_3, window_bounds = array<i64: 256, 128>}]} {
    %c0_i32 = arith.constant 0 : i32
    %0 = arith.cmpi eq, %arg2, %c0_i32 : i32
    %1 = arith.extui %0 : i1 to i32
    %c0_i32_0 = arith.constant 0 : i32
    %2 = arith.cmpi ne, %1, %c0_i32_0 : i32
    scf.if %2 {
      %cst_9 = arith.constant 0.000000e+00 : f32
      %12 = vector.broadcast %cst_9 : f32 to vector<256x128xf32>
      %c0_10 = arith.constant 0 : index
      %c0_11 = arith.constant 0 : index
      %13 = vector.load %arg7[%c0_10, %c0_11] : memref<256x128xf32, #tpu.memory_space<vmem>>, vector<256x128xf32>
      tpu.vector_store %arg7[%c0_10, %c0_11], %12 {strides = array<i32>} : memref<256x128xf32, #tpu.memory_space<vmem>>, vector<256x128xf32>,
    } else {
    }
    %c0 = arith.constant 0 : index
    %c0_1 = arith.constant 0 : index
    %3 = vector.load %arg7[%c0, %c0_1] : memref<256x128xf32, #tpu.memory_space<vmem>>, vector<256x128xf32>
    %c0_2 = arith.constant 0 : index
    %c0_3 = arith.constant 0 : index
    %4 = vector.load %arg3[%c0_2, %c0_3] : memref<256x640xbf16, #tpu.memory_space<vmem>>, vector<256x640xbf16>
    %c0_4 = arith.constant 0 : index
    %c0_5 = arith.constant 0 : index
    %5 = vector.load %arg4[%c0_4, %c0_5] : memref<640x128xbf16, #tpu.memory_space<vmem>>, vector<640x128xbf16>
    %cst = arith.constant dense<0.000000e+00> : vector<256x128xf32>
    %6 = tpu.matmul %4, %5, %cst {dimension_numbers = #tpu.dot_dimension_numbers<[1], [0], [0], [1], [0, 0, 1, 1], [], []>} : vector<256x640xbf16>, vector<640x128xbf16>, vector<256x128xf32> -> vector<256x128xf32>
    %7 = arith.addf %3, %6 : vector<256x128xf32>
    %c0_6 = arith.constant 0 : index
    %c0_7 = arith.constant 0 : index
    %8 = vector.load %arg7[%c0_6, %c0_7] : memref<256x128xf32, #tpu.memory_space<vmem>>, vector<256x128xf32>
    tpu.vector_store %arg7[%c0_6, %c0_7], %7 {strides = array<i32>} : memref<256x128xf32, #tpu.memory_space<vmem>>, vector<256x128xf32>,
    %c4_i32 = arith.constant 4 : i32
    %9 = arith.cmpi eq, %arg2, %c4_i32 : i32
    %10 = arith.extui %9 : i1 to i32
    %c0_i32_8 = arith.constant 0 : i32
    %11 = arith.cmpi ne, %10, %c0_i32_8 : i32
    scf.if %11 {
      %c0_9 = arith.constant 0 : index
      %c0_10 = arith.constant 0 : index
      %12 = vector.load %arg7[%c0_9, %c0_10] : memref<256x128xf32, #tpu.memory_space<vmem>>, vector<256x128xf32>
      %c0_11 = arith.constant 0 : index
      %c0_12 = arith.constant 0 : index
      %13 = vector.load %arg5[%c0_11, %c0_12] : memref<1x128xf32, #tpu.memory_space<vmem>>, vector<1x128xf32>
      %14 = vector.broadcast %13 : vector<1x128xf32> to vector<256x128xf32>
      %15 = arith.addf %12, %14 : vector<256x128xf32>
      %c0_13 = arith.constant 0 : index
      %c0_14 = arith.constant 0 : index
      %16 = vector.load %arg6[%c0_13, %c0_14] : memref<256x128xf32, #tpu.memory_space<vmem>>, vector<256x128xf32>
      tpu.vector_store %arg6[%c0_13, %c0_14], %15 {strides = array<i32>} : memref<256x128xf32, #tpu.memory_space<vmem>>, vector<256x128xf32>,
    } else {
    }
    return
  }
  func.func @transform_0(%arg0: i32, %arg1: i32, %arg2: i32) -> (i32, i32) {
    %c0_i32 = arith.constant 0 : i32
    return %arg0, %arg2 : i32, i32
  }
  func.func @transform_1(%arg0: i32, %arg1: i32, %arg2: i32) -> (i32, i32) {
    %c0_i32 = arith.constant 0 : i32
    return %arg2, %arg1 : i32, i32
  }
  func.func @transform_2(%arg0: i32, %arg1: i32, %arg2: i32) -> (i32, i32) {
    %c0_i32 = arith.constant 0 : i32
    %c0_i32_0 = arith.constant 0 : i32
    return %c0_i32, %arg1 : i32, i32
  }
  func.func @transform_3(%arg0: i32, %arg1: i32, %arg2: i32) -> (i32, i32) {
    %c0_i32 = arith.constant 0 : i32
    return %arg0, %arg1 : i32, i32
  }
}

</mosaic_0001>

<llo_original>
// kernel: cnn_forward.3
$region0: #{cnn_forward.3}
  #allocation0 [shape = 'u32[]', space=smem, size = 0x4, offset = 0x4, fixed_abs, tag = 'smem constant byte address 0x4 - core index']
  #allocation1 [shape = 'u32[72,128]{1,0:T(1,128)}', space=vmem, size = 0x9000, scoped, tag = 'internal scratch']
  #allocation2 [shape = 'f32[144,128]{1,0:T(8,128)}', space=vmem, size = 0x12000, scoped, tag = 'scratch operand']
  %s0 = inlined_call_operand.vmem [shape: bf16[288,256], index: 0, kind: input, shape index: {}]
  %s1 = inlined_call_operand.hbm [shape: bf16[256,128], index: 1, kind: input, shape index: {}]
  %s2 = inlined_call_operand.hbm [shape: f32[1,128], index: 2, kind: input, shape index: {}]
  %s3 = inlined_call_operand.vmem [shape: bf16[288,128], index: 3, kind: output, shape index: {}]
  %s4 = sld [smem:[#allocation0]]
  $region61: #{cnn_forward.3} parent=0
    _
  %s6 = ssub.s32 1, %s4
  %s7 = scalar_select 0, %s6, %s4
  $region1: #{cnn_forward.3} parent=0
    #allocation3 [shape = 'u8[65536]{0}', space=vmem, size = 0x10000, scoped, tag = 'input window, operand 1, single buffered']
    #allocation4 [shape = 's32[2]{0}', space=sflag, size = 0x8, scoped, tag = 'scoped memory for cnn_forward.3']
    #allocation5 [shape = 'u8[512]{0}', space=vmem, size = 0x400, scoped, tag = 'input window, operand 2, single buffered']
    #allocation6 [shape = 's32[1]{0}', space=sflag, size = 0x4, scoped, tag = 'scoped memory for cnn_forward.3']
    %8 = vsyncpa [#allocation4], 0
    %9 = vsyncpa [#allocation6], 0
    loop: start=0, step=1, limit=4
    $region2: #{cnn_forward.3} parent=1 // loop_pre_header
      _
    $region3: #{cnn_forward.3} parent=1 // loop_header
      %s11 = sphi 0, %s15
      %p12 = scmp.ge.s32.totalorder %s11, 4
      %s18 = sphi 0, %s37
      %s19 = sphi 0, %s33
      %s20 = sphi 0, %s29
      %s21 = sphi 0, %s18
      %s22 = sphi 0, %s19
      %s23 = sphi 0, %s20
      %s24 = sphi 0, %s21
      %s25 = sphi 0, %s22
      %s26 = sphi 0, %s23
      %s42 = sphi 0, %s44
      %s45 = sphi 0, %s42
      %s46 = sphi 0, %s45
      %s62 = sphi 0, %s46
      %s70 = sphi 0, %s72
      %s73 = sphi 0, %s70
      %s74 = sphi 0, %s73
      %s90 = sphi 0, %s74
      %s96 = sphi 0, %s98
      %s99 = sphi 0, %s96
      %s100 = sphi 0, %s99
      %s116 = sphi 0, %s100
      %s124 = sphi 0, %s126
      %s127 = sphi 0, %s124
      %s128 = sphi 0, %s127
      %s144 = sphi 0, %s128
    $region4: #{cnn_forward.3} parent=1 // loop_header_branch
      %14 = sbr.rel (%p12) target = $region8
    $region5: #{cnn_forward.3} parent=1 // loop_body
      %s16 = ssub.s32 %s11, 1
      %s17 = ssub.s32 %s11, 2
      %s27 = sadd.s32 1, %s20
      %p28 = scmp.ge.s32.totalorder %s27, 1
      %s29 = scalar_select %p28, 0, %s27
      %s30 = sadd.s32 1, %s19
      %s31 = scalar_select %p28, %s30, %s19
      %p32 = scmp.ge.s32.totalorder %s31, 1
      %s33 = scalar_select %p32, 0, %s31
      %s34 = sadd.s32 1, %s18
      %s35 = scalar_select %p32, %s34, %s18
      %p36 = scmp.ge.s32.totalorder %s35, 2
      %s37 = scalar_select %p36, 0, %s35
      %s38 = ssub.s32 %s18, %s37
      %s39 = ssub.s32 %s20, %s29
      %s40 = sor.u32 %s38, %s39
      %p41 = scmp.eq.s32.totalorder %s40, 0
      %s43 = sadd.s32 %s42, 1
      %s44 = scalar_select %p41, %s42, %s43
      %p47 = pneg %p41
      %p48 = scmp.eq.s32.totalorder %s11, 1
      %p49 = por %p47, %p48
      %p50 = scmp.ne.s32.totalorder %s42, %s45
      %p51 = scmp.eq.s32.totalorder %s11, 0
      %p52 = por %p50, %p51
      %p53 = scmp.ne.s32.totalorder %s42, %s45
      %p54 = scmp.eq.s32.totalorder %s16, 1
      %p55 = por %p53, %p54
      %p56 = scmp.ne.s32.totalorder %s45, %s46
      %p57 = scmp.eq.s32.totalorder %s16, 0
      %p58 = por %p56, %p57
      %p59 = scmp.ne.s32.totalorder %s45, %s46
      %p60 = scmp.eq.s32.totalorder %s17, 1
      %p61 = por %p59, %p60
      %p63 = scmp.ne.s32.totalorder %s46, %s62
      %p64 = scmp.eq.s32.totalorder %s17, 0
      %p65 = por %p63, %p64
      %s66 = ssub.s32 %s20, %s29
      %s67 = ssub.s32 %s19, %s33
      %s68 = sor.u32 %s66, %s67
      %p69 = scmp.eq.s32.totalorder %s68, 0
      %s71 = sadd.s32 %s70, 1
      %s72 = scalar_select %p69, %s70, %s71
      %p75 = pneg %p69
      %p76 = scmp.eq.s32.totalorder %s11, 1
      %p77 = por %p75, %p76
      %p78 = scmp.ne.s32.totalorder %s70, %s73
      %p79 = scmp.eq.s32.totalorder %s11, 0
      %p80 = por %p78, %p79
      %p81 = scmp.ne.s32.totalorder %s70, %s73
      %p82 = scmp.eq.s32.totalorder %s16, 1
      %p83 = por %p81, %p82
      %p84 = scmp.ne.s32.totalorder %s73, %s74
      %p85 = scmp.eq.s32.totalorder %s16, 0
      %p86 = por %p84, %p85
      %p87 = scmp.ne.s32.totalorder %s73, %s74
      %p88 = scmp.eq.s32.totalorder %s17, 1
      %p89 = por %p87, %p88
      %p91 = scmp.ne.s32.totalorder %s74, %s90
      %p92 = scmp.eq.s32.totalorder %s17, 0
      %p93 = por %p91, %p92
      %s94 = ssub.s32 %s19, %s33
      %p95 = scmp.eq.s32.totalorder %s94, 0
      %s97 = sadd.s32 %s96, 1
      %s98 = scalar_select %p95, %s96, %s97
      %p101 = pneg %p95
      %p102 = scmp.eq.s32.totalorder %s11, 1
      %p103 = por %p101, %p102
      %p104 = scmp.ne.s32.totalorder %s96, %s99
      %p105 = scmp.eq.s32.totalorder %s11, 0
      %p106 = por %p104, %p105
      %p107 = scmp.ne.s32.totalorder %s96, %s99
      %p108 = scmp.eq.s32.totalorder %s16, 1
      %p109 = por %p107, %p108
      %p110 = scmp.ne.s32.totalorder %s99, %s100
      %p111 = scmp.eq.s32.totalorder %s16, 0
      %p112 = por %p110, %p111
      %p113 = scmp.ne.s32.totalorder %s99, %s100
      %p114 = scmp.eq.s32.totalorder %s17, 1
      %p115 = por %p113, %p114
      %p117 = scmp.ne.s32.totalorder %s100, %s116
      %p118 = scmp.eq.s32.totalorder %s17, 0
      %p119 = por %p117, %p118
      %s120 = ssub.s32 %s18, %s37
      %s121 = ssub.s32 %s19, %s33
      %s122 = sor.u32 %s120, %s121
      %p123 = scmp.eq.s32.totalorder %s122, 0
      %s125 = sadd.s32 %s124, 1
      %s126 = scalar_select %p123, %s124, %s125
      %p129 = pneg %p123
      %p130 = scmp.eq.s32.totalorder %s11, 1
      %p131 = por %p129, %p130
      %p132 = scmp.ne.s32.totalorder %s124, %s127
      %p133 = scmp.eq.s32.totalorder %s11, 0
      %p134 = por %p132, %p133
      %p135 = scmp.ne.s32.totalorder %s124, %s127
      %p136 = scmp.eq.s32.totalorder %s16, 1
      %p137 = por %p135, %p136
      %p138 = scmp.ne.s32.totalorder %s127, %s128
      %p139 = scmp.eq.s32.totalorder %s16, 0
      %p140 = por %p138, %p139
      %p141 = scmp.ne.s32.totalorder %s127, %s128
      %p142 = scmp.eq.s32.totalorder %s17, 1
      %p143 = por %p141, %p142
      %p145 = scmp.ne.s32.totalorder %s128, %s144
      %p146 = scmp.eq.s32.totalorder %s17, 0
      %p147 = por %p145, %p146
      %p148 = scmp.le.s32.totalorder 1, %s11
      %p149 = scmp.lt.s32.totalorder %s11, 3
      %p150 = pnand %p148, %p149
      %p151 = pneg %p150
      // Predicated region
      $region9: #{cnn_forward.3} parent=5 // pred_check
        _
      $region10: #{cnn_forward.3} parent=5 // pred_check_branch
        %153 = sbr.rel (%p150) target = $region12
      $region11: #{cnn_forward.3} parent=5 // pred_region
        %s154 = ssub.s32 %s11, 1
        // Predicated region
        $region13: #{cnn_forward.3} parent=11 // pred_check
          %p155 = pneg %p86
        $region14: #{cnn_forward.3} parent=11 // pred_check_branch
          %157 = sbr.rel (%p155) target = $region16
        $region15: #{cnn_forward.3} parent=11 // pred_region
          %s158 = smul.u32 32, %s23
          %160 = vsyncadd [#allocation4], 0
          %s161 = sadd.s32 %s22, %s158
          %s162 = smul.addr %s161, 4
          %s163 = scalar_lea.hbm %s1, %s162
          %s164 = sshll.u32 %s163, 4
          %s165 = int_to_ptr.hbm [resolvable:$true] %s164
          %s166 = sshll.u32 [#allocation3], 4
          %s167 = int_to_ptr.vmem [resolvable:$true] %s166
          %172 = dma.hbm_to_vmem [thread:$0]  %s165, 2048, %s167, [#allocation4], 64, 64, 4
        $region16: #{cnn_forward.3} parent=11 // pred_fallthru
          _
        // Predicated region
        $region17: #{cnn_forward.3} parent=11 // pred_check
          %p173 = pneg %p112
        $region18: #{cnn_forward.3} parent=11 // pred_check_branch
          %175 = sbr.rel (%p173) target = $region20
        $region19: #{cnn_forward.3} parent=11 // pred_region
          %177 = vsyncadd [#allocation6], 0
          %s178 = scalar_lea.hbm %s2, %s22
          %s180 = sshll.u32 %s178, 4
          %s181 = int_to_ptr.hbm [resolvable:$true] %s180
          %s182 = sshll.u32 [#allocation5], 4
          %s183 = int_to_ptr.vmem [resolvable:$true] %s182
          %185 = dma.hbm_to_vmem [thread:$0]  %s181, 16, %s183, [#allocation6]
        $region20: #{cnn_forward.3} parent=11 // pred_fallthru
          _
      $region12: #{cnn_forward.3} parent=5 // pred_fallthru
        _
      %p186 = scmp.lt.s32.totalorder %s11, 2
      // Predicated region
      $region21: #{cnn_forward.3} parent=5 // pred_check
        %p187 = pneg %p186
      $region22: #{cnn_forward.3} parent=5 // pred_check_branch
        %189 = sbr.rel (%p187) target = $region24
      $region23: #{cnn_forward.3} parent=5 // pred_region
        // Predicated region
        $region25: #{cnn_forward.3} parent=23 // pred_check
          %p190 = pneg %p52
        $region26: #{cnn_forward.3} parent=23 // pred_check_branch
          %192 = sbr.rel (%p190) target = $region28
        $region27: #{cnn_forward.3} parent=23 // pred_region
          %s193 = smul.u32 18, %s18
          %s194 = smul.u32 2, %s20
          %p195 = scmp.lt.s32.totalorder %s193, 35
          %s196 = scalar_select %p195, %s193, 35
          %p197 = scmp.lt.s32.totalorder %s194, 1
          %s198 = scalar_select %p197, %s194, 1
          %s199 = smul.addr %s196, 2
          %s200 = sadd.s32 %s198, %s199
          %s201 = smul.addr %s200, 4
          %s202 = scalar_lea.vmem %s0, %s201
          %s203 = smul.u32 18, %s18
          %s204 = smul.u32 2, %s20
        $region28: #{cnn_forward.3} parent=23 // pred_fallthru
          _
      $region24: #{cnn_forward.3} parent=5 // pred_fallthru
        _
      %p205 = scmp.le.s32.totalorder 1, %s11
      %p206 = scmp.lt.s32.totalorder %s11, 3
      %p207 = pnand %p205, %p206
      %p208 = pneg %p207
      // Predicated region
      $region29: #{cnn_forward.3} parent=5 // pred_check
        _
      $region30: #{cnn_forward.3} parent=5 // pred_check_branch
        %210 = sbr.rel (%p207) target = $region32
      $region31: #{cnn_forward.3} parent=5 // pred_region
        %s211 = ssub.s32 %s11, 1
        // Predicated region
        $region33: #{cnn_forward.3} parent=31 // pred_check
          %p212 = pneg %p86
        $region34: #{cnn_forward.3} parent=31 // pred_check_branch
          %214 = sbr.rel (%p212) target = $region36
        $region35: #{cnn_forward.3} parent=31 // pred_region
          %216 = dma.done [#allocation4], 2048
        $region36: #{cnn_forward.3} parent=31 // pred_fallthru
          _
        // Predicated region
        $region37: #{cnn_forward.3} parent=31 // pred_check
          %p217 = pneg %p112
        $region38: #{cnn_forward.3} parent=31 // pred_check_branch
          %219 = sbr.rel (%p217) target = $region40
        $region39: #{cnn_forward.3} parent=31 // pred_region
          %221 = dma.done [#allocation6], 16
        $region40: #{cnn_forward.3} parent=31 // pred_fallthru
          _
        %s222 = smul.u32 18, %s21
        %s223 = smul.u32 2, %s23
        %p224 = scmp.lt.s32.totalorder %s222, 35
        %s225 = scalar_select %p224, %s222, 35
        %p226 = scmp.lt.s32.totalorder %s223, 1
        %s227 = scalar_select %p226, %s223, 1
        %s228 = smul.addr %s225, 2
        %s229 = sadd.s32 %s227, %s228
        %s230 = smul.addr %s229, 4
        %s231 = scalar_lea.vmem %s0, %s230
        %p232 = pneg %p58
        %p233 = pneg %p55
        %p234 = pneg %p86
        %p235 = pneg %p83
        %p236 = pneg %p112
        %p237 = pneg %p109
        %p238 = pneg %p140
        %p239 = pneg %p137
        %s240 = smul.u32 18, %s21
        %p241 = scmp.lt.s32.totalorder %s240, 35
        %s242 = scalar_select %p241, %s240, 35
        %p243 = scmp.lt.s32.totalorder %s22, 0
        %s244 = scalar_select %p243, %s22, 0
        %s245 = sadd.s32 %s244, %s242
        %s246 = smul.addr %s245, 4
        %s247 = scalar_lea.vmem %s3, %s246
        %s248 = smul.u32 18, %s21
        %s249 = smul.u32 2, %s23
        %p250 = scmp.lt.s32.totalorder %s248, 35
        %s251 = scalar_select %p250, %s248, 35
        %p252 = scmp.lt.s32.totalorder %s249, 1
        %s253 = scalar_select %p252, %s249, 1
        %s254 = smul.addr %s251, 2
        %s255 = sadd.s32 %s253, %s254
        %s256 = smul.addr %s255, 4
        %s257 = scalar_lea.vmem %s0, %s256
        %s258 = smul.u32 18, %s21
        %s259 = smul.u32 2, %s23
        %s260 = smul.u32 32, %s23
        %s261 = smul.u32 18, %s21
        %p262 = scmp.lt.s32.totalorder %s261, 35
        %s263 = scalar_select %p262, %s261, 35
        %p264 = scmp.lt.s32.totalorder %s22, 0
        %s265 = scalar_select %p264, %s22, 0
        %s266 = sadd.s32 %s265, %s263
        %s267 = smul.addr %s266, 4
        %s268 = scalar_lea.vmem %s3, %s267
        %s269 = smul.u32 18, %s21
        %p270 = scmp.eq.s32.totalorder %s23, 0
        // Predicated region
        $region41: #{cnn_forward.3} parent=31 // pred_check
          %p271 = pneg %p270
        $region42: #{cnn_forward.3} parent=31 // pred_check_branch
          %273 = sbr.rel (%p271) target = $region44
        $region43: #{cnn_forward.3} parent=31 // pred_region
          %274 = vst [vmem:[#allocation2] sm:$0xff] 0.0
          %275 = vst [vmem:[#allocation2 + $0x8] sm:$0xff] 0.0
          %276 = vst [vmem:[#allocation2 + $0x10] sm:$0xff] 0.0
          %277 = vst [vmem:[#allocation2 + $0x18] sm:$0xff] 0.0
          %278 = vst [vmem:[#allocation2 + $0x20] sm:$0xff] 0.0
          %279 = vst [vmem:[#allocation2 + $0x28] sm:$0xff] 0.0
          %280 = vst [vmem:[#allocation2 + $0x30] sm:$0xff] 0.0
          %281 = vst [vmem:[#allocation2 + $0x38] sm:$0xff] 0.0
          %282 = vst [vmem:[#allocation2 + $0x40] sm:$0xff] 0.0
          %283 = vst [vmem:[#allocation2 + $0x48] sm:$0xff] 0.0
          %284 = vst [vmem:[#allocation2 + $0x50] sm:$0xff] 0.0
          %285 = vst [vmem:[#allocation2 + $0x58] sm:$0xff] 0.0
          %286 = vst [vmem:[#allocation2 + $0x60] sm:$0xff] 0.0
          %287 = vst [vmem:[#allocation2 + $0x68] sm:$0xff] 0.0
          %288 = vst [vmem:[#allocation2 + $0x70] sm:$0xff] 0.0
          %289 = vst [vmem:[#allocation2 + $0x78] sm:$0xff] 0.0
          %290 = vst [vmem:[#allocation2 + $0x80] sm:$0xff] 0.0
          %291 = vst [vmem:[#allocation2 + $0x88] sm:$0xff] 0.0
        $region44: #{cnn_forward.3} parent=31 // pred_fallthru
          _
        %v292 = vld [vmem:[#allocation2] sm:$0xff]
        %v293 = vld [vmem:[#allocation2 + $0x8] sm:$0xff]
        %v294 = vld [vmem:[#allocation2 + $0x10] sm:$0xff]
        %v295 = vld [vmem:[#allocation2 + $0x18] sm:$0xff]
        %v296 = vld [vmem:[#allocation2 + $0x20] sm:$0xff]
        %v297 = vld [vmem:[#allocation2 + $0x28] sm:$0xff]
        %v298 = vld [vmem:[#allocation2 + $0x30] sm:$0xff]
        %v299 = vld [vmem:[#allocation2 + $0x38] sm:$0xff]
        %v300 = vld [vmem:[#allocation2 + $0x40] sm:$0xff]
        %v301 = vld [vmem:[#allocation2 + $0x48] sm:$0xff]
        %v302 = vld [vmem:[#allocation2 + $0x50] sm:$0xff]
        %v303 = vld [vmem:[#allocation2 + $0x58] sm:$0xff]
        %v304 = vld [vmem:[#allocation2 + $0x60] sm:$0xff]
        %v305 = vld [vmem:[#allocation2 + $0x68] sm:$0xff]
        %v306 = vld [vmem:[#allocation2 + $0x70] sm:$0xff]
        %v307 = vld [vmem:[#allocation2 + $0x78] sm:$0xff]
        %v308 = vld [vmem:[#allocation2 + $0x80] sm:$0xff]
        %v309 = vld [vmem:[#allocation2 + $0x88] sm:$0xff]
        %v310 = vld [vmem:[%s257] sm:$0xff]
        %v311 = vld [vmem:[%s257 + $0x8] sm:$0xff]
        %v312 = vld [vmem:[%s257 + $0x10] sm:$0xff]
        %v313 = vld [vmem:[%s257 + $0x18] sm:$0xff]
        %v314 = vld [vmem:[%s257 + $0x20] sm:$0xff]
        %v315 = vld [vmem:[%s257 + $0x28] sm:$0xff]
        %v316 = vld [vmem:[%s257 + $0x30] sm:$0xff]
        %v317 = vld [vmem:[%s257 + $0x38] sm:$0xff]
        %v318 = vld [vmem:[%s257 + $0x40] sm:$0xff]
        %v319 = vld [vmem:[%s257 + $0x48] sm:$0xff]
        %v320 = vld [vmem:[%s257 + $0x50] sm:$0xff]
        %v321 = vld [vmem:[%s257 + $0x58] sm:$0xff]
        %v322 = vld [vmem:[%s257 + $0x60] sm:$0xff]
        %v323 = vld [vmem:[%s257 + $0x68] sm:$0xff]
        %v324 = vld [vmem:[%s257 + $0x70] sm:$0xff]
        %v325 = vld [vmem:[%s257 + $0x78] sm:$0xff]
        %v326 = vld [vmem:[%s257 + $0x80] sm:$0xff]
        %v327 = vld [vmem:[%s257 + $0x88] sm:$0xff]
        %v328 = vld [vmem:[#allocation3] sm:$0xf]
        %v329 = vld [vmem:[#allocation3 + $0x4] sm:$0xf]
        %v330 = vld [vmem:[#allocation3 + $0x8] sm:$0xf]
        %v331 = vld [vmem:[#allocation3 + $0xc] sm:$0xf]
        %v332 = vld [vmem:[#allocation3 + $0x10] sm:$0xf]
        %v333 = vld [vmem:[#allocation3 + $0x14] sm:$0xf]
        %v334 = vld [vmem:[#allocation3 + $0x18] sm:$0xf]
        %v335 = vld [vmem:[#allocation3 + $0x1c] sm:$0xf]
        %v336 = vld [vmem:[#allocation3 + $0x20] sm:$0xf]
        %v337 = vld [vmem:[#allocation3 + $0x24] sm:$0xf]
        %v338 = vld [vmem:[#allocation3 + $0x28] sm:$0xf]
        %v339 = vld [vmem:[#allocation3 + $0x2c] sm:$0xf]
        %v340 = vld [vmem:[#allocation3 + $0x30] sm:$0xf]
        %v341 = vld [vmem:[#allocation3 + $0x34] sm:$0xf]
        %v342 = vld [vmem:[#allocation3 + $0x38] sm:$0xf]
        %v343 = vld [vmem:[#allocation3 + $0x3c] sm:$0xf]
        %v344 = vld [vmem:[#allocation3 + $0x40] sm:$0xf]
        %v345 = vld [vmem:[#allocation3 + $0x44] sm:$0xf]
        %v346 = vld [vmem:[#allocation3 + $0x48] sm:$0xf]
        %v347 = vld [vmem:[#allocation3 + $0x4c] sm:$0xf]
        %v348 = vld [vmem:[#allocation3 + $0x50] sm:$0xf]
        %v349 = vld [vmem:[#allocation3 + $0x54] sm:$0xf]
        %v350 = vld [vmem:[#allocation3 + $0x58] sm:$0xf]
        %v351 = vld [vmem:[#allocation3 + $0x5c] sm:$0xf]
        %v352 = vld [vmem:[#allocation3 + $0x60] sm:$0xf]
        %v353 = vld [vmem:[#allocation3 + $0x64] sm:$0xf]
        %v354 = vld [vmem:[#allocation3 + $0x68] sm:$0xf]
        %v355 = vld [vmem:[#allocation3 + $0x6c] sm:$0xf]
        %v356 = vld [vmem:[#allocation3 + $0x70] sm:$0xf]
        %v357 = vld [vmem:[#allocation3 + $0x74] sm:$0xf]
        %v358 = vld [vmem:[#allocation3 + $0x78] sm:$0xf]
        %v359 = vld [vmem:[#allocation3 + $0x7c] sm:$0xf]
        %v378 = vunpack.c.l.b16 %v310
        %v379 = vunpack.c.h.b16 %v310
        %v380 = vunpack.c.l.b16 %v311
        %v381 = vunpack.c.h.b16 %v311
        %v382 = vunpack.c.l.b16 %v312
        %v383 = vunpack.c.h.b16 %v312
        %v384 = vunpack.c.l.b16 %v313
        %v385 = vunpack.c.h.b16 %v313
        %v386 = vunpack.c.l.b16 %v314
        %v387 = vunpack.c.h.b16 %v314
        %v388 = vunpack.c.l.b16 %v315
        %v389 = vunpack.c.h.b16 %v315
        %v390 = vunpack.c.l.b16 %v316
        %v391 = vunpack.c.h.b16 %v316
        %v392 = vunpack.c.l.b16 %v317
        %v393 = vunpack.c.h.b16 %v317
        %v394 = vunpack.c.l.b16 %v318
        %v395 = vunpack.c.h.b16 %v318
        %v396 = vunpack.c.l.b16 %v319
        %v397 = vunpack.c.h.b16 %v319
        %v398 = vunpack.c.l.b16 %v320
        %v399 = vunpack.c.h.b16 %v320
        %v400 = vunpack.c.l.b16 %v321
        %v401 = vunpack.c.h.b16 %v321
        %v402 = vunpack.c.l.b16 %v322
        %v403 = vunpack.c.h.b16 %v322
        %v404 = vunpack.c.l.b16 %v323
        %v405 = vunpack.c.h.b16 %v323
        %v406 = vunpack.c.l.b16 %v324
        %v407 = vunpack.c.h.b16 %v324
        %v408 = vunpack.c.l.b16 %v325
        %v409 = vunpack.c.h.b16 %v325
        %v410 = vunpack.c.l.b16 %v326
        %v411 = vunpack.c.h.b16 %v326
        %v412 = vunpack.c.l.b16 %v327
        %v413 = vunpack.c.h.b16 %v327
        %v414 = vpack.c.b16 %v380, %v378
        %v415 = vpack.c.b16 %v381, %v379
        %v416 = vpack.c.b16 %v384, %v382
        %v417 = vpack.c.b16 %v385, %v383
        %v418 = vpack.c.b16 %v388, %v386
        %v419 = vpack.c.b16 %v389, %v387
        %v420 = vpack.c.b16 %v392, %v390
        %v421 = vpack.c.b16 %v393, %v391
        %v422 = vpack.c.b16 %v396, %v394
        %v423 = vpack.c.b16 %v397, %v395
        %v424 = vpack.c.b16 %v400, %v398
        %v425 = vpack.c.b16 %v401, %v399
        %v426 = vpack.c.b16 %v404, %v402
        %v427 = vpack.c.b16 %v405, %v403
        %v428 = vpack.c.b16 %v408, %v406
        %v429 = vpack.c.b16 %v409, %v407
        %v430 = vpack.c.b16 %v412, %v410
        %v431 = vpack.c.b16 %v413, %v411
        %v482 = vunpack.c.l.b16 %v328
        %v483 = vunpack.c.l.b16 %v329
        %v484 = vunpack.c.l.b16 %v330
        %v485 = vunpack.c.l.b16 %v331
        %v486 = vunpack.c.l.b16 %v332
        %v487 = vunpack.c.l.b16 %v333
        %v488 = vunpack.c.l.b16 %v334
        %v489 = vunpack.c.l.b16 %v335
        %v490 = vunpack.c.l.b16 %v336
        %v491 = vunpack.c.l.b16 %v337
        %v492 = vunpack.c.l.b16 %v338
        %v493 = vunpack.c.l.b16 %v339
        %v494 = vunpack.c.l.b16 %v340
        %v495 = vunpack.c.l.b16 %v341
        %v496 = vunpack.c.l.b16 %v342
        %v497 = vunpack.c.l.b16 %v343
        %v498 = vunpack.c.l.b16 %v344
        %v499 = vunpack.c.l.b16 %v345
        %v500 = vunpack.c.l.b16 %v346
        %v501 = vunpack.c.l.b16 %v347
        %v502 = vunpack.c.l.b16 %v348
        %v503 = vunpack.c.l.b16 %v349
        %v504 = vunpack.c.l.b16 %v350
        %v505 = vunpack.c.l.b16 %v351
        %v506 = vunpack.c.l.b16 %v352
        %v507 = vunpack.c.l.b16 %v353
        %v508 = vunpack.c.l.b16 %v354
        %v509 = vunpack.c.l.b16 %v355
        %v510 = vunpack.c.l.b16 %v356
        %v511 = vunpack.c.l.b16 %v357
        %v512 = vunpack.c.l.b16 %v358
        %v513 = vunpack.c.l.b16 %v359
        %v514 = vpack.c.b16 %v483, %v482
        %v515 = vpack.c.b16 %v485, %v484
        %v516 = vpack.c.b16 %v487, %v486
        %v517 = vpack.c.b16 %v489, %v488
        %v518 = vpack.c.b16 %v491, %v490
        %v519 = vpack.c.b16 %v493, %v492
        %v520 = vpack.c.b16 %v495, %v494
        %v521 = vpack.c.b16 %v497, %v496
        %v522 = vpack.c.b16 %v499, %v498
        %v523 = vpack.c.b16 %v501, %v500
        %v524 = vpack.c.b16 %v503, %v502
        %v525 = vpack.c.b16 %v505, %v504
        %v526 = vpack.c.b16 %v507, %v506
        %v527 = vpack.c.b16 %v509, %v508
        %v528 = vpack.c.b16 %v511, %v510
        %v529 = vpack.c.b16 %v513, %v512
        %546 = vmatpush.bf16.msra.mxu0 %v521
        %547 = vmatpush.bf16.msra.mxu0 %v520
        %548 = vmatpush.bf16.msra.mxu0 %v519
        %549 = vmatpush.bf16.msra.mxu0 %v518
        %550 = vmatpush.bf16.msra.mxu0 %v517
        %551 = vmatpush.bf16.msra.mxu0 %v516
        %552 = vmatpush.bf16.msra.mxu0 %v515
        %553 = vmatpush.bf16.msra.mxu0 %v514
        %554 = vmatmul.bf16.gmra.mxu0 %v414
        %v555 = vpop.f32.mrf.mxu0
        %v556 = vadd.f32 0.0, %v555
        %v557 = vpop.f32.mrf.mxu0
        %v558 = vadd.f32 0.0, %v557
        %559 = vmatmul.bf16.gmra.mxu0 %v416
        %v560 = vpop.f32.mrf.mxu0
        %v561 = vadd.f32 0.0, %v560
        %v562 = vpop.f32.mrf.mxu0
        %v563 = vadd.f32 0.0, %v562
        %564 = vmatmul.bf16.gmra.mxu0 %v418
        %v565 = vpop.f32.mrf.mxu0
        %v566 = vadd.f32 0.0, %v565
        %v567 = vpop.f32.mrf.mxu0
        %v568 = vadd.f32 0.0, %v567
        %569 = vmatmul.bf16.gmra.mxu0 %v420
        %v570 = vpop.f32.mrf.mxu0
        %v571 = vadd.f32 0.0, %v570
        %v572 = vpop.f32.mrf.mxu0
        %v573 = vadd.f32 0.0, %v572
        %574 = vmatmul.bf16.gmra.mxu0 %v422
        %v575 = vpop.f32.mrf.mxu0
        %v576 = vadd.f32 0.0, %v575
        %v577 = vpop.f32.mrf.mxu0
        %v578 = vadd.f32 0.0, %v577
        %579 = vmatmul.bf16.gmra.mxu0 %v424
        %v580 = vpop.f32.mrf.mxu0
        %v581 = vadd.f32 0.0, %v580
        %v582 = vpop.f32.mrf.mxu0
        %v583 = vadd.f32 0.0, %v582
        %584 = vmatmul.bf16.gmra.mxu0 %v426
        %v585 = vpop.f32.mrf.mxu0
        %v586 = vadd.f32 0.0, %v585
        %v587 = vpop.f32.mrf.mxu0
        %v588 = vadd.f32 0.0, %v587
        %589 = vmatmul.bf16.gmra.mxu0 %v428
        %v590 = vpop.f32.mrf.mxu0
        %v591 = vadd.f32 0.0, %v590
        %v592 = vpop.f32.mrf.mxu0
        %v593 = vadd.f32 0.0, %v592
        %594 = vmatmul.bf16.gmra.mxu0 %v430
        %v595 = vpop.f32.mrf.mxu0
        %v596 = vadd.f32 0.0, %v595
        %v597 = vpop.f32.mrf.mxu0
        %v598 = vadd.f32 0.0, %v597
        %599 = vdwg.mxu0
        %600 = vmatpush.bf16.msra.mxu0 %v529
        %601 = vmatpush.bf16.msra.mxu0 %v528
        %602 = vmatpush.bf16.msra.mxu0 %v527
        %603 = vmatpush.bf16.msra.mxu0 %v526
        %604 = vmatpush.bf16.msra.mxu0 %v525
        %605 = vmatpush.bf16.msra.mxu0 %v524
        %606 = vmatpush.bf16.msra.mxu0 %v523
        %607 = vmatpush.bf16.msra.mxu0 %v522
        %608 = vmatmul.bf16.gmra.mxu0 %v415
        %v609 = vpop.f32.mrf.mxu0
        %v610 = vadd.f32 %v556, %v609
        %v611 = vpop.f32.mrf.mxu0
        %v612 = vadd.f32 %v558, %v611
        %613 = vmatmul.bf16.gmra.mxu0 %v417
        %v614 = vpop.f32.mrf.mxu0
        %v615 = vadd.f32 %v561, %v614
        %v616 = vpop.f32.mrf.mxu0
        %v617 = vadd.f32 %v563, %v616
        %618 = vmatmul.bf16.gmra.mxu0 %v419
        %v619 = vpop.f32.mrf.mxu0
        %v620 = vadd.f32 %v566, %v619
        %v621 = vpop.f32.mrf.mxu0
        %v622 = vadd.f32 %v568, %v621
        %623 = vmatmul.bf16.gmra.mxu0 %v421
        %v624 = vpop.f32.mrf.mxu0
        %v625 = vadd.f32 %v571, %v624
        %v626 = vpop.f32.mrf.mxu0
        %v627 = vadd.f32 %v573, %v626
        %628 = vmatmul.bf16.gmra.mxu0 %v423
        %v629 = vpop.f32.mrf.mxu0
        %v630 = vadd.f32 %v576, %v629
        %v631 = vpop.f32.mrf.mxu0
        %v632 = vadd.f32 %v578, %v631
        %633 = vmatmul.bf16.gmra.mxu0 %v425
        %v634 = vpop.f32.mrf.mxu0
        %v635 = vadd.f32 %v581, %v634
        %v636 = vpop.f32.mrf.mxu0
        %v637 = vadd.f32 %v583, %v636
        %638 = vmatmul.bf16.gmra.mxu0 %v427
        %v639 = vpop.f32.mrf.mxu0
        %v640 = vadd.f32 %v586, %v639
        %v641 = vpop.f32.mrf.mxu0
        %v642 = vadd.f32 %v588, %v641
        %643 = vmatmul.bf16.gmra.mxu0 %v429
        %v644 = vpop.f32.mrf.mxu0
        %v645 = vadd.f32 %v591, %v644
        %v646 = vpop.f32.mrf.mxu0
        %v647 = vadd.f32 %v593, %v646
        %648 = vmatmul.bf16.gmra.mxu0 %v431
        %v649 = vpop.f32.mrf.mxu0
        %v650 = vadd.f32 %v596, %v649
        %v651 = vpop.f32.mrf.mxu0
        %v652 = vadd.f32 %v598, %v651
        %653 = vdwg.mxu0
        %v654 = vadd.f32 %v292, %v610
        %v655 = vadd.f32 %v293, %v612
        %v656 = vadd.f32 %v294, %v615
        %v657 = vadd.f32 %v295, %v617
        %v658 = vadd.f32 %v296, %v620
        %v659 = vadd.f32 %v297, %v622
        %v660 = vadd.f32 %v298, %v625
        %v661 = vadd.f32 %v299, %v627
        %v662 = vadd.f32 %v300, %v630
        %v663 = vadd.f32 %v301, %v632
        %v664 = vadd.f32 %v302, %v635
        %v665 = vadd.f32 %v303, %v637
        %v666 = vadd.f32 %v304, %v640
        %v667 = vadd.f32 %v305, %v642
        %v668 = vadd.f32 %v306, %v645
        %v669 = vadd.f32 %v307, %v647
        %v670 = vadd.f32 %v308, %v650
        %v671 = vadd.f32 %v309, %v652
        %672 = vst [vmem:[#allocation2] sm:$0xff] %v654
        %673 = vst [vmem:[#allocation2 + $0x8] sm:$0xff] %v655
        %674 = vst [vmem:[#allocation2 + $0x10] sm:$0xff] %v656
        %675 = vst [vmem:[#allocation2 + $0x18] sm:$0xff] %v657
        %676 = vst [vmem:[#allocation2 + $0x20] sm:$0xff] %v658
        %677 = vst [vmem:[#allocation2 + $0x28] sm:$0xff] %v659
        %678 = vst [vmem:[#allocation2 + $0x30] sm:$0xff] %v660
        %679 = vst [vmem:[#allocation2 + $0x38] sm:$0xff] %v661
        %680 = vst [vmem:[#allocation2 + $0x40] sm:$0xff] %v662
        %681 = vst [vmem:[#allocation2 + $0x48] sm:$0xff] %v663
        %682 = vst [vmem:[#allocation2 + $0x50] sm:$0xff] %v664
        %683 = vst [vmem:[#allocation2 + $0x58] sm:$0xff] %v665
        %684 = vst [vmem:[#allocation2 + $0x60] sm:$0xff] %v666
        %685 = vst [vmem:[#allocation2 + $0x68] sm:$0xff] %v667
        %686 = vst [vmem:[#allocation2 + $0x70] sm:$0xff] %v668
        %687 = vst [vmem:[#allocation2 + $0x78] sm:$0xff] %v669
        %688 = vst [vmem:[#allocation2 + $0x80] sm:$0xff] %v670
        %689 = vst [vmem:[#allocation2 + $0x88] sm:$0xff] %v671
        // Predicated region
        $region45: #{cnn_forward.3} parent=31 // pred_check
          %p690 = pneg %p270
        $region46: #{cnn_forward.3} parent=31 // pred_check_branch
          %692 = sbr.rel (%p690) target = $region48
        $region47: #{cnn_forward.3} parent=31 // pred_region
          %v693 = vld [vmem:[#allocation2] sm:$0xff]
          %v694 = vld [vmem:[#allocation2 + $0x8] sm:$0xff]
          %v695 = vld [vmem:[#allocation2 + $0x10] sm:$0xff]
          %v696 = vld [vmem:[#allocation2 + $0x18] sm:$0xff]
          %v697 = vld [vmem:[#allocation2 + $0x20] sm:$0xff]
          %v698 = vld [vmem:[#allocation2 + $0x28] sm:$0xff]
          %v699 = vld [vmem:[#allocation2 + $0x30] sm:$0xff]
          %v700 = vld [vmem:[#allocation2 + $0x38] sm:$0xff]
          %v701 = vld [vmem:[#allocation2 + $0x40] sm:$0xff]
          %v702 = vld [vmem:[#allocation2 + $0x48] sm:$0xff]
          %v703 = vld [vmem:[#allocation2 + $0x50] sm:$0xff]
          %v704 = vld [vmem:[#allocation2 + $0x58] sm:$0xff]
          %v705 = vld [vmem:[#allocation2 + $0x60] sm:$0xff]
          %v706 = vld [vmem:[#allocation2 + $0x68] sm:$0xff]
          %v707 = vld [vmem:[#allocation2 + $0x70] sm:$0xff]
          %v708 = vld [vmem:[#allocation2 + $0x78] sm:$0xff]
          %v709 = vld [vmem:[#allocation2 + $0x80] sm:$0xff]
          %v710 = vld [vmem:[#allocation2 + $0x88] sm:$0xff]
          %v711 = vld [vmem:[#allocation5] sm:$0x1]
          %v713 = vperm.slane %v711, 0
          %v715 = vadd.f32 %v693, %v713
          %v716 = vadd.f32 %v694, %v713
          %v717 = vadd.f32 %v695, %v713
          %v718 = vadd.f32 %v696, %v713
          %v719 = vadd.f32 %v697, %v713
          %v720 = vadd.f32 %v698, %v713
          %v721 = vadd.f32 %v699, %v713
          %v722 = vadd.f32 %v700, %v713
          %v723 = vadd.f32 %v701, %v713
          %v724 = vadd.f32 %v702, %v713
          %v725 = vadd.f32 %v703, %v713
          %v726 = vadd.f32 %v704, %v713
          %v727 = vadd.f32 %v705, %v713
          %v728 = vadd.f32 %v706, %v713
          %v729 = vadd.f32 %v707, %v713
          %v730 = vadd.f32 %v708, %v713
          %v731 = vadd.f32 %v709, %v713
          %v732 = vadd.f32 %v710, %v713
          %v733 = vmax.f32 %v715, 0.0
          %v734 = vmax.f32 %v716, 0.0
          %v735 = vmax.f32 %v717, 0.0
          %v736 = vmax.f32 %v718, 0.0
          %v737 = vmax.f32 %v719, 0.0
          %v738 = vmax.f32 %v720, 0.0
          %v739 = vmax.f32 %v721, 0.0
          %v740 = vmax.f32 %v722, 0.0
          %v741 = vmax.f32 %v723, 0.0
          %v742 = vmax.f32 %v724, 0.0
          %v743 = vmax.f32 %v725, 0.0
          %v744 = vmax.f32 %v726, 0.0
          %v745 = vmax.f32 %v727, 0.0
          %v746 = vmax.f32 %v728, 0.0
          %v747 = vmax.f32 %v729, 0.0
          %v748 = vmax.f32 %v730, 0.0
          %v749 = vmax.f32 %v731, 0.0
          %v750 = vmax.f32 %v732, 0.0
          %v751 = vpack.c.bf16 %v733, %v733
          %v752 = vpack.c.bf16 %v734, %v734
          %v753 = vpack.c.bf16 %v735, %v735
          %v754 = vpack.c.bf16 %v736, %v736
          %v755 = vpack.c.bf16 %v737, %v737
          %v756 = vpack.c.bf16 %v738, %v738
          %v757 = vpack.c.bf16 %v739, %v739
          %v758 = vpack.c.bf16 %v740, %v740
          %v759 = vpack.c.bf16 %v741, %v741
          %v760 = vpack.c.bf16 %v742, %v742
          %v761 = vpack.c.bf16 %v743, %v743
          %v762 = vpack.c.bf16 %v744, %v744
          %v763 = vpack.c.bf16 %v745, %v745
          %v764 = vpack.c.bf16 %v746, %v746
          %v765 = vpack.c.bf16 %v747, %v747
          %v766 = vpack.c.bf16 %v748, %v748
          %v767 = vpack.c.bf16 %v749, %v749
          %v768 = vpack.c.bf16 %v750, %v750
          %769 = vst [vmem:[%s268] sm:$0xf] %v751
          %770 = vst [vmem:[%s268 + $0x4] sm:$0xf] %v752
          %771 = vst [vmem:[%s268 + $0x8] sm:$0xf] %v753
          %772 = vst [vmem:[%s268 + $0xc] sm:$0xf] %v754
          %773 = vst [vmem:[%s268 + $0x10] sm:$0xf] %v755
          %774 = vst [vmem:[%s268 + $0x14] sm:$0xf] %v756
          %775 = vst [vmem:[%s268 + $0x18] sm:$0xf] %v757
          %776 = vst [vmem:[%s268 + $0x1c] sm:$0xf] %v758
          %777 = vst [vmem:[%s268 + $0x20] sm:$0xf] %v759
          %778 = vst [vmem:[%s268 + $0x24] sm:$0xf] %v760
          %779 = vst [vmem:[%s268 + $0x28] sm:$0xf] %v761
          %780 = vst [vmem:[%s268 + $0x2c] sm:$0xf] %v762
          %781 = vst [vmem:[%s268 + $0x30] sm:$0xf] %v763
          %782 = vst [vmem:[%s268 + $0x34] sm:$0xf] %v764
          %783 = vst [vmem:[%s268 + $0x38] sm:$0xf] %v765
          %784 = vst [vmem:[%s268 + $0x3c] sm:$0xf] %v766
          %785 = vst [vmem:[%s268 + $0x40] sm:$0xf] %v767
          %786 = vst [vmem:[%s268 + $0x44] sm:$0xf] %v768
        $region48: #{cnn_forward.3} parent=31 // pred_fallthru
          _
        %s787 = smul.u32 18, %s21
        %p788 = scmp.lt.s32.totalorder %s787, 35
        %s789 = scalar_select %p788, %s787, 35
        %p790 = scmp.lt.s32.totalorder %s22, 0
        %s791 = scalar_select %p790, %s22, 0
        %s792 = sadd.s32 %s791, %s789
        %s793 = smul.addr %s792, 4
        %s794 = scalar_lea.vmem %s3, %s793
        // Predicated region
        $region49: #{cnn_forward.3} parent=31 // pred_check
          %p795 = pneg %p137
        $region50: #{cnn_forward.3} parent=31 // pred_check_branch
          %797 = sbr.rel (%p795) target = $region52
        $region51: #{cnn_forward.3} parent=31 // pred_region
          %s798 = smul.u32 18, %s21
        $region52: #{cnn_forward.3} parent=31 // pred_fallthru
          _
      $region32: #{cnn_forward.3} parent=5 // pred_fallthru
        _
      %p799 = scmp.le.s32.totalorder 2, %s11
      // Predicated region
      $region53: #{cnn_forward.3} parent=5 // pred_check
        %p800 = pneg %p799
      $region54: #{cnn_forward.3} parent=5 // pred_check_branch
        %802 = sbr.rel (%p800) target = $region56
      $region55: #{cnn_forward.3} parent=5 // pred_region
        %s803 = ssub.s32 %s11, 2
        // Predicated region
        $region57: #{cnn_forward.3} parent=55 // pred_check
          %p804 = pneg %p143
        $region58: #{cnn_forward.3} parent=55 // pred_check_branch
          %806 = sbr.rel (%p804) target = $region60
        $region59: #{cnn_forward.3} parent=55 // pred_region
          %s807 = smul.u32 18, %s24
          %p808 = scmp.lt.s32.totalorder %s807, 35
          %s809 = scalar_select %p808, %s807, 35
          %p810 = scmp.lt.s32.totalorder %s25, 0
          %s811 = scalar_select %p810, %s25, 0
          %s812 = sadd.s32 %s811, %s809
          %s813 = smul.addr %s812, 4
          %s814 = scalar_lea.vmem %s3, %s813
        $region60: #{cnn_forward.3} parent=55 // pred_fallthru
          _
      $region56: #{cnn_forward.3} parent=5 // pred_fallthru
        _
    $region6: #{cnn_forward.3} parent=1 // loop_footer
      %s15 = sadd.s32 1, %s11
    $region7: #{cnn_forward.3} parent=1 // loop_footer_branch
      %10 = sbr.rel target = $region3
    $region8: #{cnn_forward.3} parent=1 // loop_exit
      _
    %815 = vsyncpa [#allocation4], 1
    %s816 = scalar_lea.sflag [#allocation4], 1
    %817 = vsyncpa %s816, 1
    %818 = vsyncpa [#allocation6], 1

// kernel: cnn_forward.4
$region0: #{cnn_forward.4}
  #allocation0 [shape = 'u32[]', space=smem, size = 0x4, offset = 0x4, fixed_abs, tag = 'smem constant byte address 0x4 - core index']
  #allocation1 [shape = 'u32[72,128]{1,0:T(1,128)}', space=vmem, size = 0x9000, scoped, tag = 'internal scratch']
  #allocation2 [shape = 'f32[256,128]{1,0:T(8,128)}', space=vmem, size = 0x20000, scoped, tag = 'scratch operand']
  %s0 = inlined_call_operand.vmem [shape: bf16[512,128], index: 0, kind: input, shape index: {}]
  %s1 = inlined_call_operand.hbm [shape: bf16[128,128], index: 1, kind: input, shape index: {}]
  %s2 = inlined_call_operand.hbm [shape: f32[1,128], index: 2, kind: input, shape index: {}]
  %s3 = inlined_call_operand.vmem [shape: bf16[512,128], index: 3, kind: output, shape index: {}]
  %s4 = sld [smem:[#allocation0]]
  $region61: #{cnn_forward.4} parent=0
    _
  %s6 = ssub.s32 1, %s4
  %s7 = scalar_select 0, %s6, %s4
  $region1: #{cnn_forward.4} parent=0
    #allocation3 [shape = 'u8[32768]{0}', space=vmem, size = 0x8000, scoped, tag = 'input window, operand 1, single buffered']
    #allocation4 [shape = 's32[2]{0}', space=sflag, size = 0x8, scoped, tag = 'scoped memory for cnn_forward.4']
    #allocation5 [shape = 'u8[512]{0}', space=vmem, size = 0x400, scoped, tag = 'input window, operand 2, single buffered']
    #allocation6 [shape = 's32[1]{0}', space=sflag, size = 0x4, scoped, tag = 'scoped memory for cnn_forward.4']
    %8 = vsyncpa [#allocation4], 0
    %9 = vsyncpa [#allocation6], 0
    loop: start=0, step=1, limit=4
    $region2: #{cnn_forward.4} parent=1 // loop_pre_header
      _
    $region3: #{cnn_forward.4} parent=1 // loop_header
      %s11 = sphi 0, %s15
      %p12 = scmp.ge.s32.totalorder %s11, 4
      %s18 = sphi 0, %s37
      %s19 = sphi 0, %s33
      %s20 = sphi 0, %s29
      %s21 = sphi 0, %s18
      %s22 = sphi 0, %s19
      %s23 = sphi 0, %s20
      %s24 = sphi 0, %s21
      %s25 = sphi 0, %s22
      %s26 = sphi 0, %s23
      %s42 = sphi 0, %s44
      %s45 = sphi 0, %s42
      %s46 = sphi 0, %s45
      %s62 = sphi 0, %s46
      %s70 = sphi 0, %s72
      %s73 = sphi 0, %s70
      %s74 = sphi 0, %s73
      %s90 = sphi 0, %s74
      %s96 = sphi 0, %s98
      %s99 = sphi 0, %s96
      %s100 = sphi 0, %s99
      %s116 = sphi 0, %s100
      %s124 = sphi 0, %s126
      %s127 = sphi 0, %s124
      %s128 = sphi 0, %s127
      %s144 = sphi 0, %s128
    $region4: #{cnn_forward.4} parent=1 // loop_header_branch
      %14 = sbr.rel (%p12) target = $region8
    $region5: #{cnn_forward.4} parent=1 // loop_body
      %s16 = ssub.s32 %s11, 1
      %s17 = ssub.s32 %s11, 2
      %s27 = sadd.s32 1, %s20
      %p28 = scmp.ge.s32.totalorder %s27, 1
      %s29 = scalar_select %p28, 0, %s27
      %s30 = sadd.s32 1, %s19
      %s31 = scalar_select %p28, %s30, %s19
      %p32 = scmp.ge.s32.totalorder %s31, 1
      %s33 = scalar_select %p32, 0, %s31
      %s34 = sadd.s32 1, %s18
      %s35 = scalar_select %p32, %s34, %s18
      %p36 = scmp.ge.s32.totalorder %s35, 2
      %s37 = scalar_select %p36, 0, %s35
      %s38 = ssub.s32 %s18, %s37
      %s39 = ssub.s32 %s20, %s29
      %s40 = sor.u32 %s38, %s39
      %p41 = scmp.eq.s32.totalorder %s40, 0
      %s43 = sadd.s32 %s42, 1
      %s44 = scalar_select %p41, %s42, %s43
      %p47 = pneg %p41
      %p48 = scmp.eq.s32.totalorder %s11, 1
      %p49 = por %p47, %p48
      %p50 = scmp.ne.s32.totalorder %s42, %s45
      %p51 = scmp.eq.s32.totalorder %s11, 0
      %p52 = por %p50, %p51
      %p53 = scmp.ne.s32.totalorder %s42, %s45
      %p54 = scmp.eq.s32.totalorder %s16, 1
      %p55 = por %p53, %p54
      %p56 = scmp.ne.s32.totalorder %s45, %s46
      %p57 = scmp.eq.s32.totalorder %s16, 0
      %p58 = por %p56, %p57
      %p59 = scmp.ne.s32.totalorder %s45, %s46
      %p60 = scmp.eq.s32.totalorder %s17, 1
      %p61 = por %p59, %p60
      %p63 = scmp.ne.s32.totalorder %s46, %s62
      %p64 = scmp.eq.s32.totalorder %s17, 0
      %p65 = por %p63, %p64
      %s66 = ssub.s32 %s20, %s29
      %s67 = ssub.s32 %s19, %s33
      %s68 = sor.u32 %s66, %s67
      %p69 = scmp.eq.s32.totalorder %s68, 0
      %s71 = sadd.s32 %s70, 1
      %s72 = scalar_select %p69, %s70, %s71
      %p75 = pneg %p69
      %p76 = scmp.eq.s32.totalorder %s11, 1
      %p77 = por %p75, %p76
      %p78 = scmp.ne.s32.totalorder %s70, %s73
      %p79 = scmp.eq.s32.totalorder %s11, 0
      %p80 = por %p78, %p79
      %p81 = scmp.ne.s32.totalorder %s70, %s73
      %p82 = scmp.eq.s32.totalorder %s16, 1
      %p83 = por %p81, %p82
      %p84 = scmp.ne.s32.totalorder %s73, %s74
      %p85 = scmp.eq.s32.totalorder %s16, 0
      %p86 = por %p84, %p85
      %p87 = scmp.ne.s32.totalorder %s73, %s74
      %p88 = scmp.eq.s32.totalorder %s17, 1
      %p89 = por %p87, %p88
      %p91 = scmp.ne.s32.totalorder %s74, %s90
      %p92 = scmp.eq.s32.totalorder %s17, 0
      %p93 = por %p91, %p92
      %s94 = ssub.s32 %s19, %s33
      %p95 = scmp.eq.s32.totalorder %s94, 0
      %s97 = sadd.s32 %s96, 1
      %s98 = scalar_select %p95, %s96, %s97
      %p101 = pneg %p95
      %p102 = scmp.eq.s32.totalorder %s11, 1
      %p103 = por %p101, %p102
      %p104 = scmp.ne.s32.totalorder %s96, %s99
      %p105 = scmp.eq.s32.totalorder %s11, 0
      %p106 = por %p104, %p105
      %p107 = scmp.ne.s32.totalorder %s96, %s99
      %p108 = scmp.eq.s32.totalorder %s16, 1
      %p109 = por %p107, %p108
      %p110 = scmp.ne.s32.totalorder %s99, %s100
      %p111 = scmp.eq.s32.totalorder %s16, 0
      %p112 = por %p110, %p111
      %p113 = scmp.ne.s32.totalorder %s99, %s100
      %p114 = scmp.eq.s32.totalorder %s17, 1
      %p115 = por %p113, %p114
      %p117 = scmp.ne.s32.totalorder %s100, %s116
      %p118 = scmp.eq.s32.totalorder %s17, 0
      %p119 = por %p117, %p118
      %s120 = ssub.s32 %s18, %s37
      %s121 = ssub.s32 %s19, %s33
      %s122 = sor.u32 %s120, %s121
      %p123 = scmp.eq.s32.totalorder %s122, 0
      %s125 = sadd.s32 %s124, 1
      %s126 = scalar_select %p123, %s124, %s125
      %p129 = pneg %p123
      %p130 = scmp.eq.s32.totalorder %s11, 1
      %p131 = por %p129, %p130
      %p132 = scmp.ne.s32.totalorder %s124, %s127
      %p133 = scmp.eq.s32.totalorder %s11, 0
      %p134 = por %p132, %p133
      %p135 = scmp.ne.s32.totalorder %s124, %s127
      %p136 = scmp.eq.s32.totalorder %s16, 1
      %p137 = por %p135, %p136
      %p138 = scmp.ne.s32.totalorder %s127, %s128
      %p139 = scmp.eq.s32.totalorder %s16, 0
      %p140 = por %p138, %p139
      %p141 = scmp.ne.s32.totalorder %s127, %s128
      %p142 = scmp.eq.s32.totalorder %s17, 1
      %p143 = por %p141, %p142
      %p145 = scmp.ne.s32.totalorder %s128, %s144
      %p146 = scmp.eq.s32.totalorder %s17, 0
      %p147 = por %p145, %p146
      %p148 = scmp.le.s32.totalorder 1, %s11
      %p149 = scmp.lt.s32.totalorder %s11, 3
      %p150 = pnand %p148, %p149
      %p151 = pneg %p150
      // Predicated region
      $region9: #{cnn_forward.4} parent=5 // pred_check
        _
      $region10: #{cnn_forward.4} parent=5 // pred_check_branch
        %153 = sbr.rel (%p150) target = $region12
      $region11: #{cnn_forward.4} parent=5 // pred_region
        %s154 = ssub.s32 %s11, 1
        // Predicated region
        $region13: #{cnn_forward.4} parent=11 // pred_check
          %p155 = pneg %p86
        $region14: #{cnn_forward.4} parent=11 // pred_check_branch
          %157 = sbr.rel (%p155) target = $region16
        $region15: #{cnn_forward.4} parent=11 // pred_region
          %s158 = smul.u32 16, %s23
          %160 = vsyncadd [#allocation4], 0
          %s161 = sadd.s32 %s22, %s158
          %s162 = smul.addr %s161, 4
          %s163 = scalar_lea.hbm %s1, %s162
          %s164 = sshll.u32 %s163, 4
          %s165 = int_to_ptr.hbm [resolvable:$true] %s164
          %s166 = sshll.u32 [#allocation3], 4
          %s167 = int_to_ptr.vmem [resolvable:$true] %s166
          %172 = dma.hbm_to_vmem [thread:$0]  %s165, 1024, %s167, [#allocation4], 64, 64, 4
        $region16: #{cnn_forward.4} parent=11 // pred_fallthru
          _
        // Predicated region
        $region17: #{cnn_forward.4} parent=11 // pred_check
          %p173 = pneg %p112
        $region18: #{cnn_forward.4} parent=11 // pred_check_branch
          %175 = sbr.rel (%p173) target = $region20
        $region19: #{cnn_forward.4} parent=11 // pred_region
          %177 = vsyncadd [#allocation6], 0
          %s178 = scalar_lea.hbm %s2, %s22
          %s180 = sshll.u32 %s178, 4
          %s181 = int_to_ptr.hbm [resolvable:$true] %s180
          %s182 = sshll.u32 [#allocation5], 4
          %s183 = int_to_ptr.vmem [resolvable:$true] %s182
          %185 = dma.hbm_to_vmem [thread:$0]  %s181, 16, %s183, [#allocation6]
        $region20: #{cnn_forward.4} parent=11 // pred_fallthru
          _
      $region12: #{cnn_forward.4} parent=5 // pred_fallthru
        _
      %p186 = scmp.lt.s32.totalorder %s11, 2
      // Predicated region
      $region21: #{cnn_forward.4} parent=5 // pred_check
        %p187 = pneg %p186
      $region22: #{cnn_forward.4} parent=5 // pred_check_branch
        %189 = sbr.rel (%p187) target = $region24
      $region23: #{cnn_forward.4} parent=5 // pred_region
        // Predicated region
        $region25: #{cnn_forward.4} parent=23 // pred_check
          %p190 = pneg %p52
        $region26: #{cnn_forward.4} parent=23 // pred_check_branch
          %192 = sbr.rel (%p190) target = $region28
        $region27: #{cnn_forward.4} parent=23 // pred_region
          %s193 = smul.u32 32, %s18
          %p194 = scmp.lt.s32.totalorder %s193, 63
          %s195 = scalar_select %p194, %s193, 63
          %p196 = scmp.lt.s32.totalorder %s20, 0
          %s197 = scalar_select %p196, %s20, 0
          %s198 = sadd.s32 %s197, %s195
          %s199 = smul.addr %s198, 4
          %s200 = scalar_lea.vmem %s0, %s199
          %s201 = smul.u32 32, %s18
        $region28: #{cnn_forward.4} parent=23 // pred_fallthru
          _
      $region24: #{cnn_forward.4} parent=5 // pred_fallthru
        _
      %p202 = scmp.le.s32.totalorder 1, %s11
      %p203 = scmp.lt.s32.totalorder %s11, 3
      %p204 = pnand %p202, %p203
      %p205 = pneg %p204
      // Predicated region
      $region29: #{cnn_forward.4} parent=5 // pred_check
        _
      $region30: #{cnn_forward.4} parent=5 // pred_check_branch
        %207 = sbr.rel (%p204) target = $region32
      $region31: #{cnn_forward.4} parent=5 // pred_region
        %s208 = ssub.s32 %s11, 1
        // Predicated region
        $region33: #{cnn_forward.4} parent=31 // pred_check
          %p209 = pneg %p86
        $region34: #{cnn_forward.4} parent=31 // pred_check_branch
          %211 = sbr.rel (%p209) target = $region36
        $region35: #{cnn_forward.4} parent=31 // pred_region
          %213 = dma.done [#allocation4], 1024
        $region36: #{cnn_forward.4} parent=31 // pred_fallthru
          _
        // Predicated region
        $region37: #{cnn_forward.4} parent=31 // pred_check
          %p214 = pneg %p112
        $region38: #{cnn_forward.4} parent=31 // pred_check_branch
          %216 = sbr.rel (%p214) target = $region40
        $region39: #{cnn_forward.4} parent=31 // pred_region
          %218 = dma.done [#allocation6], 16
        $region40: #{cnn_forward.4} parent=31 // pred_fallthru
          _
        %s219 = smul.u32 32, %s21
        %p220 = scmp.lt.s32.totalorder %s219, 63
        %s221 = scalar_select %p220, %s219, 63
        %p222 = scmp.lt.s32.totalorder %s23, 0
        %s223 = scalar_select %p222, %s23, 0
        %s224 = sadd.s32 %s223, %s221
        %s225 = smul.addr %s224, 4
        %s226 = scalar_lea.vmem %s0, %s225
        %p227 = pneg %p58
        %p228 = pneg %p55
        %p229 = pneg %p86
        %p230 = pneg %p83
        %p231 = pneg %p112
        %p232 = pneg %p109
        %p233 = pneg %p140
        %p234 = pneg %p137
        %s235 = smul.u32 32, %s21
        %p236 = scmp.lt.s32.totalorder %s235, 63
        %s237 = scalar_select %p236, %s235, 63
        %p238 = scmp.lt.s32.totalorder %s22, 0
        %s239 = scalar_select %p238, %s22, 0
        %s240 = sadd.s32 %s239, %s237
        %s241 = smul.addr %s240, 4
        %s242 = scalar_lea.vmem %s3, %s241
        %s243 = smul.u32 32, %s21
        %p244 = scmp.lt.s32.totalorder %s243, 63
        %s245 = scalar_select %p244, %s243, 63
        %p246 = scmp.lt.s32.totalorder %s23, 0
        %s247 = scalar_select %p246, %s23, 0
        %s248 = sadd.s32 %s247, %s245
        %s249 = smul.addr %s248, 4
        %s250 = scalar_lea.vmem %s0, %s249
        %s251 = smul.u32 32, %s21
        %s252 = smul.u32 16, %s23
        %s253 = smul.u32 32, %s21
        %p254 = scmp.lt.s32.totalorder %s253, 63
        %s255 = scalar_select %p254, %s253, 63
        %p256 = scmp.lt.s32.totalorder %s22, 0
        %s257 = scalar_select %p256, %s22, 0
        %s258 = sadd.s32 %s257, %s255
        %s259 = smul.addr %s258, 4
        %s260 = scalar_lea.vmem %s3, %s259
        %s261 = smul.u32 32, %s21
        %p262 = scmp.eq.s32.totalorder %s23, 0
        // Predicated region
        $region41: #{cnn_forward.4} parent=31 // pred_check
          %p263 = pneg %p262
        $region42: #{cnn_forward.4} parent=31 // pred_check_branch
          %265 = sbr.rel (%p263) target = $region44
        $region43: #{cnn_forward.4} parent=31 // pred_region
          %266 = vst [vmem:[#allocation2] sm:$0xff] 0.0
          %267 = vst [vmem:[#allocation2 + $0x8] sm:$0xff] 0.0
          %268 = vst [vmem:[#allocation2 + $0x10] sm:$0xff] 0.0
          %269 = vst [vmem:[#allocation2 + $0x18] sm:$0xff] 0.0
          %270 = vst [vmem:[#allocation2 + $0x20] sm:$0xff] 0.0
          %271 = vst [vmem:[#allocation2 + $0x28] sm:$0xff] 0.0
          %272 = vst [vmem:[#allocation2 + $0x30] sm:$0xff] 0.0
          %273 = vst [vmem:[#allocation2 + $0x38] sm:$0xff] 0.0
          %274 = vst [vmem:[#allocation2 + $0x40] sm:$0xff] 0.0
          %275 = vst [vmem:[#allocation2 + $0x48] sm:$0xff] 0.0
          %276 = vst [vmem:[#allocation2 + $0x50] sm:$0xff] 0.0
          %277 = vst [vmem:[#allocation2 + $0x58] sm:$0xff] 0.0
          %278 = vst [vmem:[#allocation2 + $0x60] sm:$0xff] 0.0
          %279 = vst [vmem:[#allocation2 + $0x68] sm:$0xff] 0.0
          %280 = vst [vmem:[#allocation2 + $0x70] sm:$0xff] 0.0
          %281 = vst [vmem:[#allocation2 + $0x78] sm:$0xff] 0.0
          %282 = vst [vmem:[#allocation2 + $0x80] sm:$0xff] 0.0
          %283 = vst [vmem:[#allocation2 + $0x88] sm:$0xff] 0.0
          %284 = vst [vmem:[#allocation2 + $0x90] sm:$0xff] 0.0
          %285 = vst [vmem:[#allocation2 + $0x98] sm:$0xff] 0.0
          %286 = vst [vmem:[#allocation2 + $0xa0] sm:$0xff] 0.0
          %287 = vst [vmem:[#allocation2 + $0xa8] sm:$0xff] 0.0
          %288 = vst [vmem:[#allocation2 + $0xb0] sm:$0xff] 0.0
          %289 = vst [vmem:[#allocation2 + $0xb8] sm:$0xff] 0.0
          %290 = vst [vmem:[#allocation2 + $0xc0] sm:$0xff] 0.0
          %291 = vst [vmem:[#allocation2 + $0xc8] sm:$0xff] 0.0
          %292 = vst [vmem:[#allocation2 + $0xd0] sm:$0xff] 0.0
          %293 = vst [vmem:[#allocation2 + $0xd8] sm:$0xff] 0.0
          %294 = vst [vmem:[#allocation2 + $0xe0] sm:$0xff] 0.0
          %295 = vst [vmem:[#allocation2 + $0xe8] sm:$0xff] 0.0
          %296 = vst [vmem:[#allocation2 + $0xf0] sm:$0xff] 0.0
          %297 = vst [vmem:[#allocation2 + $0xf8] sm:$0xff] 0.0
        $region44: #{cnn_forward.4} parent=31 // pred_fallthru
          _
        %v298 = vld [vmem:[#allocation2] sm:$0xff]
        %v299 = vld [vmem:[#allocation2 + $0x8] sm:$0xff]
        %v300 = vld [vmem:[#allocation2 + $0x10] sm:$0xff]
        %v301 = vld [vmem:[#allocation2 + $0x18] sm:$0xff]
        %v302 = vld [vmem:[#allocation2 + $0x20] sm:$0xff]
        %v303 = vld [vmem:[#allocation2 + $0x28] sm:$0xff]
        %v304 = vld [vmem:[#allocation2 + $0x30] sm:$0xff]
        %v305 = vld [vmem:[#allocation2 + $0x38] sm:$0xff]
        %v306 = vld [vmem:[#allocation2 + $0x40] sm:$0xff]
        %v307 = vld [vmem:[#allocation2 + $0x48] sm:$0xff]
        %v308 = vld [vmem:[#allocation2 + $0x50] sm:$0xff]
        %v309 = vld [vmem:[#allocation2 + $0x58] sm:$0xff]
        %v310 = vld [vmem:[#allocation2 + $0x60] sm:$0xff]
        %v311 = vld [vmem:[#allocation2 + $0x68] sm:$0xff]
        %v312 = vld [vmem:[#allocation2 + $0x70] sm:$0xff]
        %v313 = vld [vmem:[#allocation2 + $0x78] sm:$0xff]
        %v314 = vld [vmem:[#allocation2 + $0x80] sm:$0xff]
        %v315 = vld [vmem:[#allocation2 + $0x88] sm:$0xff]
        %v316 = vld [vmem:[#allocation2 + $0x90] sm:$0xff]
        %v317 = vld [vmem:[#allocation2 + $0x98] sm:$0xff]
        %v318 = vld [vmem:[#allocation2 + $0xa0] sm:$0xff]
        %v319 = vld [vmem:[#allocation2 + $0xa8] sm:$0xff]
        %v320 = vld [vmem:[#allocation2 + $0xb0] sm:$0xff]
        %v321 = vld [vmem:[#allocation2 + $0xb8] sm:$0xff]
        %v322 = vld [vmem:[#allocation2 + $0xc0] sm:$0xff]
        %v323 = vld [vmem:[#allocation2 + $0xc8] sm:$0xff]
        %v324 = vld [vmem:[#allocation2 + $0xd0] sm:$0xff]
        %v325 = vld [vmem:[#allocation2 + $0xd8] sm:$0xff]
        %v326 = vld [vmem:[#allocation2 + $0xe0] sm:$0xff]
        %v327 = vld [vmem:[#allocation2 + $0xe8] sm:$0xff]
        %v328 = vld [vmem:[#allocation2 + $0xf0] sm:$0xff]
        %v329 = vld [vmem:[#allocation2 + $0xf8] sm:$0xff]
        %v330 = vld [vmem:[%s250] sm:$0xf]
        %v331 = vld [vmem:[%s250 + $0x4] sm:$0xf]
        %v332 = vld [vmem:[%s250 + $0x8] sm:$0xf]
        %v333 = vld [vmem:[%s250 + $0xc] sm:$0xf]
        %v334 = vld [vmem:[%s250 + $0x10] sm:$0xf]
        %v335 = vld [vmem:[%s250 + $0x14] sm:$0xf]
        %v336 = vld [vmem:[%s250 + $0x18] sm:$0xf]
        %v337 = vld [vmem:[%s250 + $0x1c] sm:$0xf]
        %v338 = vld [vmem:[%s250 + $0x20] sm:$0xf]
        %v339 = vld [vmem:[%s250 + $0x24] sm:$0xf]
        %v340 = vld [vmem:[%s250 + $0x28] sm:$0xf]
        %v341 = vld [vmem:[%s250 + $0x2c] sm:$0xf]
        %v342 = vld [vmem:[%s250 + $0x30] sm:$0xf]
        %v343 = vld [vmem:[%s250 + $0x34] sm:$0xf]
        %v344 = vld [vmem:[%s250 + $0x38] sm:$0xf]
        %v345 = vld [vmem:[%s250 + $0x3c] sm:$0xf]
        %v346 = vld [vmem:[%s250 + $0x40] sm:$0xf]
        %v347 = vld [vmem:[%s250 + $0x44] sm:$0xf]
        %v348 = vld [vmem:[%s250 + $0x48] sm:$0xf]
        %v349 = vld [vmem:[%s250 + $0x4c] sm:$0xf]
        %v350 = vld [vmem:[%s250 + $0x50] sm:$0xf]
        %v351 = vld [vmem:[%s250 + $0x54] sm:$0xf]
        %v352 = vld [vmem:[%s250 + $0x58] sm:$0xf]
        %v353 = vld [vmem:[%s250 + $0x5c] sm:$0xf]
        %v354 = vld [vmem:[%s250 + $0x60] sm:$0xf]
        %v355 = vld [vmem:[%s250 + $0x64] sm:$0xf]
        %v356 = vld [vmem:[%s250 + $0x68] sm:$0xf]
        %v357 = vld [vmem:[%s250 + $0x6c] sm:$0xf]
        %v358 = vld [vmem:[%s250 + $0x70] sm:$0xf]
        %v359 = vld [vmem:[%s250 + $0x74] sm:$0xf]
        %v360 = vld [vmem:[%s250 + $0x78] sm:$0xf]
        %v361 = vld [vmem:[%s250 + $0x7c] sm:$0xf]
        %v362 = vld [vmem:[#allocation3] sm:$0xf]
        %v363 = vld [vmem:[#allocation3 + $0x4] sm:$0xf]
        %v364 = vld [vmem:[#allocation3 + $0x8] sm:$0xf]
        %v365 = vld [vmem:[#allocation3 + $0xc] sm:$0xf]
        %v366 = vld [vmem:[#allocation3 + $0x10] sm:$0xf]
        %v367 = vld [vmem:[#allocation3 + $0x14] sm:$0xf]
        %v368 = vld [vmem:[#allocation3 + $0x18] sm:$0xf]
        %v369 = vld [vmem:[#allocation3 + $0x1c] sm:$0xf]
        %v370 = vld [vmem:[#allocation3 + $0x20] sm:$0xf]
        %v371 = vld [vmem:[#allocation3 + $0x24] sm:$0xf]
        %v372 = vld [vmem:[#allocation3 + $0x28] sm:$0xf]
        %v373 = vld [vmem:[#allocation3 + $0x2c] sm:$0xf]
        %v374 = vld [vmem:[#allocation3 + $0x30] sm:$0xf]
        %v375 = vld [vmem:[#allocation3 + $0x34] sm:$0xf]
        %v376 = vld [vmem:[#allocation3 + $0x38] sm:$0xf]
        %v377 = vld [vmem:[#allocation3 + $0x3c] sm:$0xf]
        %v410 = vunpack.c.l.b16 %v330
        %v411 = vunpack.c.l.b16 %v331
        %v412 = vunpack.c.l.b16 %v332
        %v413 = vunpack.c.l.b16 %v333
        %v414 = vunpack.c.l.b16 %v334
        %v415 = vunpack.c.l.b16 %v335
        %v416 = vunpack.c.l.b16 %v336
        %v417 = vunpack.c.l.b16 %v337
        %v418 = vunpack.c.l.b16 %v338
        %v419 = vunpack.c.l.b16 %v339
        %v420 = vunpack.c.l.b16 %v340
        %v421 = vunpack.c.l.b16 %v341
        %v422 = vunpack.c.l.b16 %v342
        %v423 = vunpack.c.l.b16 %v343
        %v424 = vunpack.c.l.b16 %v344
        %v425 = vunpack.c.l.b16 %v345
        %v426 = vunpack.c.l.b16 %v346
        %v427 = vunpack.c.l.b16 %v347
        %v428 = vunpack.c.l.b16 %v348
        %v429 = vunpack.c.l.b16 %v349
        %v430 = vunpack.c.l.b16 %v350
        %v431 = vunpack.c.l.b16 %v351
        %v432 = vunpack.c.l.b16 %v352
        %v433 = vunpack.c.l.b16 %v353
        %v434 = vunpack.c.l.b16 %v354
        %v435 = vunpack.c.l.b16 %v355
        %v436 = vunpack.c.l.b16 %v356
        %v437 = vunpack.c.l.b16 %v357
        %v438 = vunpack.c.l.b16 %v358
        %v439 = vunpack.c.l.b16 %v359
        %v440 = vunpack.c.l.b16 %v360
        %v441 = vunpack.c.l.b16 %v361
        %v442 = vpack.c.b16 %v411, %v410
        %v443 = vpack.c.b16 %v413, %v412
        %v444 = vpack.c.b16 %v415, %v414
        %v445 = vpack.c.b16 %v417, %v416
        %v446 = vpack.c.b16 %v419, %v418
        %v447 = vpack.c.b16 %v421, %v420
        %v448 = vpack.c.b16 %v423, %v422
        %v449 = vpack.c.b16 %v425, %v424
        %v450 = vpack.c.b16 %v427, %v426
        %v451 = vpack.c.b16 %v429, %v428
        %v452 = vpack.c.b16 %v431, %v430
        %v453 = vpack.c.b16 %v433, %v432
        %v454 = vpack.c.b16 %v435, %v434
        %v455 = vpack.c.b16 %v437, %v436
        %v456 = vpack.c.b16 %v439, %v438
        %v457 = vpack.c.b16 %v441, %v440
        %v490 = vunpack.c.l.b16 %v362
        %v491 = vunpack.c.l.b16 %v363
        %v492 = vunpack.c.l.b16 %v364
        %v493 = vunpack.c.l.b16 %v365
        %v494 = vunpack.c.l.b16 %v366
        %v495 = vunpack.c.l.b16 %v367
        %v496 = vunpack.c.l.b16 %v368
        %v497 = vunpack.c.l.b16 %v369
        %v498 = vunpack.c.l.b16 %v370
        %v499 = vunpack.c.l.b16 %v371
        %v500 = vunpack.c.l.b16 %v372
        %v501 = vunpack.c.l.b16 %v373
        %v502 = vunpack.c.l.b16 %v374
        %v503 = vunpack.c.l.b16 %v375
        %v504 = vunpack.c.l.b16 %v376
        %v505 = vunpack.c.l.b16 %v377
        %v506 = vpack.c.b16 %v491, %v490
        %v507 = vpack.c.b16 %v493, %v492
        %v508 = vpack.c.b16 %v495, %v494
        %v509 = vpack.c.b16 %v497, %v496
        %v510 = vpack.c.b16 %v499, %v498
        %v511 = vpack.c.b16 %v501, %v500
        %v512 = vpack.c.b16 %v503, %v502
        %v513 = vpack.c.b16 %v505, %v504
        %522 = vmatpush.bf16.msra.mxu0 %v513
        %523 = vmatpush.bf16.msra.mxu0 %v512
        %524 = vmatpush.bf16.msra.mxu0 %v511
        %525 = vmatpush.bf16.msra.mxu0 %v510
        %526 = vmatpush.bf16.msra.mxu0 %v509
        %527 = vmatpush.bf16.msra.mxu0 %v508
        %528 = vmatpush.bf16.msra.mxu0 %v507
        %529 = vmatpush.bf16.msra.mxu0 %v506
        %530 = vmatmul.bf16.gmra.mxu0 %v442
        %v531 = vpop.f32.mrf.mxu0
        %v532 = vadd.f32 0.0, %v531
        %v533 = vpop.f32.mrf.mxu0
        %v534 = vadd.f32 0.0, %v533
        %535 = vmatmul.bf16.gmra.mxu0 %v443
        %v536 = vpop.f32.mrf.mxu0
        %v537 = vadd.f32 0.0, %v536
        %v538 = vpop.f32.mrf.mxu0
        %v539 = vadd.f32 0.0, %v538
        %540 = vmatmul.bf16.gmra.mxu0 %v444
        %v541 = vpop.f32.mrf.mxu0
        %v542 = vadd.f32 0.0, %v541
        %v543 = vpop.f32.mrf.mxu0
        %v544 = vadd.f32 0.0, %v543
        %545 = vmatmul.bf16.gmra.mxu0 %v445
        %v546 = vpop.f32.mrf.mxu0
        %v547 = vadd.f32 0.0, %v546
        %v548 = vpop.f32.mrf.mxu0
        %v549 = vadd.f32 0.0, %v548
        %550 = vmatmul.bf16.gmra.mxu0 %v446
        %v551 = vpop.f32.mrf.mxu0
        %v552 = vadd.f32 0.0, %v551
        %v553 = vpop.f32.mrf.mxu0
        %v554 = vadd.f32 0.0, %v553
        %555 = vmatmul.bf16.gmra.mxu0 %v447
        %v556 = vpop.f32.mrf.mxu0
        %v557 = vadd.f32 0.0, %v556
        %v558 = vpop.f32.mrf.mxu0
        %v559 = vadd.f32 0.0, %v558
        %560 = vmatmul.bf16.gmra.mxu0 %v448
        %v561 = vpop.f32.mrf.mxu0
        %v562 = vadd.f32 0.0, %v561
        %v563 = vpop.f32.mrf.mxu0
        %v564 = vadd.f32 0.0, %v563
        %565 = vmatmul.bf16.gmra.mxu0 %v449
        %v566 = vpop.f32.mrf.mxu0
        %v567 = vadd.f32 0.0, %v566
        %v568 = vpop.f32.mrf.mxu0
        %v569 = vadd.f32 0.0, %v568
        %570 = vmatmul.bf16.gmra.mxu0 %v450
        %v571 = vpop.f32.mrf.mxu0
        %v572 = vadd.f32 0.0, %v571
        %v573 = vpop.f32.mrf.mxu0
        %v574 = vadd.f32 0.0, %v573
        %575 = vmatmul.bf16.gmra.mxu0 %v451
        %v576 = vpop.f32.mrf.mxu0
        %v577 = vadd.f32 0.0, %v576
        %v578 = vpop.f32.mrf.mxu0
        %v579 = vadd.f32 0.0, %v578
        %580 = vmatmul.bf16.gmra.mxu0 %v452
        %v581 = vpop.f32.mrf.mxu0
        %v582 = vadd.f32 0.0, %v581
        %v583 = vpop.f32.mrf.mxu0
        %v584 = vadd.f32 0.0, %v583
        %585 = vmatmul.bf16.gmra.mxu0 %v453
        %v586 = vpop.f32.mrf.mxu0
        %v587 = vadd.f32 0.0, %v586
        %v588 = vpop.f32.mrf.mxu0
        %v589 = vadd.f32 0.0, %v588
        %590 = vmatmul.bf16.gmra.mxu0 %v454
        %v591 = vpop.f32.mrf.mxu0
        %v592 = vadd.f32 0.0, %v591
        %v593 = vpop.f32.mrf.mxu0
        %v594 = vadd.f32 0.0, %v593
        %595 = vmatmul.bf16.gmra.mxu0 %v455
        %v596 = vpop.f32.mrf.mxu0
        %v597 = vadd.f32 0.0, %v596
        %v598 = vpop.f32.mrf.mxu0
        %v599 = vadd.f32 0.0, %v598
        %600 = vmatmul.bf16.gmra.mxu0 %v456
        %v601 = vpop.f32.mrf.mxu0
        %v602 = vadd.f32 0.0, %v601
        %v603 = vpop.f32.mrf.mxu0
        %v604 = vadd.f32 0.0, %v603
        %605 = vmatmul.bf16.gmra.mxu0 %v457
        %v606 = vpop.f32.mrf.mxu0
        %v607 = vadd.f32 0.0, %v606
        %v608 = vpop.f32.mrf.mxu0
        %v609 = vadd.f32 0.0, %v608
        %610 = vdwg.mxu0
        %v611 = vadd.f32 %v298, %v532
        %v612 = vadd.f32 %v299, %v534
        %v613 = vadd.f32 %v300, %v537
        %v614 = vadd.f32 %v301, %v539
        %v615 = vadd.f32 %v302, %v542
        %v616 = vadd.f32 %v303, %v544
        %v617 = vadd.f32 %v304, %v547
        %v618 = vadd.f32 %v305, %v549
        %v619 = vadd.f32 %v306, %v552
        %v620 = vadd.f32 %v307, %v554
        %v621 = vadd.f32 %v308, %v557
        %v622 = vadd.f32 %v309, %v559
        %v623 = vadd.f32 %v310, %v562
        %v624 = vadd.f32 %v311, %v564
        %v625 = vadd.f32 %v312, %v567
        %v626 = vadd.f32 %v313, %v569
        %v627 = vadd.f32 %v314, %v572
        %v628 = vadd.f32 %v315, %v574
        %v629 = vadd.f32 %v316, %v577
        %v630 = vadd.f32 %v317, %v579
        %v631 = vadd.f32 %v318, %v582
        %v632 = vadd.f32 %v319, %v584
        %v633 = vadd.f32 %v320, %v587
        %v634 = vadd.f32 %v321, %v589
        %v635 = vadd.f32 %v322, %v592
        %v636 = vadd.f32 %v323, %v594
        %v637 = vadd.f32 %v324, %v597
        %v638 = vadd.f32 %v325, %v599
        %v639 = vadd.f32 %v326, %v602
        %v640 = vadd.f32 %v327, %v604
        %v641 = vadd.f32 %v328, %v607
        %v642 = vadd.f32 %v329, %v609
        %643 = vst [vmem:[#allocation2] sm:$0xff] %v611
        %644 = vst [vmem:[#allocation2 + $0x8] sm:$0xff] %v612
        %645 = vst [vmem:[#allocation2 + $0x10] sm:$0xff] %v613
        %646 = vst [vmem:[#allocation2 + $0x18] sm:$0xff] %v614
        %647 = vst [vmem:[#allocation2 + $0x20] sm:$0xff] %v615
        %648 = vst [vmem:[#allocation2 + $0x28] sm:$0xff] %v616
        %649 = vst [vmem:[#allocation2 + $0x30] sm:$0xff] %v617
        %650 = vst [vmem:[#allocation2 + $0x38] sm:$0xff] %v618
        %651 = vst [vmem:[#allocation2 + $0x40] sm:$0xff] %v619
        %652 = vst [vmem:[#allocation2 + $0x48] sm:$0xff] %v620
        %653 = vst [vmem:[#allocation2 + $0x50] sm:$0xff] %v621
        %654 = vst [vmem:[#allocation2 + $0x58] sm:$0xff] %v622
        %655 = vst [vmem:[#allocation2 + $0x60] sm:$0xff] %v623
        %656 = vst [vmem:[#allocation2 + $0x68] sm:$0xff] %v624
        %657 = vst [vmem:[#allocation2 + $0x70] sm:$0xff] %v625
        %658 = vst [vmem:[#allocation2 + $0x78] sm:$0xff] %v626
        %659 = vst [vmem:[#allocation2 + $0x80] sm:$0xff] %v627
        %660 = vst [vmem:[#allocation2 + $0x88] sm:$0xff] %v628
        %661 = vst [vmem:[#allocation2 + $0x90] sm:$0xff] %v629
        %662 = vst [vmem:[#allocation2 + $0x98] sm:$0xff] %v630
        %663 = vst [vmem:[#allocation2 + $0xa0] sm:$0xff] %v631
        %664 = vst [vmem:[#allocation2 + $0xa8] sm:$0xff] %v632
        %665 = vst [vmem:[#allocation2 + $0xb0] sm:$0xff] %v633
        %666 = vst [vmem:[#allocation2 + $0xb8] sm:$0xff] %v634
        %667 = vst [vmem:[#allocation2 + $0xc0] sm:$0xff] %v635
        %668 = vst [vmem:[#allocation2 + $0xc8] sm:$0xff] %v636
        %669 = vst [vmem:[#allocation2 + $0xd0] sm:$0xff] %v637
        %670 = vst [vmem:[#allocation2 + $0xd8] sm:$0xff] %v638
        %671 = vst [vmem:[#allocation2 + $0xe0] sm:$0xff] %v639
        %672 = vst [vmem:[#allocation2 + $0xe8] sm:$0xff] %v640
        %673 = vst [vmem:[#allocation2 + $0xf0] sm:$0xff] %v641
        %674 = vst [vmem:[#allocation2 + $0xf8] sm:$0xff] %v642
        // Predicated region
        $region45: #{cnn_forward.4} parent=31 // pred_check
          %p675 = pneg %p262
        $region46: #{cnn_forward.4} parent=31 // pred_check_branch
          %677 = sbr.rel (%p675) target = $region48
        $region47: #{cnn_forward.4} parent=31 // pred_region
          %v678 = vld [vmem:[#allocation2] sm:$0xff]
          %v679 = vld [vmem:[#allocation2 + $0x8] sm:$0xff]
          %v680 = vld [vmem:[#allocation2 + $0x10] sm:$0xff]
          %v681 = vld [vmem:[#allocation2 + $0x18] sm:$0xff]
          %v682 = vld [vmem:[#allocation2 + $0x20] sm:$0xff]
          %v683 = vld [vmem:[#allocation2 + $0x28] sm:$0xff]
          %v684 = vld [vmem:[#allocation2 + $0x30] sm:$0xff]
          %v685 = vld [vmem:[#allocation2 + $0x38] sm:$0xff]
          %v686 = vld [vmem:[#allocation2 + $0x40] sm:$0xff]
          %v687 = vld [vmem:[#allocation2 + $0x48] sm:$0xff]
          %v688 = vld [vmem:[#allocation2 + $0x50] sm:$0xff]
          %v689 = vld [vmem:[#allocation2 + $0x58] sm:$0xff]
          %v690 = vld [vmem:[#allocation2 + $0x60] sm:$0xff]
          %v691 = vld [vmem:[#allocation2 + $0x68] sm:$0xff]
          %v692 = vld [vmem:[#allocation2 + $0x70] sm:$0xff]
          %v693 = vld [vmem:[#allocation2 + $0x78] sm:$0xff]
          %v694 = vld [vmem:[#allocation2 + $0x80] sm:$0xff]
          %v695 = vld [vmem:[#allocation2 + $0x88] sm:$0xff]
          %v696 = vld [vmem:[#allocation2 + $0x90] sm:$0xff]
          %v697 = vld [vmem:[#allocation2 + $0x98] sm:$0xff]
          %v698 = vld [vmem:[#allocation2 + $0xa0] sm:$0xff]
          %v699 = vld [vmem:[#allocation2 + $0xa8] sm:$0xff]
          %v700 = vld [vmem:[#allocation2 + $0xb0] sm:$0xff]
          %v701 = vld [vmem:[#allocation2 + $0xb8] sm:$0xff]
          %v702 = vld [vmem:[#allocation2 + $0xc0] sm:$0xff]
          %v703 = vld [vmem:[#allocation2 + $0xc8] sm:$0xff]
          %v704 = vld [vmem:[#allocation2 + $0xd0] sm:$0xff]
          %v705 = vld [vmem:[#allocation2 + $0xd8] sm:$0xff]
          %v706 = vld [vmem:[#allocation2 + $0xe0] sm:$0xff]
          %v707 = vld [vmem:[#allocation2 + $0xe8] sm:$0xff]
          %v708 = vld [vmem:[#allocation2 + $0xf0] sm:$0xff]
          %v709 = vld [vmem:[#allocation2 + $0xf8] sm:$0xff]
          %v710 = vld [vmem:[#allocation5] sm:$0x1]
          %v712 = vperm.slane %v710, 0
          %v714 = vadd.f32 %v678, %v712
          %v715 = vadd.f32 %v679, %v712
          %v716 = vadd.f32 %v680, %v712
          %v717 = vadd.f32 %v681, %v712
          %v718 = vadd.f32 %v682, %v712
          %v719 = vadd.f32 %v683, %v712
          %v720 = vadd.f32 %v684, %v712
          %v721 = vadd.f32 %v685, %v712
          %v722 = vadd.f32 %v686, %v712
          %v723 = vadd.f32 %v687, %v712
          %v724 = vadd.f32 %v688, %v712
          %v725 = vadd.f32 %v689, %v712
          %v726 = vadd.f32 %v690, %v712
          %v727 = vadd.f32 %v691, %v712
          %v728 = vadd.f32 %v692, %v712
          %v729 = vadd.f32 %v693, %v712
          %v730 = vadd.f32 %v694, %v712
          %v731 = vadd.f32 %v695, %v712
          %v732 = vadd.f32 %v696, %v712
          %v733 = vadd.f32 %v697, %v712
          %v734 = vadd.f32 %v698, %v712
          %v735 = vadd.f32 %v699, %v712
          %v736 = vadd.f32 %v700, %v712
          %v737 = vadd.f32 %v701, %v712
          %v738 = vadd.f32 %v702, %v712
          %v739 = vadd.f32 %v703, %v712
          %v740 = vadd.f32 %v704, %v712
          %v741 = vadd.f32 %v705, %v712
          %v742 = vadd.f32 %v706, %v712
          %v743 = vadd.f32 %v707, %v712
          %v744 = vadd.f32 %v708, %v712
          %v745 = vadd.f32 %v709, %v712
          %v746 = vmax.f32 %v714, 0.0
          %v747 = vmax.f32 %v715, 0.0
          %v748 = vmax.f32 %v716, 0.0
          %v749 = vmax.f32 %v717, 0.0
          %v750 = vmax.f32 %v718, 0.0
          %v751 = vmax.f32 %v719, 0.0
          %v752 = vmax.f32 %v720, 0.0
          %v753 = vmax.f32 %v721, 0.0
          %v754 = vmax.f32 %v722, 0.0
          %v755 = vmax.f32 %v723, 0.0
          %v756 = vmax.f32 %v724, 0.0
          %v757 = vmax.f32 %v725, 0.0
          %v758 = vmax.f32 %v726, 0.0
          %v759 = vmax.f32 %v727, 0.0
          %v760 = vmax.f32 %v728, 0.0
          %v761 = vmax.f32 %v729, 0.0
          %v762 = vmax.f32 %v730, 0.0
          %v763 = vmax.f32 %v731, 0.0
          %v764 = vmax.f32 %v732, 0.0
          %v765 = vmax.f32 %v733, 0.0
          %v766 = vmax.f32 %v734, 0.0
          %v767 = vmax.f32 %v735, 0.0
          %v768 = vmax.f32 %v736, 0.0
          %v769 = vmax.f32 %v737, 0.0
          %v770 = vmax.f32 %v738, 0.0
          %v771 = vmax.f32 %v739, 0.0
          %v772 = vmax.f32 %v740, 0.0
          %v773 = vmax.f32 %v741, 0.0
          %v774 = vmax.f32 %v742, 0.0
          %v775 = vmax.f32 %v743, 0.0
          %v776 = vmax.f32 %v744, 0.0
          %v777 = vmax.f32 %v745, 0.0
          %v778 = vpack.c.bf16 %v746, %v746
          %v779 = vpack.c.bf16 %v747, %v747
          %v780 = vpack.c.bf16 %v748, %v748
          %v781 = vpack.c.bf16 %v749, %v749
          %v782 = vpack.c.bf16 %v750, %v750
          %v783 = vpack.c.bf16 %v751, %v751
          %v784 = vpack.c.bf16 %v752, %v752
          %v785 = vpack.c.bf16 %v753, %v753
          %v786 = vpack.c.bf16 %v754, %v754
          %v787 = vpack.c.bf16 %v755, %v755
          %v788 = vpack.c.bf16 %v756, %v756
          %v789 = vpack.c.bf16 %v757, %v757
          %v790 = vpack.c.bf16 %v758, %v758
          %v791 = vpack.c.bf16 %v759, %v759
          %v792 = vpack.c.bf16 %v760, %v760
          %v793 = vpack.c.bf16 %v761, %v761
          %v794 = vpack.c.bf16 %v762, %v762
          %v795 = vpack.c.bf16 %v763, %v763
          %v796 = vpack.c.bf16 %v764, %v764
          %v797 = vpack.c.bf16 %v765, %v765
          %v798 = vpack.c.bf16 %v766, %v766
          %v799 = vpack.c.bf16 %v767, %v767
          %v800 = vpack.c.bf16 %v768, %v768
          %v801 = vpack.c.bf16 %v769, %v769
          %v802 = vpack.c.bf16 %v770, %v770
          %v803 = vpack.c.bf16 %v771, %v771
          %v804 = vpack.c.bf16 %v772, %v772
          %v805 = vpack.c.bf16 %v773, %v773
          %v806 = vpack.c.bf16 %v774, %v774
          %v807 = vpack.c.bf16 %v775, %v775
          %v808 = vpack.c.bf16 %v776, %v776
          %v809 = vpack.c.bf16 %v777, %v777
          %810 = vst [vmem:[%s260] sm:$0xf] %v778
          %811 = vst [vmem:[%s260 + $0x4] sm:$0xf] %v779
          %812 = vst [vmem:[%s260 + $0x8] sm:$0xf] %v780
          %813 = vst [vmem:[%s260 + $0xc] sm:$0xf] %v781
          %814 = vst [vmem:[%s260 + $0x10] sm:$0xf] %v782
          %815 = vst [vmem:[%s260 + $0x14] sm:$0xf] %v783
          %816 = vst [vmem:[%s260 + $0x18] sm:$0xf] %v784
          %817 = vst [vmem:[%s260 + $0x1c] sm:$0xf] %v785
          %818 = vst [vmem:[%s260 + $0x20] sm:$0xf] %v786
          %819 = vst [vmem:[%s260 + $0x24] sm:$0xf] %v787
          %820 = vst [vmem:[%s260 + $0x28] sm:$0xf] %v788
          %821 = vst [vmem:[%s260 + $0x2c] sm:$0xf] %v789
          %822 = vst [vmem:[%s260 + $0x30] sm:$0xf] %v790
          %823 = vst [vmem:[%s260 + $0x34] sm:$0xf] %v791
          %824 = vst [vmem:[%s260 + $0x38] sm:$0xf] %v792
          %825 = vst [vmem:[%s260 + $0x3c] sm:$0xf] %v793
          %826 = vst [vmem:[%s260 + $0x40] sm:$0xf] %v794
          %827 = vst [vmem:[%s260 + $0x44] sm:$0xf] %v795
          %828 = vst [vmem:[%s260 + $0x48] sm:$0xf] %v796
          %829 = vst [vmem:[%s260 + $0x4c] sm:$0xf] %v797
          %830 = vst [vmem:[%s260 + $0x50] sm:$0xf] %v798
          %831 = vst [vmem:[%s260 + $0x54] sm:$0xf] %v799
          %832 = vst [vmem:[%s260 + $0x58] sm:$0xf] %v800
          %833 = vst [vmem:[%s260 + $0x5c] sm:$0xf] %v801
          %834 = vst [vmem:[%s260 + $0x60] sm:$0xf] %v802
          %835 = vst [vmem:[%s260 + $0x64] sm:$0xf] %v803
          %836 = vst [vmem:[%s260 + $0x68] sm:$0xf] %v804
          %837 = vst [vmem:[%s260 + $0x6c] sm:$0xf] %v805
          %838 = vst [vmem:[%s260 + $0x70] sm:$0xf] %v806
          %839 = vst [vmem:[%s260 + $0x74] sm:$0xf] %v807
          %840 = vst [vmem:[%s260 + $0x78] sm:$0xf] %v808
          %841 = vst [vmem:[%s260 + $0x7c] sm:$0xf] %v809
        $region48: #{cnn_forward.4} parent=31 // pred_fallthru
          _
        %s842 = smul.u32 32, %s21
        %p843 = scmp.lt.s32.totalorder %s842, 63
        %s844 = scalar_select %p843, %s842, 63
        %p845 = scmp.lt.s32.totalorder %s22, 0
        %s846 = scalar_select %p845, %s22, 0
        %s847 = sadd.s32 %s846, %s844
        %s848 = smul.addr %s847, 4
        %s849 = scalar_lea.vmem %s3, %s848
        // Predicated region
        $region49: #{cnn_forward.4} parent=31 // pred_check
          %p850 = pneg %p137
        $region50: #{cnn_forward.4} parent=31 // pred_check_branch
          %852 = sbr.rel (%p850) target = $region52
        $region51: #{cnn_forward.4} parent=31 // pred_region
          %s853 = smul.u32 32, %s21
        $region52: #{cnn_forward.4} parent=31 // pred_fallthru
          _
      $region32: #{cnn_forward.4} parent=5 // pred_fallthru
        _
      %p854 = scmp.le.s32.totalorder 2, %s11
      // Predicated region
      $region53: #{cnn_forward.4} parent=5 // pred_check
        %p855 = pneg %p854
      $region54: #{cnn_forward.4} parent=5 // pred_check_branch
        %857 = sbr.rel (%p855) target = $region56
      $region55: #{cnn_forward.4} parent=5 // pred_region
        %s858 = ssub.s32 %s11, 2
        // Predicated region
        $region57: #{cnn_forward.4} parent=55 // pred_check
          %p859 = pneg %p143
        $region58: #{cnn_forward.4} parent=55 // pred_check_branch
          %861 = sbr.rel (%p859) target = $region60
        $region59: #{cnn_forward.4} parent=55 // pred_region
          %s862 = smul.u32 32, %s24
          %p863 = scmp.lt.s32.totalorder %s862, 63
          %s864 = scalar_select %p863, %s862, 63
          %p865 = scmp.lt.s32.totalorder %s25, 0
          %s866 = scalar_select %p865, %s25, 0
          %s867 = sadd.s32 %s866, %s864
          %s868 = smul.addr %s867, 4
          %s869 = scalar_lea.vmem %s3, %s868
        $region60: #{cnn_forward.4} parent=55 // pred_fallthru
          _
      $region56: #{cnn_forward.4} parent=5 // pred_fallthru
        _
    $region6: #{cnn_forward.4} parent=1 // loop_footer
      %s15 = sadd.s32 1, %s11
    $region7: #{cnn_forward.4} parent=1 // loop_footer_branch
      %10 = sbr.rel target = $region3
    $region8: #{cnn_forward.4} parent=1 // loop_exit
      _
    %870 = vsyncpa [#allocation4], 1
    %s871 = scalar_lea.sflag [#allocation4], 1
    %872 = vsyncpa %s871, 1
    %873 = vsyncpa [#allocation6], 1

// kernel: cnn_forward.5
$region0: #{cnn_forward.5}
  #allocation0 [shape = 'u32[]', space=smem, size = 0x4, offset = 0x4, fixed_abs, tag = 'smem constant byte address 0x4 - core index']
  #allocation1 [shape = 'u32[72,128]{1,0:T(1,128)}', space=vmem, size = 0x9000, scoped, tag = 'internal scratch']
  #allocation2 [shape = 'f32[256,128]{1,0:T(8,128)}', space=vmem, size = 0x20000, scoped, tag = 'scratch operand']
  %s0 = inlined_call_operand.vmem [shape: bf16[512,3200], index: 0, kind: input, shape index: {}]
  %s1 = inlined_call_operand.vmem [shape: bf16[3200,128], index: 1, kind: input, shape index: {}]
  %s2 = inlined_call_operand.vmem [shape: f32[1,128], index: 2, kind: input, shape index: {}]
  %s3 = inlined_call_operand.vmem [shape: f32[512,128], index: 3, kind: output, shape index: {}]
  %s4 = sld [smem:[#allocation0]]
  $region79: #{cnn_forward.5} parent=0
    _
  %s6 = ssub.s32 1, %s4
  %s7 = scalar_select 0, %s6, %s4
  $region1: #{cnn_forward.5} parent=0
    #allocation3 [shape = 'u8[655360]{0}', space=vmem, size = 0xa0000, scoped, tag = 'input window, operand 0']
    loop: start=0, step=1, limit=12
    $region2: #{cnn_forward.5} parent=1 // loop_pre_header
      _
    $region3: #{cnn_forward.5} parent=1 // loop_header
      %s9 = sphi 0, %s13
      %p10 = scmp.ge.s32.totalorder %s9, 12
      %s16 = sphi 0, %s35
      %s17 = sphi 0, %s31
      %s18 = sphi 0, %s27
      %s19 = sphi 0, %s16
      %s20 = sphi 0, %s17
      %s21 = sphi 0, %s18
      %s22 = sphi 0, %s19
      %s23 = sphi 0, %s20
      %s24 = sphi 0, %s21
      %s40 = sphi 0, %s42
      %s43 = sphi 0, %s40
      %s44 = sphi 0, %s43
      %s60 = sphi 0, %s44
      %s68 = sphi 0, %s70
      %s71 = sphi 0, %s68
      %s72 = sphi 0, %s71
      %s88 = sphi 0, %s72
      %s94 = sphi 0, %s96
      %s97 = sphi 0, %s94
      %s98 = sphi 0, %s97
      %s114 = sphi 0, %s98
      %s122 = sphi 0, %s124
      %s125 = sphi 0, %s122
      %s126 = sphi 0, %s125
      %s142 = sphi 0, %s126
    $region4: #{cnn_forward.5} parent=1 // loop_header_branch
      %12 = sbr.rel (%p10) target = $region8
    $region5: #{cnn_forward.5} parent=1 // loop_body
      %s14 = ssub.s32 %s9, 1
      %s15 = ssub.s32 %s9, 2
      %s25 = sadd.s32 1, %s18
      %p26 = scmp.ge.s32.totalorder %s25, 5
      %s27 = scalar_select %p26, 0, %s25
      %s28 = sadd.s32 1, %s17
      %s29 = scalar_select %p26, %s28, %s17
      %p30 = scmp.ge.s32.totalorder %s29, 1
      %s31 = scalar_select %p30, 0, %s29
      %s32 = sadd.s32 1, %s16
      %s33 = scalar_select %p30, %s32, %s16
      %p34 = scmp.ge.s32.totalorder %s33, 2
      %s35 = scalar_select %p34, 0, %s33
      %s36 = ssub.s32 %s16, %s35
      %s37 = ssub.s32 %s18, %s27
      %s38 = sor.u32 %s36, %s37
      %p39 = scmp.eq.s32.totalorder %s38, 0
      %s41 = sadd.s32 %s40, 1
      %s42 = scalar_select %p39, %s40, %s41
      %p45 = pneg %p39
      %p46 = scmp.eq.s32.totalorder %s9, 9
      %p47 = por %p45, %p46
      %p48 = scmp.ne.s32.totalorder %s40, %s43
      %p49 = scmp.eq.s32.totalorder %s9, 0
      %p50 = por %p48, %p49
      %p51 = scmp.ne.s32.totalorder %s40, %s43
      %p52 = scmp.eq.s32.totalorder %s14, 9
      %p53 = por %p51, %p52
      %p54 = scmp.ne.s32.totalorder %s43, %s44
      %p55 = scmp.eq.s32.totalorder %s14, 0
      %p56 = por %p54, %p55
      %p57 = scmp.ne.s32.totalorder %s43, %s44
      %p58 = scmp.eq.s32.totalorder %s15, 9
      %p59 = por %p57, %p58
      %p61 = scmp.ne.s32.totalorder %s44, %s60
      %p62 = scmp.eq.s32.totalorder %s15, 0
      %p63 = por %p61, %p62
      %s64 = ssub.s32 %s18, %s27
      %s65 = ssub.s32 %s17, %s31
      %s66 = sor.u32 %s64, %s65
      %p67 = scmp.eq.s32.totalorder %s66, 0
      %s69 = sadd.s32 %s68, 1
      %s70 = scalar_select %p67, %s68, %s69
      %p73 = pneg %p67
      %p74 = scmp.eq.s32.totalorder %s9, 9
      %p75 = por %p73, %p74
      %p76 = scmp.ne.s32.totalorder %s68, %s71
      %p77 = scmp.eq.s32.totalorder %s9, 0
      %p78 = por %p76, %p77
      %p79 = scmp.ne.s32.totalorder %s68, %s71
      %p80 = scmp.eq.s32.totalorder %s14, 9
      %p81 = por %p79, %p80
      %p82 = scmp.ne.s32.totalorder %s71, %s72
      %p83 = scmp.eq.s32.totalorder %s14, 0
      %p84 = por %p82, %p83
      %p85 = scmp.ne.s32.totalorder %s71, %s72
      %p86 = scmp.eq.s32.totalorder %s15, 9
      %p87 = por %p85, %p86
      %p89 = scmp.ne.s32.totalorder %s72, %s88
      %p90 = scmp.eq.s32.totalorder %s15, 0
      %p91 = por %p89, %p90
      %s92 = ssub.s32 %s17, %s31
      %p93 = scmp.eq.s32.totalorder %s92, 0
      %s95 = sadd.s32 %s94, 1
      %s96 = scalar_select %p93, %s94, %s95
      %p99 = pneg %p93
      %p100 = scmp.eq.s32.totalorder %s9, 9
      %p101 = por %p99, %p100
      %p102 = scmp.ne.s32.totalorder %s94, %s97
      %p103 = scmp.eq.s32.totalorder %s9, 0
      %p104 = por %p102, %p103
      %p105 = scmp.ne.s32.totalorder %s94, %s97
      %p106 = scmp.eq.s32.totalorder %s14, 9
      %p107 = por %p105, %p106
      %p108 = scmp.ne.s32.totalorder %s97, %s98
      %p109 = scmp.eq.s32.totalorder %s14, 0
      %p110 = por %p108, %p109
      %p111 = scmp.ne.s32.totalorder %s97, %s98
      %p112 = scmp.eq.s32.totalorder %s15, 9
      %p113 = por %p111, %p112
      %p115 = scmp.ne.s32.totalorder %s98, %s114
      %p116 = scmp.eq.s32.totalorder %s15, 0
      %p117 = por %p115, %p116
      %s118 = ssub.s32 %s16, %s35
      %s119 = ssub.s32 %s17, %s31
      %s120 = sor.u32 %s118, %s119
      %p121 = scmp.eq.s32.totalorder %s120, 0
      %s123 = sadd.s32 %s122, 1
      %s124 = scalar_select %p121, %s122, %s123
      %p127 = pneg %p121
      %p128 = scmp.eq.s32.totalorder %s9, 9
      %p129 = por %p127, %p128
      %p130 = scmp.ne.s32.totalorder %s122, %s125
      %p131 = scmp.eq.s32.totalorder %s9, 0
      %p132 = por %p130, %p131
      %p133 = scmp.ne.s32.totalorder %s122, %s125
      %p134 = scmp.eq.s32.totalorder %s14, 9
      %p135 = por %p133, %p134
      %p136 = scmp.ne.s32.totalorder %s125, %s126
      %p137 = scmp.eq.s32.totalorder %s14, 0
      %p138 = por %p136, %p137
      %p139 = scmp.ne.s32.totalorder %s125, %s126
      %p140 = scmp.eq.s32.totalorder %s15, 9
      %p141 = por %p139, %p140
      %p143 = scmp.ne.s32.totalorder %s126, %s142
      %p144 = scmp.eq.s32.totalorder %s15, 0
      %p145 = por %p143, %p144
      %p146 = scmp.le.s32.totalorder 1, %s9
      %p147 = scmp.lt.s32.totalorder %s9, 11
      %p148 = pnand %p146, %p147
      %p149 = pneg %p148
      // Predicated region
      $region9: #{cnn_forward.5} parent=5 // pred_check
        _
      $region10: #{cnn_forward.5} parent=5 // pred_check_branch
        %151 = sbr.rel (%p148) target = $region12
      $region11: #{cnn_forward.5} parent=5 // pred_region
        %s152 = ssub.s32 %s9, 1
        // Predicated region
        $region13: #{cnn_forward.5} parent=11 // pred_check
          %p153 = pneg %p110
        $region14: #{cnn_forward.5} parent=11 // pred_check_branch
          %155 = sbr.rel (%p153) target = $region16
        $region15: #{cnn_forward.5} parent=11 // pred_region
          %p156 = scmp.lt.s32.totalorder %s20, 0
          %s157 = scalar_select %p156, %s20, 0
          %s158 = scalar_lea.vmem %s2, %s157
        $region16: #{cnn_forward.5} parent=11 // pred_fallthru
          _
      $region12: #{cnn_forward.5} parent=5 // pred_fallthru
        _
      %p159 = scmp.lt.s32.totalorder %s9, 10
      // Predicated region
      $region17: #{cnn_forward.5} parent=5 // pred_check
        %p160 = pneg %p159
      $region18: #{cnn_forward.5} parent=5 // pred_check_branch
        %162 = sbr.rel (%p160) target = $region20
      $region19: #{cnn_forward.5} parent=5 // pred_region
        // Predicated region
        $region21: #{cnn_forward.5} parent=19 // pred_check
          %p163 = pneg %p50
        $region22: #{cnn_forward.5} parent=19 // pred_check_branch
          %165 = sbr.rel (%p163) target = $region24
        $region23: #{cnn_forward.5} parent=19 // pred_region
          %s166 = sand.u32 %s40, 1
          %s167 = sand.u32 %s40, 1
          %s168 = smul.addr %s167, 640
          %s169 = scalar_lea.vmem [#allocation3], %s168
          %s170 = smul.u32 32, %s16
          %s171 = smul.u32 5, %s18
          %s172 = smul.addr %s170, 25
          %s173 = sadd.s32 %s171, %s172
          %s174 = smul.addr %s173, 4
          %s175 = scalar_lea.vmem %s0, %s174
          // Predicated region
          $region25: #{cnn_forward.5} parent=23 // pred_check
            _
          $region26: #{cnn_forward.5} parent=23 // pred_check_branch
            %177 = sbr.rel (0) target = $region28
          $region27: #{cnn_forward.5} parent=23 // pred_region
            // Predicated region
            $region29: #{cnn_forward.5} parent=27 // pred_check
              _
            $region30: #{cnn_forward.5} parent=27 // pred_check_branch
              %179 = sbr.rel (0) target = $region32
            $region31: #{cnn_forward.5} parent=27 // pred_region
              %s180 = scalar_lea.vmem %s175, 16
              %s181 = scalar_lea.vmem %s169, 16 [#allocation3]
              loop: start=0, step=1, limit=1
              $region33: #{cnn_forward.5} parent=31 // loop_pre_header
                _
              $region34: #{cnn_forward.5} parent=31 // loop_header
                %s183 = sphi 0, %s187
                %p184 = scmp.ge.s32.totalorder %s183, 1
                %s188 = sphi %s175, %s175
                %s189 = sphi %s169, %s169
              $region35: #{cnn_forward.5} parent=31 // loop_header_branch
                %186 = sbr.rel (%p184) target = $region39
              $region36: #{cnn_forward.5} parent=31 // loop_body
                %v190 = vld [vmem:[%s188] sm:$0xff]
                %191 = vst [vmem:[%s189] sm:$0xff] %v190
                %v192 = vld [vmem:[%s188 + $0x8] sm:$0xff]
                %193 = vst [vmem:[%s189 + $0x8] sm:$0xff] %v192
                %v194 = vld [vmem:[%s188 + $0x64] sm:$0xff]
                %195 = vst [vmem:[%s189 + $0x14] sm:$0xff] %v194
                %v196 = vld [vmem:[%s188 + $0x6c] sm:$0xff]
                %197 = vst [vmem:[%s189 + $0x1c] sm:$0xff] %v196
                %v198 = vld [vmem:[%s188 + $0xc8] sm:$0xff]
                %199 = vst [vmem:[%s189 + $0x28] sm:$0xff] %v198
                %v200 = vld [vmem:[%s188 + $0xd0] sm:$0xff]
                %201 = vst [vmem:[%s189 + $0x30] sm:$0xff] %v200
                %v202 = vld [vmem:[%s188 + $0x12c] sm:$0xff]
                %203 = vst [vmem:[%s189 + $0x3c] sm:$0xff] %v202
                %v204 = vld [vmem:[%s188 + $0x134] sm:$0xff]
                %205 = vst [vmem:[%s189 + $0x44] sm:$0xff] %v204
                %v206 = vld [vmem:[%s188 + $0x190] sm:$0xff]
                %207 = vst [vmem:[%s189 + $0x50] sm:$0xff] %v206
                %v208 = vld [vmem:[%s188 + $0x198] sm:$0xff]
                %209 = vst [vmem:[%s189 + $0x58] sm:$0xff] %v208
                %v210 = vld [vmem:[%s188 + $0x1f4] sm:$0xff]
                %211 = vst [vmem:[%s189 + $0x64] sm:$0xff] %v210
                %v212 = vld [vmem:[%s188 + $0x1fc] sm:$0xff]
                %213 = vst [vmem:[%s189 + $0x6c] sm:$0xff] %v212
                %v214 = vld [vmem:[%s188 + $0x258] sm:$0xff]
                %215 = vst [vmem:[%s189 + $0x78] sm:$0xff] %v214
                %v216 = vld [vmem:[%s188 + $0x260] sm:$0xff]
                %217 = vst [vmem:[%s189 + $0x80] sm:$0xff] %v216
                %v218 = vld [vmem:[%s188 + $0x2bc] sm:$0xff]
                %219 = vst [vmem:[%s189 + $0x8c] sm:$0xff] %v218
                %v220 = vld [vmem:[%s188 + $0x2c4] sm:$0xff]
                %221 = vst [vmem:[%s189 + $0x94] sm:$0xff] %v220
                %v222 = vld [vmem:[%s188 + $0x320] sm:$0xff]
                %223 = vst [vmem:[%s189 + $0xa0] sm:$0xff] %v222
                %v224 = vld [vmem:[%s188 + $0x328] sm:$0xff]
                %225 = vst [vmem:[%s189 + $0xa8] sm:$0xff] %v224
                %v226 = vld [vmem:[%s188 + $0x384] sm:$0xff]
                %227 = vst [vmem:[%s189 + $0xb4] sm:$0xff] %v226
                %v228 = vld [vmem:[%s188 + $0x38c] sm:$0xff]
                %229 = vst [vmem:[%s189 + $0xbc] sm:$0xff] %v228
                %v230 = vld [vmem:[%s188 + $0x3e8] sm:$0xff]
                %231 = vst [vmem:[%s189 + $0xc8] sm:$0xff] %v230
                %v232 = vld [vmem:[%s188 + $0x3f0] sm:$0xff]
                %233 = vst [vmem:[%s189 + $0xd0] sm:$0xff] %v232
                %v234 = vld [vmem:[%s188 + $0x44c] sm:$0xff]
                %235 = vst [vmem:[%s189 + $0xdc] sm:$0xff] %v234
                %v236 = vld [vmem:[%s188 + $0x454] sm:$0xff]
                %237 = vst [vmem:[%s189 + $0xe4] sm:$0xff] %v236
                %v238 = vld [vmem:[%s188 + $0x4b0] sm:$0xff]
                %239 = vst [vmem:[%s189 + $0xf0] sm:$0xff] %v238
                %v240 = vld [vmem:[%s188 + $0x4b8] sm:$0xff]
                %241 = vst [vmem:[%s189 + $0xf8] sm:$0xff] %v240
                %v242 = vld [vmem:[%s188 + $0x514] sm:$0xff]
                %243 = vst [vmem:[%s189 + $0x104] sm:$0xff] %v242
                %v244 = vld [vmem:[%s188 + $0x51c] sm:$0xff]
                %245 = vst [vmem:[%s189 + $0x10c] sm:$0xff] %v244
                %v246 = vld [vmem:[%s188 + $0x578] sm:$0xff]
                %247 = vst [vmem:[%s189 + $0x118] sm:$0xff] %v246
                %v248 = vld [vmem:[%s188 + $0x580] sm:$0xff]
                %249 = vst [vmem:[%s189 + $0x120] sm:$0xff] %v248
                %v250 = vld [vmem:[%s188 + $0x5dc] sm:$0xff]
                %251 = vst [vmem:[%s189 + $0x12c] sm:$0xff] %v250
                %v252 = vld [vmem:[%s188 + $0x5e4] sm:$0xff]
                %253 = vst [vmem:[%s189 + $0x134] sm:$0xff] %v252
                %v254 = vld [vmem:[%s188 + $0x640] sm:$0xff]
                %255 = vst [vmem:[%s189 + $0x140] sm:$0xff] %v254
                %v256 = vld [vmem:[%s188 + $0x648] sm:$0xff]
                %257 = vst [vmem:[%s189 + $0x148] sm:$0xff] %v256
                %v258 = vld [vmem:[%s188 + $0x6a4] sm:$0xff]
                %259 = vst [vmem:[%s189 + $0x154] sm:$0xff] %v258
                %v260 = vld [vmem:[%s188 + $0x6ac] sm:$0xff]
                %261 = vst [vmem:[%s189 + $0x15c] sm:$0xff] %v260
                %v262 = vld [vmem:[%s188 + $0x708] sm:$0xff]
                %263 = vst [vmem:[%s189 + $0x168] sm:$0xff] %v262
                %v264 = vld [vmem:[%s188 + $0x710] sm:$0xff]
                %265 = vst [vmem:[%s189 + $0x170] sm:$0xff] %v264
                %v266 = vld [vmem:[%s188 + $0x76c] sm:$0xff]
                %267 = vst [vmem:[%s189 + $0x17c] sm:$0xff] %v266
                %v268 = vld [vmem:[%s188 + $0x774] sm:$0xff]
                %269 = vst [vmem:[%s189 + $0x184] sm:$0xff] %v268
                %v270 = vld [vmem:[%s188 + $0x7d0] sm:$0xff]
                %271 = vst [vmem:[%s189 + $0x190] sm:$0xff] %v270
                %v272 = vld [vmem:[%s188 + $0x7d8] sm:$0xff]
                %273 = vst [vmem:[%s189 + $0x198] sm:$0xff] %v272
                %v274 = vld [vmem:[%s188 + $0x834] sm:$0xff]
                %275 = vst [vmem:[%s189 + $0x1a4] sm:$0xff] %v274
                %v276 = vld [vmem:[%s188 + $0x83c] sm:$0xff]
                %277 = vst [vmem:[%s189 + $0x1ac] sm:$0xff] %v276
                %v278 = vld [vmem:[%s188 + $0x898] sm:$0xff]
                %279 = vst [vmem:[%s189 + $0x1b8] sm:$0xff] %v278
                %v280 = vld [vmem:[%s188 + $0x8a0] sm:$0xff]
                %281 = vst [vmem:[%s189 + $0x1c0] sm:$0xff] %v280
                %v282 = vld [vmem:[%s188 + $0x8fc] sm:$0xff]
                %283 = vst [vmem:[%s189 + $0x1cc] sm:$0xff] %v282
                %v284 = vld [vmem:[%s188 + $0x904] sm:$0xff]
                %285 = vst [vmem:[%s189 + $0x1d4] sm:$0xff] %v284
                %v286 = vld [vmem:[%s188 + $0x960] sm:$0xff]
                %287 = vst [vmem:[%s189 + $0x1e0] sm:$0xff] %v286
                %v288 = vld [vmem:[%s188 + $0x968] sm:$0xff]
                %289 = vst [vmem:[%s189 + $0x1e8] sm:$0xff] %v288
                %v290 = vld [vmem:[%s188 + $0x9c4] sm:$0xff]
                %291 = vst [vmem:[%s189 + $0x1f4] sm:$0xff] %v290
                %v292 = vld [vmem:[%s188 + $0x9cc] sm:$0xff]
                %293 = vst [vmem:[%s189 + $0x1fc] sm:$0xff] %v292
                %v294 = vld [vmem:[%s188 + $0xa28] sm:$0xff]
                %295 = vst [vmem:[%s189 + $0x208] sm:$0xff] %v294
                %v296 = vld [vmem:[%s188 + $0xa30] sm:$0xff]
                %297 = vst [vmem:[%s189 + $0x210] sm:$0xff] %v296
                %v298 = vld [vmem:[%s188 + $0xa8c] sm:$0xff]
                %299 = vst [vmem:[%s189 + $0x21c] sm:$0xff] %v298
                %v300 = vld [vmem:[%s188 + $0xa94] sm:$0xff]
                %301 = vst [vmem:[%s189 + $0x224] sm:$0xff] %v300
                %v302 = vld [vmem:[%s188 + $0xaf0] sm:$0xff]
                %303 = vst [vmem:[%s189 + $0x230] sm:$0xff] %v302
                %v304 = vld [vmem:[%s188 + $0xaf8] sm:$0xff]
                %305 = vst [vmem:[%s189 + $0x238] sm:$0xff] %v304
                %v306 = vld [vmem:[%s188 + $0xb54] sm:$0xff]
                %307 = vst [vmem:[%s189 + $0x244] sm:$0xff] %v306
                %v308 = vld [vmem:[%s188 + $0xb5c] sm:$0xff]
                %309 = vst [vmem:[%s189 + $0x24c] sm:$0xff] %v308
                %v310 = vld [vmem:[%s188 + $0xbb8] sm:$0xff]
                %311 = vst [vmem:[%s189 + $0x258] sm:$0xff] %v310
                %v312 = vld [vmem:[%s188 + $0xbc0] sm:$0xff]
                %313 = vst [vmem:[%s189 + $0x260] sm:$0xff] %v312
                %v314 = vld [vmem:[%s188 + $0xc1c] sm:$0xff]
                %315 = vst [vmem:[%s189 + $0x26c] sm:$0xff] %v314
                %v316 = vld [vmem:[%s188 + $0xc24] sm:$0xff]
                %317 = vst [vmem:[%s189 + $0x274] sm:$0xff] %v316
              $region37: #{cnn_forward.5} parent=31 // loop_footer
                %s187 = sadd.s32 1, %s183
              $region38: #{cnn_forward.5} parent=31 // loop_footer_branch
                %182 = sbr.rel target = $region34
              $region39: #{cnn_forward.5} parent=31 // loop_exit
                _
              %s319 = ssub.s32 16, 1
              loop: start=0, step=1, limit=1
              $region40: #{cnn_forward.5} parent=31 // loop_pre_header
                _
              $region41: #{cnn_forward.5} parent=31 // loop_header
                %s321 = sphi 0, %s325
                %p322 = scmp.ge.s32.totalorder %s321, 1
                %s326 = sphi %s180, %s180
                %s327 = sphi %s181, %s181
              $region42: #{cnn_forward.5} parent=31 // loop_header_branch
                %324 = sbr.rel (%p322) target = $region46
              $region43: #{cnn_forward.5} parent=31 // loop_body
                %v328 = vld [vmem:[%s326] sm:%s319]
                %329 = vst [vmem:[%s327] sm:%s319] %v328
                %v330 = vld [vmem:[%s326 + $0x64] sm:%s319]
                %331 = vst [vmem:[%s327 + $0x14] sm:%s319] %v330
                %v332 = vld [vmem:[%s326 + $0xc8] sm:%s319]
                %333 = vst [vmem:[%s327 + $0x28] sm:%s319] %v332
                %v334 = vld [vmem:[%s326 + $0x12c] sm:%s319]
                %335 = vst [vmem:[%s327 + $0x3c] sm:%s319] %v334
                %v336 = vld [vmem:[%s326 + $0x190] sm:%s319]
                %337 = vst [vmem:[%s327 + $0x50] sm:%s319] %v336
                %v338 = vld [vmem:[%s326 + $0x1f4] sm:%s319]
                %339 = vst [vmem:[%s327 + $0x64] sm:%s319] %v338
                %v340 = vld [vmem:[%s326 + $0x258] sm:%s319]
                %341 = vst [vmem:[%s327 + $0x78] sm:%s319] %v340
                %v342 = vld [vmem:[%s326 + $0x2bc] sm:%s319]
                %343 = vst [vmem:[%s327 + $0x8c] sm:%s319] %v342
                %v344 = vld [vmem:[%s326 + $0x320] sm:%s319]
                %345 = vst [vmem:[%s327 + $0xa0] sm:%s319] %v344
                %v346 = vld [vmem:[%s326 + $0x384] sm:%s319]
                %347 = vst [vmem:[%s327 + $0xb4] sm:%s319] %v346
                %v348 = vld [vmem:[%s326 + $0x3e8] sm:%s319]
                %349 = vst [vmem:[%s327 + $0xc8] sm:%s319] %v348
                %v350 = vld [vmem:[%s326 + $0x44c] sm:%s319]
                %351 = vst [vmem:[%s327 + $0xdc] sm:%s319] %v350
                %v352 = vld [vmem:[%s326 + $0x4b0] sm:%s319]
                %353 = vst [vmem:[%s327 + $0xf0] sm:%s319] %v352
                %v354 = vld [vmem:[%s326 + $0x514] sm:%s319]
                %355 = vst [vmem:[%s327 + $0x104] sm:%s319] %v354
                %v356 = vld [vmem:[%s326 + $0x578] sm:%s319]
                %357 = vst [vmem:[%s327 + $0x118] sm:%s319] %v356
                %v358 = vld [vmem:[%s326 + $0x5dc] sm:%s319]
                %359 = vst [vmem:[%s327 + $0x12c] sm:%s319] %v358
                %v360 = vld [vmem:[%s326 + $0x640] sm:%s319]
                %361 = vst [vmem:[%s327 + $0x140] sm:%s319] %v360
                %v362 = vld [vmem:[%s326 + $0x6a4] sm:%s319]
                %363 = vst [vmem:[%s327 + $0x154] sm:%s319] %v362
                %v364 = vld [vmem:[%s326 + $0x708] sm:%s319]
                %365 = vst [vmem:[%s327 + $0x168] sm:%s319] %v364
                %v366 = vld [vmem:[%s326 + $0x76c] sm:%s319]
                %367 = vst [vmem:[%s327 + $0x17c] sm:%s319] %v366
                %v368 = vld [vmem:[%s326 + $0x7d0] sm:%s319]
                %369 = vst [vmem:[%s327 + $0x190] sm:%s319] %v368
                %v370 = vld [vmem:[%s326 + $0x834] sm:%s319]
                %371 = vst [vmem:[%s327 + $0x1a4] sm:%s319] %v370
                %v372 = vld [vmem:[%s326 + $0x898] sm:%s319]
                %373 = vst [vmem:[%s327 + $0x1b8] sm:%s319] %v372
                %v374 = vld [vmem:[%s326 + $0x8fc] sm:%s319]
                %375 = vst [vmem:[%s327 + $0x1cc] sm:%s319] %v374
                %v376 = vld [vmem:[%s326 + $0x960] sm:%s319]
                %377 = vst [vmem:[%s327 + $0x1e0] sm:%s319] %v376
                %v378 = vld [vmem:[%s326 + $0x9c4] sm:%s319]
                %379 = vst [vmem:[%s327 + $0x1f4] sm:%s319] %v378
                %v380 = vld [vmem:[%s326 + $0xa28] sm:%s319]
                %381 = vst [vmem:[%s327 + $0x208] sm:%s319] %v380
                %v382 = vld [vmem:[%s326 + $0xa8c] sm:%s319]
                %383 = vst [vmem:[%s327 + $0x21c] sm:%s319] %v382
                %v384 = vld [vmem:[%s326 + $0xaf0] sm:%s319]
                %385 = vst [vmem:[%s327 + $0x230] sm:%s319] %v384
                %v386 = vld [vmem:[%s326 + $0xb54] sm:%s319]
                %387 = vst [vmem:[%s327 + $0x244] sm:%s319] %v386
                %v388 = vld [vmem:[%s326 + $0xbb8] sm:%s319]
                %389 = vst [vmem:[%s327 + $0x258] sm:%s319] %v388
                %v390 = vld [vmem:[%s326 + $0xc1c] sm:%s319]
                %391 = vst [vmem:[%s327 + $0x26c] sm:%s319] %v390
              $region44: #{cnn_forward.5} parent=31 // loop_footer
                %s325 = sadd.s32 1, %s321
              $region45: #{cnn_forward.5} parent=31 // loop_footer_branch
                %320 = sbr.rel target = $region41
              $region46: #{cnn_forward.5} parent=31 // loop_exit
                _
            $region32: #{cnn_forward.5} parent=27 // pred_fallthru
              _
          $region28: #{cnn_forward.5} parent=23 // pred_fallthru
            _
          %392 = vnop
        $region24: #{cnn_forward.5} parent=19 // pred_fallthru
          _
        // Predicated region
        $region47: #{cnn_forward.5} parent=19 // pred_check
          %p393 = pneg %p78
        $region48: #{cnn_forward.5} parent=19 // pred_check_branch
          %395 = sbr.rel (%p393) target = $region50
        $region49: #{cnn_forward.5} parent=19 // pred_region
          %s396 = smul.u32 80, %s18
          %p397 = scmp.lt.s32.totalorder %s396, 399
          %s398 = scalar_select %p397, %s396, 399
          %p399 = scmp.lt.s32.totalorder %s17, 0
          %s400 = scalar_select %p399, %s17, 0
          %s401 = sadd.s32 %s400, %s398
          %s402 = smul.addr %s401, 4
          %s403 = scalar_lea.vmem %s1, %s402
          %s404 = smul.u32 80, %s18
        $region50: #{cnn_forward.5} parent=19 // pred_fallthru
          _
      $region20: #{cnn_forward.5} parent=5 // pred_fallthru
        _
      %p405 = scmp.le.s32.totalorder 1, %s9
      %p406 = scmp.lt.s32.totalorder %s9, 11
      %p407 = pnand %p405, %p406
      %p408 = pneg %p407
      // Predicated region
      $region51: #{cnn_forward.5} parent=5 // pred_check
        _
      $region52: #{cnn_forward.5} parent=5 // pred_check_branch
        %410 = sbr.rel (%p407) target = $region54
      $region53: #{cnn_forward.5} parent=5 // pred_region
        %s411 = ssub.s32 %s9, 1
        %s412 = sand.u32 %s43, 1
        %s413 = sand.u32 %s43, 1
        %s414 = smul.addr %s413, 640
        %s415 = scalar_lea.vmem [#allocation3], %s414
        // Predicated region
        $region55: #{cnn_forward.5} parent=53 // pred_check
          %p416 = pneg %p56
        $region56: #{cnn_forward.5} parent=53 // pred_check_branch
          %418 = sbr.rel (%p416) target = $region58
        $region57: #{cnn_forward.5} parent=53 // pred_region
          _
        $region58: #{cnn_forward.5} parent=53 // pred_fallthru
          _
        %s419 = sand.u32 %s43, 1
        %s420 = sand.u32 %s43, 1
        %s421 = smul.addr %s420, 640
        %s422 = scalar_lea.vmem [#allocation3], %s421
        %p423 = pneg %p56
        %p424 = pneg %p53
        %s425 = smul.u32 80, %s21
        %p426 = scmp.lt.s32.totalorder %s425, 399
        %s427 = scalar_select %p426, %s425, 399
        %p428 = scmp.lt.s32.totalorder %s20, 0
        %s429 = scalar_select %p428, %s20, 0
        %s430 = sadd.s32 %s429, %s427
        %s431 = smul.addr %s430, 4
        %s432 = scalar_lea.vmem %s1, %s431
        %p433 = pneg %p84
        %p434 = pneg %p81
        %p435 = scmp.lt.s32.totalorder %s20, 0
        %s436 = scalar_select %p435, %s20, 0
        %s437 = scalar_lea.vmem %s2, %s436
        %p438 = pneg %p110
        %p439 = pneg %p107
        %p440 = pneg %p138
        %p441 = pneg %p135
        %s442 = smul.u32 32, %s19
        %p443 = scmp.lt.s32.totalorder %s442, 63
        %s444 = scalar_select %p443, %s442, 63
        %p445 = scmp.lt.s32.totalorder %s20, 0
        %s446 = scalar_select %p445, %s20, 0
        %s447 = sadd.s32 %s446, %s444
        %s448 = smul.addr %s447, 8
        %s449 = scalar_lea.vmem %s3, %s448
        %s450 = smul.u32 32, %s19
        %s451 = smul.u32 5, %s21
        %s452 = smul.u32 80, %s21
        %p453 = scmp.lt.s32.totalorder %s452, 399
        %s454 = scalar_select %p453, %s452, 399
        %p455 = scmp.lt.s32.totalorder %s20, 0
        %s456 = scalar_select %p455, %s20, 0
        %s457 = sadd.s32 %s456, %s454
        %s458 = smul.addr %s457, 4
        %s459 = scalar_lea.vmem %s1, %s458
        %s460 = smul.u32 80, %s21
        %p461 = scmp.lt.s32.totalorder %s20, 0
        %s462 = scalar_select %p461, %s20, 0
        %s463 = scalar_lea.vmem %s2, %s462
        %s464 = smul.u32 32, %s19
        %p465 = scmp.lt.s32.totalorder %s464, 63
        %s466 = scalar_select %p465, %s464, 63
        %p467 = scmp.lt.s32.totalorder %s20, 0
        %s468 = scalar_select %p467, %s20, 0
        %s469 = sadd.s32 %s468, %s466
        %s470 = smul.addr %s469, 8
        %s471 = scalar_lea.vmem %s3, %s470
        %s472 = smul.u32 32, %s19
        %p473 = scmp.eq.s32.totalorder %s21, 0
        // Predicated region
        $region59: #{cnn_forward.5} parent=53 // pred_check
          %p474 = pneg %p473
        $region60: #{cnn_forward.5} parent=53 // pred_check_branch
          %476 = sbr.rel (%p474) target = $region62
        $region61: #{cnn_forward.5} parent=53 // pred_region
          %477 = vst [vmem:[#allocation2] sm:$0xff] 0.0
          %478 = vst [vmem:[#allocation2 + $0x8] sm:$0xff] 0.0
          %479 = vst [vmem:[#allocation2 + $0x10] sm:$0xff] 0.0
          %480 = vst [vmem:[#allocation2 + $0x18] sm:$0xff] 0.0
          %481 = vst [vmem:[#allocation2 + $0x20] sm:$0xff] 0.0
          %482 = vst [vmem:[#allocation2 + $0x28] sm:$0xff] 0.0
          %483 = vst [vmem:[#allocation2 + $0x30] sm:$0xff] 0.0
          %484 = vst [vmem:[#allocation2 + $0x38] sm:$0xff] 0.0
          %485 = vst [vmem:[#allocation2 + $0x40] sm:$0xff] 0.0
          %486 = vst [vmem:[#allocation2 + $0x48] sm:$0xff] 0.0
          %487 = vst [vmem:[#allocation2 + $0x50] sm:$0xff] 0.0
          %488 = vst [vmem:[#allocation2 + $0x58] sm:$0xff] 0.0
          %489 = vst [vmem:[#allocation2 + $0x60] sm:$0xff] 0.0
          %490 = vst [vmem:[#allocation2 + $0x68] sm:$0xff] 0.0
          %491 = vst [vmem:[#allocation2 + $0x70] sm:$0xff] 0.0
          %492 = vst [vmem:[#allocation2 + $0x78] sm:$0xff] 0.0
          %493 = vst [vmem:[#allocation2 + $0x80] sm:$0xff] 0.0
          %494 = vst [vmem:[#allocation2 + $0x88] sm:$0xff] 0.0
          %495 = vst [vmem:[#allocation2 + $0x90] sm:$0xff] 0.0
          %496 = vst [vmem:[#allocation2 + $0x98] sm:$0xff] 0.0
          %497 = vst [vmem:[#allocation2 + $0xa0] sm:$0xff] 0.0
          %498 = vst [vmem:[#allocation2 + $0xa8] sm:$0xff] 0.0
          %499 = vst [vmem:[#allocation2 + $0xb0] sm:$0xff] 0.0
          %500 = vst [vmem:[#allocation2 + $0xb8] sm:$0xff] 0.0
          %501 = vst [vmem:[#allocation2 + $0xc0] sm:$0xff] 0.0
          %502 = vst [vmem:[#allocation2 + $0xc8] sm:$0xff] 0.0
          %503 = vst [vmem:[#allocation2 + $0xd0] sm:$0xff] 0.0
          %504 = vst [vmem:[#allocation2 + $0xd8] sm:$0xff] 0.0
          %505 = vst [vmem:[#allocation2 + $0xe0] sm:$0xff] 0.0
          %506 = vst [vmem:[#allocation2 + $0xe8] sm:$0xff] 0.0
          %507 = vst [vmem:[#allocation2 + $0xf0] sm:$0xff] 0.0
          %508 = vst [vmem:[#allocation2 + $0xf8] sm:$0xff] 0.0
        $region62: #{cnn_forward.5} parent=53 // pred_fallthru
          _
        %v509 = vld [vmem:[#allocation2] sm:$0xff]
        %v510 = vld [vmem:[#allocation2 + $0x8] sm:$0xff]
        %v511 = vld [vmem:[#allocation2 + $0x10] sm:$0xff]
        %v512 = vld [vmem:[#allocation2 + $0x18] sm:$0xff]
        %v513 = vld [vmem:[#allocation2 + $0x20] sm:$0xff]
        %v514 = vld [vmem:[#allocation2 + $0x28] sm:$0xff]
        %v515 = vld [vmem:[#allocation2 + $0x30] sm:$0xff]
        %v516 = vld [vmem:[#allocation2 + $0x38] sm:$0xff]
        %v517 = vld [vmem:[#allocation2 + $0x40] sm:$0xff]
        %v518 = vld [vmem:[#allocation2 + $0x48] sm:$0xff]
        %v519 = vld [vmem:[#allocation2 + $0x50] sm:$0xff]
        %v520 = vld [vmem:[#allocation2 + $0x58] sm:$0xff]
        %v521 = vld [vmem:[#allocation2 + $0x60] sm:$0xff]
        %v522 = vld [vmem:[#allocation2 + $0x68] sm:$0xff]
        %v523 = vld [vmem:[#allocation2 + $0x70] sm:$0xff]
        %v524 = vld [vmem:[#allocation2 + $0x78] sm:$0xff]
        %v525 = vld [vmem:[#allocation2 + $0x80] sm:$0xff]
        %v526 = vld [vmem:[#allocation2 + $0x88] sm:$0xff]
        %v527 = vld [vmem:[#allocation2 + $0x90] sm:$0xff]
        %v528 = vld [vmem:[#allocation2 + $0x98] sm:$0xff]
        %v529 = vld [vmem:[#allocation2 + $0xa0] sm:$0xff]
        %v530 = vld [vmem:[#allocation2 + $0xa8] sm:$0xff]
        %v531 = vld [vmem:[#allocation2 + $0xb0] sm:$0xff]
        %v532 = vld [vmem:[#allocation2 + $0xb8] sm:$0xff]
        %v533 = vld [vmem:[#allocation2 + $0xc0] sm:$0xff]
        %v534 = vld [vmem:[#allocation2 + $0xc8] sm:$0xff]
        %v535 = vld [vmem:[#allocation2 + $0xd0] sm:$0xff]
        %v536 = vld [vmem:[#allocation2 + $0xd8] sm:$0xff]
        %v537 = vld [vmem:[#allocation2 + $0xe0] sm:$0xff]
        %v538 = vld [vmem:[#allocation2 + $0xe8] sm:$0xff]
        %v539 = vld [vmem:[#allocation2 + $0xf0] sm:$0xff]
        %v540 = vld [vmem:[#allocation2 + $0xf8] sm:$0xff]
        %v541 = vld [vmem:[%s415] sm:$0xff]
        %v542 = vld [vmem:[%s415 + $0x8] sm:$0xff]
        %v543 = vld [vmem:[%s415 + $0x10] sm:$0xf]
        %v544 = vld [vmem:[%s415 + $0x14] sm:$0xff]
        %v545 = vld [vmem:[%s415 + $0x1c] sm:$0xff]
        %v546 = vld [vmem:[%s415 + $0x24] sm:$0xf]
        %v547 = vld [vmem:[%s415 + $0x28] sm:$0xff]
        %v548 = vld [vmem:[%s415 + $0x30] sm:$0xff]
        %v549 = vld [vmem:[%s415 + $0x38] sm:$0xf]
        %v550 = vld [vmem:[%s415 + $0x3c] sm:$0xff]
        %v551 = vld [vmem:[%s415 + $0x44] sm:$0xff]
        %v552 = vld [vmem:[%s415 + $0x4c] sm:$0xf]
        %v553 = vld [vmem:[%s415 + $0x50] sm:$0xff]
        %v554 = vld [vmem:[%s415 + $0x58] sm:$0xff]
        %v555 = vld [vmem:[%s415 + $0x60] sm:$0xf]
        %v556 = vld [vmem:[%s415 + $0x64] sm:$0xff]
        %v557 = vld [vmem:[%s415 + $0x6c] sm:$0xff]
        %v558 = vld [vmem:[%s415 + $0x74] sm:$0xf]
        %v559 = vld [vmem:[%s415 + $0x78] sm:$0xff]
        %v560 = vld [vmem:[%s415 + $0x80] sm:$0xff]
        %v561 = vld [vmem:[%s415 + $0x88] sm:$0xf]
        %v562 = vld [vmem:[%s415 + $0x8c] sm:$0xff]
        %v563 = vld [vmem:[%s415 + $0x94] sm:$0xff]
        %v564 = vld [vmem:[%s415 + $0x9c] sm:$0xf]
        %v565 = vld [vmem:[%s415 + $0xa0] sm:$0xff]
        %v566 = vld [vmem:[%s415 + $0xa8] sm:$0xff]
        %v567 = vld [vmem:[%s415 + $0xb0] sm:$0xf]
        %v568 = vld [vmem:[%s415 + $0xb4] sm:$0xff]
        %v569 = vld [vmem:[%s415 + $0xbc] sm:$0xff]
        %v570 = vld [vmem:[%s415 + $0xc4] sm:$0xf]
        %v571 = vld [vmem:[%s415 + $0xc8] sm:$0xff]
        %v572 = vld [vmem:[%s415 + $0xd0] sm:$0xff]
        %v573 = vld [vmem:[%s415 + $0xd8] sm:$0xf]
        %v574 = vld [vmem:[%s415 + $0xdc] sm:$0xff]
        %v575 = vld [vmem:[%s415 + $0xe4] sm:$0xff]
        %v576 = vld [vmem:[%s415 + $0xec] sm:$0xf]
        %v577 = vld [vmem:[%s415 + $0xf0] sm:$0xff]
        %v578 = vld [vmem:[%s415 + $0xf8] sm:$0xff]
        %v579 = vld [vmem:[%s415 + $0x100] sm:$0xf]
        %v580 = vld [vmem:[%s415 + $0x104] sm:$0xff]
        %v581 = vld [vmem:[%s415 + $0x10c] sm:$0xff]
        %v582 = vld [vmem:[%s415 + $0x114] sm:$0xf]
        %v583 = vld [vmem:[%s415 + $0x118] sm:$0xff]
        %v584 = vld [vmem:[%s415 + $0x120] sm:$0xff]
        %v585 = vld [vmem:[%s415 + $0x128] sm:$0xf]
        %v586 = vld [vmem:[%s415 + $0x12c] sm:$0xff]
        %v587 = vld [vmem:[%s415 + $0x134] sm:$0xff]
        %v588 = vld [vmem:[%s415 + $0x13c] sm:$0xf]
        %v589 = vld [vmem:[%s415 + $0x140] sm:$0xff]
        %v590 = vld [vmem:[%s415 + $0x148] sm:$0xff]
        %v591 = vld [vmem:[%s415 + $0x150] sm:$0xf]
        %v592 = vld [vmem:[%s415 + $0x154] sm:$0xff]
        %v593 = vld [vmem:[%s415 + $0x15c] sm:$0xff]
        %v594 = vld [vmem:[%s415 + $0x164] sm:$0xf]
        %v595 = vld [vmem:[%s415 + $0x168] sm:$0xff]
        %v596 = vld [vmem:[%s415 + $0x170] sm:$0xff]
        %v597 = vld [vmem:[%s415 + $0x178] sm:$0xf]
        %v598 = vld [vmem:[%s415 + $0x17c] sm:$0xff]
        %v599 = vld [vmem:[%s415 + $0x184] sm:$0xff]
        %v600 = vld [vmem:[%s415 + $0x18c] sm:$0xf]
        %v601 = vld [vmem:[%s415 + $0x190] sm:$0xff]
        %v602 = vld [vmem:[%s415 + $0x198] sm:$0xff]
        %v603 = vld [vmem:[%s415 + $0x1a0] sm:$0xf]
        %v604 = vld [vmem:[%s415 + $0x1a4] sm:$0xff]
        %v605 = vld [vmem:[%s415 + $0x1ac] sm:$0xff]
        %v606 = vld [vmem:[%s415 + $0x1b4] sm:$0xf]
        %v607 = vld [vmem:[%s415 + $0x1b8] sm:$0xff]
        %v608 = vld [vmem:[%s415 + $0x1c0] sm:$0xff]
        %v609 = vld [vmem:[%s415 + $0x1c8] sm:$0xf]
        %v610 = vld [vmem:[%s415 + $0x1cc] sm:$0xff]
        %v611 = vld [vmem:[%s415 + $0x1d4] sm:$0xff]
        %v612 = vld [vmem:[%s415 + $0x1dc] sm:$0xf]
        %v613 = vld [vmem:[%s415 + $0x1e0] sm:$0xff]
        %v614 = vld [vmem:[%s415 + $0x1e8] sm:$0xff]
        %v615 = vld [vmem:[%s415 + $0x1f0] sm:$0xf]
        %v616 = vld [vmem:[%s415 + $0x1f4] sm:$0xff]
        %v617 = vld [vmem:[%s415 + $0x1fc] sm:$0xff]
        %v618 = vld [vmem:[%s415 + $0x204] sm:$0xf]
        %v619 = vld [vmem:[%s415 + $0x208] sm:$0xff]
        %v620 = vld [vmem:[%s415 + $0x210] sm:$0xff]
        %v621 = vld [vmem:[%s415 + $0x218] sm:$0xf]
        %v622 = vld [vmem:[%s415 + $0x21c] sm:$0xff]
        %v623 = vld [vmem:[%s415 + $0x224] sm:$0xff]
        %v624 = vld [vmem:[%s415 + $0x22c] sm:$0xf]
        %v625 = vld [vmem:[%s415 + $0x230] sm:$0xff]
        %v626 = vld [vmem:[%s415 + $0x238] sm:$0xff]
        %v627 = vld [vmem:[%s415 + $0x240] sm:$0xf]
        %v628 = vld [vmem:[%s415 + $0x244] sm:$0xff]
        %v629 = vld [vmem:[%s415 + $0x24c] sm:$0xff]
        %v630 = vld [vmem:[%s415 + $0x254] sm:$0xf]
        %v631 = vld [vmem:[%s415 + $0x258] sm:$0xff]
        %v632 = vld [vmem:[%s415 + $0x260] sm:$0xff]
        %v633 = vld [vmem:[%s415 + $0x268] sm:$0xf]
        %v634 = vld [vmem:[%s415 + $0x26c] sm:$0xff]
        %v635 = vld [vmem:[%s415 + $0x274] sm:$0xff]
        %v636 = vld [vmem:[%s415 + $0x27c] sm:$0xf]
        %v637 = vld [vmem:[%s459] sm:$0xf]
        %v638 = vld [vmem:[%s459 + $0x4] sm:$0xf]
        %v639 = vld [vmem:[%s459 + $0x8] sm:$0xf]
        %v640 = vld [vmem:[%s459 + $0xc] sm:$0xf]
        %v641 = vld [vmem:[%s459 + $0x10] sm:$0xf]
        %v642 = vld [vmem:[%s459 + $0x14] sm:$0xf]
        %v643 = vld [vmem:[%s459 + $0x18] sm:$0xf]
        %v644 = vld [vmem:[%s459 + $0x1c] sm:$0xf]
        %v645 = vld [vmem:[%s459 + $0x20] sm:$0xf]
        %v646 = vld [vmem:[%s459 + $0x24] sm:$0xf]
        %v647 = vld [vmem:[%s459 + $0x28] sm:$0xf]
        %v648 = vld [vmem:[%s459 + $0x2c] sm:$0xf]
        %v649 = vld [vmem:[%s459 + $0x30] sm:$0xf]
        %v650 = vld [vmem:[%s459 + $0x34] sm:$0xf]
        %v651 = vld [vmem:[%s459 + $0x38] sm:$0xf]
        %v652 = vld [vmem:[%s459 + $0x3c] sm:$0xf]
        %v653 = vld [vmem:[%s459 + $0x40] sm:$0xf]
        %v654 = vld [vmem:[%s459 + $0x44] sm:$0xf]
        %v655 = vld [vmem:[%s459 + $0x48] sm:$0xf]
        %v656 = vld [vmem:[%s459 + $0x4c] sm:$0xf]
        %v657 = vld [vmem:[%s459 + $0x50] sm:$0xf]
        %v658 = vld [vmem:[%s459 + $0x54] sm:$0xf]
        %v659 = vld [vmem:[%s459 + $0x58] sm:$0xf]
        %v660 = vld [vmem:[%s459 + $0x5c] sm:$0xf]
        %v661 = vld [vmem:[%s459 + $0x60] sm:$0xf]
        %v662 = vld [vmem:[%s459 + $0x64] sm:$0xf]
        %v663 = vld [vmem:[%s459 + $0x68] sm:$0xf]
        %v664 = vld [vmem:[%s459 + $0x6c] sm:$0xf]
        %v665 = vld [vmem:[%s459 + $0x70] sm:$0xf]
        %v666 = vld [vmem:[%s459 + $0x74] sm:$0xf]
        %v667 = vld [vmem:[%s459 + $0x78] sm:$0xf]
        %v668 = vld [vmem:[%s459 + $0x7c] sm:$0xf]
        %v669 = vld [vmem:[%s459 + $0x80] sm:$0xf]
        %v670 = vld [vmem:[%s459 + $0x84] sm:$0xf]
        %v671 = vld [vmem:[%s459 + $0x88] sm:$0xf]
        %v672 = vld [vmem:[%s459 + $0x8c] sm:$0xf]
        %v673 = vld [vmem:[%s459 + $0x90] sm:$0xf]
        %v674 = vld [vmem:[%s459 + $0x94] sm:$0xf]
        %v675 = vld [vmem:[%s459 + $0x98] sm:$0xf]
        %v676 = vld [vmem:[%s459 + $0x9c] sm:$0xf]
        %v677 = vld [vmem:[%s459 + $0xa0] sm:$0xf]
        %v678 = vld [vmem:[%s459 + $0xa4] sm:$0xf]
        %v679 = vld [vmem:[%s459 + $0xa8] sm:$0xf]
        %v680 = vld [vmem:[%s459 + $0xac] sm:$0xf]
        %v681 = vld [vmem:[%s459 + $0xb0] sm:$0xf]
        %v682 = vld [vmem:[%s459 + $0xb4] sm:$0xf]
        %v683 = vld [vmem:[%s459 + $0xb8] sm:$0xf]
        %v684 = vld [vmem:[%s459 + $0xbc] sm:$0xf]
        %v685 = vld [vmem:[%s459 + $0xc0] sm:$0xf]
        %v686 = vld [vmem:[%s459 + $0xc4] sm:$0xf]
        %v687 = vld [vmem:[%s459 + $0xc8] sm:$0xf]
        %v688 = vld [vmem:[%s459 + $0xcc] sm:$0xf]
        %v689 = vld [vmem:[%s459 + $0xd0] sm:$0xf]
        %v690 = vld [vmem:[%s459 + $0xd4] sm:$0xf]
        %v691 = vld [vmem:[%s459 + $0xd8] sm:$0xf]
        %v692 = vld [vmem:[%s459 + $0xdc] sm:$0xf]
        %v693 = vld [vmem:[%s459 + $0xe0] sm:$0xf]
        %v694 = vld [vmem:[%s459 + $0xe4] sm:$0xf]
        %v695 = vld [vmem:[%s459 + $0xe8] sm:$0xf]
        %v696 = vld [vmem:[%s459 + $0xec] sm:$0xf]
        %v697 = vld [vmem:[%s459 + $0xf0] sm:$0xf]
        %v698 = vld [vmem:[%s459 + $0xf4] sm:$0xf]
        %v699 = vld [vmem:[%s459 + $0xf8] sm:$0xf]
        %v700 = vld [vmem:[%s459 + $0xfc] sm:$0xf]
        %v701 = vld [vmem:[%s459 + $0x100] sm:$0xf]
        %v702 = vld [vmem:[%s459 + $0x104] sm:$0xf]
        %v703 = vld [vmem:[%s459 + $0x108] sm:$0xf]
        %v704 = vld [vmem:[%s459 + $0x10c] sm:$0xf]
        %v705 = vld [vmem:[%s459 + $0x110] sm:$0xf]
        %v706 = vld [vmem:[%s459 + $0x114] sm:$0xf]
        %v707 = vld [vmem:[%s459 + $0x118] sm:$0xf]
        %v708 = vld [vmem:[%s459 + $0x11c] sm:$0xf]
        %v709 = vld [vmem:[%s459 + $0x120] sm:$0xf]
        %v710 = vld [vmem:[%s459 + $0x124] sm:$0xf]
        %v711 = vld [vmem:[%s459 + $0x128] sm:$0xf]
        %v712 = vld [vmem:[%s459 + $0x12c] sm:$0xf]
        %v713 = vld [vmem:[%s459 + $0x130] sm:$0xf]
        %v714 = vld [vmem:[%s459 + $0x134] sm:$0xf]
        %v715 = vld [vmem:[%s459 + $0x138] sm:$0xf]
        %v716 = vld [vmem:[%s459 + $0x13c] sm:$0xf]
        %v813 = vunpack.c.l.b16 %v541
        %v814 = vunpack.c.h.b16 %v541
        %v815 = vunpack.c.l.b16 %v542
        %v816 = vunpack.c.h.b16 %v542
        %v817 = vunpack.c.l.b16 %v543
        %v818 = vunpack.c.l.b16 %v544
        %v819 = vunpack.c.h.b16 %v544
        %v820 = vunpack.c.l.b16 %v545
        %v821 = vunpack.c.h.b16 %v545
        %v822 = vunpack.c.l.b16 %v546
        %v823 = vunpack.c.l.b16 %v547
        %v824 = vunpack.c.h.b16 %v547
        %v825 = vunpack.c.l.b16 %v548
        %v826 = vunpack.c.h.b16 %v548
        %v827 = vunpack.c.l.b16 %v549
        %v828 = vunpack.c.l.b16 %v550
        %v829 = vunpack.c.h.b16 %v550
        %v830 = vunpack.c.l.b16 %v551
        %v831 = vunpack.c.h.b16 %v551
        %v832 = vunpack.c.l.b16 %v552
        %v833 = vunpack.c.l.b16 %v553
        %v834 = vunpack.c.h.b16 %v553
        %v835 = vunpack.c.l.b16 %v554
        %v836 = vunpack.c.h.b16 %v554
        %v837 = vunpack.c.l.b16 %v555
        %v838 = vunpack.c.l.b16 %v556
        %v839 = vunpack.c.h.b16 %v556
        %v840 = vunpack.c.l.b16 %v557
        %v841 = vunpack.c.h.b16 %v557
        %v842 = vunpack.c.l.b16 %v558
        %v843 = vunpack.c.l.b16 %v559
        %v844 = vunpack.c.h.b16 %v559
        %v845 = vunpack.c.l.b16 %v560
        %v846 = vunpack.c.h.b16 %v560
        %v847 = vunpack.c.l.b16 %v561
        %v848 = vunpack.c.l.b16 %v562
        %v849 = vunpack.c.h.b16 %v562
        %v850 = vunpack.c.l.b16 %v563
        %v851 = vunpack.c.h.b16 %v563
        %v852 = vunpack.c.l.b16 %v564
        %v853 = vunpack.c.l.b16 %v565
        %v854 = vunpack.c.h.b16 %v565
        %v855 = vunpack.c.l.b16 %v566
        %v856 = vunpack.c.h.b16 %v566
        %v857 = vunpack.c.l.b16 %v567
        %v858 = vunpack.c.l.b16 %v568
        %v859 = vunpack.c.h.b16 %v568
        %v860 = vunpack.c.l.b16 %v569
        %v861 = vunpack.c.h.b16 %v569
        %v862 = vunpack.c.l.b16 %v570
        %v863 = vunpack.c.l.b16 %v571
        %v864 = vunpack.c.h.b16 %v571
        %v865 = vunpack.c.l.b16 %v572
        %v866 = vunpack.c.h.b16 %v572
        %v867 = vunpack.c.l.b16 %v573
        %v868 = vunpack.c.l.b16 %v574
        %v869 = vunpack.c.h.b16 %v574
        %v870 = vunpack.c.l.b16 %v575
        %v871 = vunpack.c.h.b16 %v575
        %v872 = vunpack.c.l.b16 %v576
        %v873 = vunpack.c.l.b16 %v577
        %v874 = vunpack.c.h.b16 %v577
        %v875 = vunpack.c.l.b16 %v578
        %v876 = vunpack.c.h.b16 %v578
        %v877 = vunpack.c.l.b16 %v579
        %v878 = vunpack.c.l.b16 %v580
        %v879 = vunpack.c.h.b16 %v580
        %v880 = vunpack.c.l.b16 %v581
        %v881 = vunpack.c.h.b16 %v581
        %v882 = vunpack.c.l.b16 %v582
        %v883 = vunpack.c.l.b16 %v583
        %v884 = vunpack.c.h.b16 %v583
        %v885 = vunpack.c.l.b16 %v584
        %v886 = vunpack.c.h.b16 %v584
        %v887 = vunpack.c.l.b16 %v585
        %v888 = vunpack.c.l.b16 %v586
        %v889 = vunpack.c.h.b16 %v586
        %v890 = vunpack.c.l.b16 %v587
        %v891 = vunpack.c.h.b16 %v587
        %v892 = vunpack.c.l.b16 %v588
        %v893 = vunpack.c.l.b16 %v589
        %v894 = vunpack.c.h.b16 %v589
        %v895 = vunpack.c.l.b16 %v590
        %v896 = vunpack.c.h.b16 %v590
        %v897 = vunpack.c.l.b16 %v591
        %v898 = vunpack.c.l.b16 %v592
        %v899 = vunpack.c.h.b16 %v592
        %v900 = vunpack.c.l.b16 %v593
        %v901 = vunpack.c.h.b16 %v593
        %v902 = vunpack.c.l.b16 %v594
        %v903 = vunpack.c.l.b16 %v595
        %v904 = vunpack.c.h.b16 %v595
        %v905 = vunpack.c.l.b16 %v596
        %v906 = vunpack.c.h.b16 %v596
        %v907 = vunpack.c.l.b16 %v597
        %v908 = vunpack.c.l.b16 %v598
        %v909 = vunpack.c.h.b16 %v598
        %v910 = vunpack.c.l.b16 %v599
        %v911 = vunpack.c.h.b16 %v599
        %v912 = vunpack.c.l.b16 %v600
        %v913 = vunpack.c.l.b16 %v601
        %v914 = vunpack.c.h.b16 %v601
        %v915 = vunpack.c.l.b16 %v602
        %v916 = vunpack.c.h.b16 %v602
        %v917 = vunpack.c.l.b16 %v603
        %v918 = vunpack.c.l.b16 %v604
        %v919 = vunpack.c.h.b16 %v604
        %v920 = vunpack.c.l.b16 %v605
        %v921 = vunpack.c.h.b16 %v605
        %v922 = vunpack.c.l.b16 %v606
        %v923 = vunpack.c.l.b16 %v607
        %v924 = vunpack.c.h.b16 %v607
        %v925 = vunpack.c.l.b16 %v608
        %v926 = vunpack.c.h.b16 %v608
        %v927 = vunpack.c.l.b16 %v609
        %v928 = vunpack.c.l.b16 %v610
        %v929 = vunpack.c.h.b16 %v610
        %v930 = vunpack.c.l.b16 %v611
        %v931 = vunpack.c.h.b16 %v611
        %v932 = vunpack.c.l.b16 %v612
        %v933 = vunpack.c.l.b16 %v613
        %v934 = vunpack.c.h.b16 %v613
        %v935 = vunpack.c.l.b16 %v614
        %v936 = vunpack.c.h.b16 %v614
        %v937 = vunpack.c.l.b16 %v615
        %v938 = vunpack.c.l.b16 %v616
        %v939 = vunpack.c.h.b16 %v616
        %v940 = vunpack.c.l.b16 %v617
        %v941 = vunpack.c.h.b16 %v617
        %v942 = vunpack.c.l.b16 %v618
        %v943 = vunpack.c.l.b16 %v619
        %v944 = vunpack.c.h.b16 %v619
        %v945 = vunpack.c.l.b16 %v620
        %v946 = vunpack.c.h.b16 %v620
        %v947 = vunpack.c.l.b16 %v621
        %v948 = vunpack.c.l.b16 %v622
        %v949 = vunpack.c.h.b16 %v622
        %v950 = vunpack.c.l.b16 %v623
        %v951 = vunpack.c.h.b16 %v623
        %v952 = vunpack.c.l.b16 %v624
        %v953 = vunpack.c.l.b16 %v625
        %v954 = vunpack.c.h.b16 %v625
        %v955 = vunpack.c.l.b16 %v626
        %v956 = vunpack.c.h.b16 %v626
        %v957 = vunpack.c.l.b16 %v627
        %v958 = vunpack.c.l.b16 %v628
        %v959 = vunpack.c.h.b16 %v628
        %v960 = vunpack.c.l.b16 %v629
        %v961 = vunpack.c.h.b16 %v629
        %v962 = vunpack.c.l.b16 %v630
        %v963 = vunpack.c.l.b16 %v631
        %v964 = vunpack.c.h.b16 %v631
        %v965 = vunpack.c.l.b16 %v632
        %v966 = vunpack.c.h.b16 %v632
        %v967 = vunpack.c.l.b16 %v633
        %v968 = vunpack.c.l.b16 %v634
        %v969 = vunpack.c.h.b16 %v634
        %v970 = vunpack.c.l.b16 %v635
        %v971 = vunpack.c.h.b16 %v635
        %v972 = vunpack.c.l.b16 %v636
        %v973 = vpack.c.b16 %v818, %v813
        %v974 = vpack.c.b16 %v819, %v814
        %v975 = vpack.c.b16 %v820, %v815
        %v976 = vpack.c.b16 %v821, %v816
        %v977 = vpack.c.b16 %v822, %v817
        %v978 = vpack.c.b16 %v828, %v823
        %v979 = vpack.c.b16 %v829, %v824
        %v980 = vpack.c.b16 %v830, %v825
        %v981 = vpack.c.b16 %v831, %v826
        %v982 = vpack.c.b16 %v832, %v827
        %v983 = vpack.c.b16 %v838, %v833
        %v984 = vpack.c.b16 %v839, %v834
        %v985 = vpack.c.b16 %v840, %v835
        %v986 = vpack.c.b16 %v841, %v836
        %v987 = vpack.c.b16 %v842, %v837
        %v988 = vpack.c.b16 %v848, %v843
        %v989 = vpack.c.b16 %v849, %v844
        %v990 = vpack.c.b16 %v850, %v845
        %v991 = vpack.c.b16 %v851, %v846
        %v992 = vpack.c.b16 %v852, %v847
        %v993 = vpack.c.b16 %v858, %v853
        %v994 = vpack.c.b16 %v859, %v854
        %v995 = vpack.c.b16 %v860, %v855
        %v996 = vpack.c.b16 %v861, %v856
        %v997 = vpack.c.b16 %v862, %v857
        %v998 = vpack.c.b16 %v868, %v863
        %v999 = vpack.c.b16 %v869, %v864
        %v1000 = vpack.c.b16 %v870, %v865
        %v1001 = vpack.c.b16 %v871, %v866
        %v1002 = vpack.c.b16 %v872, %v867
        %v1003 = vpack.c.b16 %v878, %v873
        %v1004 = vpack.c.b16 %v879, %v874
        %v1005 = vpack.c.b16 %v880, %v875
        %v1006 = vpack.c.b16 %v881, %v876
        %v1007 = vpack.c.b16 %v882, %v877
        %v1008 = vpack.c.b16 %v888, %v883
        %v1009 = vpack.c.b16 %v889, %v884
        %v1010 = vpack.c.b16 %v890, %v885
        %v1011 = vpack.c.b16 %v891, %v886
        %v1012 = vpack.c.b16 %v892, %v887
        %v1013 = vpack.c.b16 %v898, %v893
        %v1014 = vpack.c.b16 %v899, %v894
        %v1015 = vpack.c.b16 %v900, %v895
        %v1016 = vpack.c.b16 %v901, %v896
        %v1017 = vpack.c.b16 %v902, %v897
        %v1018 = vpack.c.b16 %v908, %v903
        %v1019 = vpack.c.b16 %v909, %v904
        %v1020 = vpack.c.b16 %v910, %v905
        %v1021 = vpack.c.b16 %v911, %v906
        %v1022 = vpack.c.b16 %v912, %v907
        %v1023 = vpack.c.b16 %v918, %v913
        %v1024 = vpack.c.b16 %v919, %v914
        %v1025 = vpack.c.b16 %v920, %v915
        %v1026 = vpack.c.b16 %v921, %v916
        %v1027 = vpack.c.b16 %v922, %v917
        %v1028 = vpack.c.b16 %v928, %v923
        %v1029 = vpack.c.b16 %v929, %v924
        %v1030 = vpack.c.b16 %v930, %v925
        %v1031 = vpack.c.b16 %v931, %v926
        %v1032 = vpack.c.b16 %v932, %v927
        %v1033 = vpack.c.b16 %v938, %v933
        %v1034 = vpack.c.b16 %v939, %v934
        %v1035 = vpack.c.b16 %v940, %v935
        %v1036 = vpack.c.b16 %v941, %v936
        %v1037 = vpack.c.b16 %v942, %v937
        %v1038 = vpack.c.b16 %v948, %v943
        %v1039 = vpack.c.b16 %v949, %v944
        %v1040 = vpack.c.b16 %v950, %v945
        %v1041 = vpack.c.b16 %v951, %v946
        %v1042 = vpack.c.b16 %v952, %v947
        %v1043 = vpack.c.b16 %v958, %v953
        %v1044 = vpack.c.b16 %v959, %v954
        %v1045 = vpack.c.b16 %v960, %v955
        %v1046 = vpack.c.b16 %v961, %v956
        %v1047 = vpack.c.b16 %v962, %v957
        %v1048 = vpack.c.b16 %v968, %v963
        %v1049 = vpack.c.b16 %v969, %v964
        %v1050 = vpack.c.b16 %v970, %v965
        %v1051 = vpack.c.b16 %v971, %v966
        %v1052 = vpack.c.b16 %v972, %v967
        %v1213 = vunpack.c.l.b16 %v637
        %v1214 = vunpack.c.l.b16 %v638
        %v1215 = vunpack.c.l.b16 %v639
        %v1216 = vunpack.c.l.b16 %v640
        %v1217 = vunpack.c.l.b16 %v641
        %v1218 = vunpack.c.l.b16 %v642
        %v1219 = vunpack.c.l.b16 %v643
        %v1220 = vunpack.c.l.b16 %v644
        %v1221 = vunpack.c.l.b16 %v645
        %v1222 = vunpack.c.l.b16 %v646
        %v1223 = vunpack.c.l.b16 %v647
        %v1224 = vunpack.c.l.b16 %v648
        %v1225 = vunpack.c.l.b16 %v649
        %v1226 = vunpack.c.l.b16 %v650
        %v1227 = vunpack.c.l.b16 %v651
        %v1228 = vunpack.c.l.b16 %v652
        %v1229 = vunpack.c.l.b16 %v653
        %v1230 = vunpack.c.l.b16 %v654
        %v1231 = vunpack.c.l.b16 %v655
        %v1232 = vunpack.c.l.b16 %v656
        %v1233 = vunpack.c.l.b16 %v657
        %v1234 = vunpack.c.l.b16 %v658
        %v1235 = vunpack.c.l.b16 %v659
        %v1236 = vunpack.c.l.b16 %v660
        %v1237 = vunpack.c.l.b16 %v661
        %v1238 = vunpack.c.l.b16 %v662
        %v1239 = vunpack.c.l.b16 %v663
        %v1240 = vunpack.c.l.b16 %v664
        %v1241 = vunpack.c.l.b16 %v665
        %v1242 = vunpack.c.l.b16 %v666
        %v1243 = vunpack.c.l.b16 %v667
        %v1244 = vunpack.c.l.b16 %v668
        %v1245 = vunpack.c.l.b16 %v669
        %v1246 = vunpack.c.l.b16 %v670
        %v1247 = vunpack.c.l.b16 %v671
        %v1248 = vunpack.c.l.b16 %v672
        %v1249 = vunpack.c.l.b16 %v673
        %v1250 = vunpack.c.l.b16 %v674
        %v1251 = vunpack.c.l.b16 %v675
        %v1252 = vunpack.c.l.b16 %v676
        %v1253 = vunpack.c.l.b16 %v677
        %v1254 = vunpack.c.l.b16 %v678
        %v1255 = vunpack.c.l.b16 %v679
        %v1256 = vunpack.c.l.b16 %v680
        %v1257 = vunpack.c.l.b16 %v681
        %v1258 = vunpack.c.l.b16 %v682
        %v1259 = vunpack.c.l.b16 %v683
        %v1260 = vunpack.c.l.b16 %v684
        %v1261 = vunpack.c.l.b16 %v685
        %v1262 = vunpack.c.l.b16 %v686
        %v1263 = vunpack.c.l.b16 %v687
        %v1264 = vunpack.c.l.b16 %v688
        %v1265 = vunpack.c.l.b16 %v689
        %v1266 = vunpack.c.l.b16 %v690
        %v1267 = vunpack.c.l.b16 %v691
        %v1268 = vunpack.c.l.b16 %v692
        %v1269 = vunpack.c.l.b16 %v693
        %v1270 = vunpack.c.l.b16 %v694
        %v1271 = vunpack.c.l.b16 %v695
        %v1272 = vunpack.c.l.b16 %v696
        %v1273 = vunpack.c.l.b16 %v697
        %v1274 = vunpack.c.l.b16 %v698
        %v1275 = vunpack.c.l.b16 %v699
        %v1276 = vunpack.c.l.b16 %v700
        %v1277 = vunpack.c.l.b16 %v701
        %v1278 = vunpack.c.l.b16 %v702
        %v1279 = vunpack.c.l.b16 %v703
        %v1280 = vunpack.c.l.b16 %v704
        %v1281 = vunpack.c.l.b16 %v705
        %v1282 = vunpack.c.l.b16 %v706
        %v1283 = vunpack.c.l.b16 %v707
        %v1284 = vunpack.c.l.b16 %v708
        %v1285 = vunpack.c.l.b16 %v709
        %v1286 = vunpack.c.l.b16 %v710
        %v1287 = vunpack.c.l.b16 %v711
        %v1288 = vunpack.c.l.b16 %v712
        %v1289 = vunpack.c.l.b16 %v713
        %v1290 = vunpack.c.l.b16 %v714
        %v1291 = vunpack.c.l.b16 %v715
        %v1292 = vunpack.c.l.b16 %v716
        %v1293 = vpack.c.b16 %v1214, %v1213
        %v1294 = vpack.c.b16 %v1216, %v1215
        %v1295 = vpack.c.b16 %v1218, %v1217
        %v1296 = vpack.c.b16 %v1220, %v1219
        %v1297 = vpack.c.b16 %v1222, %v1221
        %v1298 = vpack.c.b16 %v1224, %v1223
        %v1299 = vpack.c.b16 %v1226, %v1225
        %v1300 = vpack.c.b16 %v1228, %v1227
        %v1301 = vpack.c.b16 %v1230, %v1229
        %v1302 = vpack.c.b16 %v1232, %v1231
        %v1303 = vpack.c.b16 %v1234, %v1233
        %v1304 = vpack.c.b16 %v1236, %v1235
        %v1305 = vpack.c.b16 %v1238, %v1237
        %v1306 = vpack.c.b16 %v1240, %v1239
        %v1307 = vpack.c.b16 %v1242, %v1241
        %v1308 = vpack.c.b16 %v1244, %v1243
        %v1309 = vpack.c.b16 %v1246, %v1245
        %v1310 = vpack.c.b16 %v1248, %v1247
        %v1311 = vpack.c.b16 %v1250, %v1249
        %v1312 = vpack.c.b16 %v1252, %v1251
        %v1313 = vpack.c.b16 %v1254, %v1253
        %v1314 = vpack.c.b16 %v1256, %v1255
        %v1315 = vpack.c.b16 %v1258, %v1257
        %v1316 = vpack.c.b16 %v1260, %v1259
        %v1317 = vpack.c.b16 %v1262, %v1261
        %v1318 = vpack.c.b16 %v1264, %v1263
        %v1319 = vpack.c.b16 %v1266, %v1265
        %v1320 = vpack.c.b16 %v1268, %v1267
        %v1321 = vpack.c.b16 %v1270, %v1269
        %v1322 = vpack.c.b16 %v1272, %v1271
        %v1323 = vpack.c.b16 %v1274, %v1273
        %v1324 = vpack.c.b16 %v1276, %v1275
        %v1325 = vpack.c.b16 %v1278, %v1277
        %v1326 = vpack.c.b16 %v1280, %v1279
        %v1327 = vpack.c.b16 %v1282, %v1281
        %v1328 = vpack.c.b16 %v1284, %v1283
        %v1329 = vpack.c.b16 %v1286, %v1285
        %v1330 = vpack.c.b16 %v1288, %v1287
        %v1331 = vpack.c.b16 %v1290, %v1289
        %v1332 = vpack.c.b16 %v1292, %v1291
        %1373 = vmatpush.bf16.msra.mxu0 %v1300
        %1374 = vmatpush.bf16.msra.mxu0 %v1299
        %1375 = vmatpush.bf16.msra.mxu0 %v1298
        %1376 = vmatpush.bf16.msra.mxu0 %v1297
        %1377 = vmatpush.bf16.msra.mxu0 %v1296
        %1378 = vmatpush.bf16.msra.mxu0 %v1295
        %1379 = vmatpush.bf16.msra.mxu0 %v1294
        %1380 = vmatpush.bf16.msra.mxu0 %v1293
        %1381 = vmatmul.bf16.gmra.mxu0 %v973
        %v1382 = vpop.f32.mrf.mxu0
        %v1383 = vadd.f32 0.0, %v1382
        %v1384 = vpop.f32.mrf.mxu0
        %v1385 = vadd.f32 0.0, %v1384
        %1386 = vmatmul.bf16.gmra.mxu0 %v978
        %v1387 = vpop.f32.mrf.mxu0
        %v1388 = vadd.f32 0.0, %v1387
        %v1389 = vpop.f32.mrf.mxu0
        %v1390 = vadd.f32 0.0, %v1389
        %1391 = vmatmul.bf16.gmra.mxu0 %v983
        %v1392 = vpop.f32.mrf.mxu0
        %v1393 = vadd.f32 0.0, %v1392
        %v1394 = vpop.f32.mrf.mxu0
        %v1395 = vadd.f32 0.0, %v1394
        %1396 = vmatmul.bf16.gmra.mxu0 %v988
        %v1397 = vpop.f32.mrf.mxu0
        %v1398 = vadd.f32 0.0, %v1397
        %v1399 = vpop.f32.mrf.mxu0
        %v1400 = vadd.f32 0.0, %v1399
        %1401 = vmatmul.bf16.gmra.mxu0 %v993
        %v1402 = vpop.f32.mrf.mxu0
        %v1403 = vadd.f32 0.0, %v1402
        %v1404 = vpop.f32.mrf.mxu0
        %v1405 = vadd.f32 0.0, %v1404
        %1406 = vmatmul.bf16.gmra.mxu0 %v998
        %v1407 = vpop.f32.mrf.mxu0
        %v1408 = vadd.f32 0.0, %v1407
        %v1409 = vpop.f32.mrf.mxu0
        %v1410 = vadd.f32 0.0, %v1409
        %1411 = vmatmul.bf16.gmra.mxu0 %v1003
        %v1412 = vpop.f32.mrf.mxu0
        %v1413 = vadd.f32 0.0, %v1412
        %v1414 = vpop.f32.mrf.mxu0
        %v1415 = vadd.f32 0.0, %v1414
        %1416 = vmatmul.bf16.gmra.mxu0 %v1008
        %v1417 = vpop.f32.mrf.mxu0
        %v1418 = vadd.f32 0.0, %v1417
        %v1419 = vpop.f32.mrf.mxu0
        %v1420 = vadd.f32 0.0, %v1419
        %1421 = vmatmul.bf16.gmra.mxu0 %v1013
        %v1422 = vpop.f32.mrf.mxu0
        %v1423 = vadd.f32 0.0, %v1422
        %v1424 = vpop.f32.mrf.mxu0
        %v1425 = vadd.f32 0.0, %v1424
        %1426 = vmatmul.bf16.gmra.mxu0 %v1018
        %v1427 = vpop.f32.mrf.mxu0
        %v1428 = vadd.f32 0.0, %v1427
        %v1429 = vpop.f32.mrf.mxu0
        %v1430 = vadd.f32 0.0, %v1429
        %1431 = vmatmul.bf16.gmra.mxu0 %v1023
        %v1432 = vpop.f32.mrf.mxu0
        %v1433 = vadd.f32 0.0, %v1432
        %v1434 = vpop.f32.mrf.mxu0
        %v1435 = vadd.f32 0.0, %v1434
        %1436 = vmatmul.bf16.gmra.mxu0 %v1028
        %v1437 = vpop.f32.mrf.mxu0
        %v1438 = vadd.f32 0.0, %v1437
        %v1439 = vpop.f32.mrf.mxu0
        %v1440 = vadd.f32 0.0, %v1439
        %1441 = vmatmul.bf16.gmra.mxu0 %v1033
        %v1442 = vpop.f32.mrf.mxu0
        %v1443 = vadd.f32 0.0, %v1442
        %v1444 = vpop.f32.mrf.mxu0
        %v1445 = vadd.f32 0.0, %v1444
        %1446 = vmatmul.bf16.gmra.mxu0 %v1038
        %v1447 = vpop.f32.mrf.mxu0
        %v1448 = vadd.f32 0.0, %v1447
        %v1449 = vpop.f32.mrf.mxu0
        %v1450 = vadd.f32 0.0, %v1449
        %1451 = vmatmul.bf16.gmra.mxu0 %v1043
        %v1452 = vpop.f32.mrf.mxu0
        %v1453 = vadd.f32 0.0, %v1452
        %v1454 = vpop.f32.mrf.mxu0
        %v1455 = vadd.f32 0.0, %v1454
        %1456 = vmatmul.bf16.gmra.mxu0 %v1048
        %v1457 = vpop.f32.mrf.mxu0
        %v1458 = vadd.f32 0.0, %v1457
        %v1459 = vpop.f32.mrf.mxu0
        %v1460 = vadd.f32 0.0, %v1459
        %1461 = vdwg.mxu0
        %1462 = vmatpush.bf16.msra.mxu0 %v1308
        %1463 = vmatpush.bf16.msra.mxu0 %v1307
        %1464 = vmatpush.bf16.msra.mxu0 %v1306
        %1465 = vmatpush.bf16.msra.mxu0 %v1305
        %1466 = vmatpush.bf16.msra.mxu0 %v1304
        %1467 = vmatpush.bf16.msra.mxu0 %v1303
        %1468 = vmatpush.bf16.msra.mxu0 %v1302
        %1469 = vmatpush.bf16.msra.mxu0 %v1301
        %1470 = vmatmul.bf16.gmra.mxu0 %v974
        %v1471 = vpop.f32.mrf.mxu0
        %v1472 = vadd.f32 %v1383, %v1471
        %v1473 = vpop.f32.mrf.mxu0
        %v1474 = vadd.f32 %v1385, %v1473
        %1475 = vmatmul.bf16.gmra.mxu0 %v979
        %v1476 = vpop.f32.mrf.mxu0
        %v1477 = vadd.f32 %v1388, %v1476
        %v1478 = vpop.f32.mrf.mxu0
        %v1479 = vadd.f32 %v1390, %v1478
        %1480 = vmatmul.bf16.gmra.mxu0 %v984
        %v1481 = vpop.f32.mrf.mxu0
        %v1482 = vadd.f32 %v1393, %v1481
        %v1483 = vpop.f32.mrf.mxu0
        %v1484 = vadd.f32 %v1395, %v1483
        %1485 = vmatmul.bf16.gmra.mxu0 %v989
        %v1486 = vpop.f32.mrf.mxu0
        %v1487 = vadd.f32 %v1398, %v1486
        %v1488 = vpop.f32.mrf.mxu0
        %v1489 = vadd.f32 %v1400, %v1488
        %1490 = vmatmul.bf16.gmra.mxu0 %v994
        %v1491 = vpop.f32.mrf.mxu0
        %v1492 = vadd.f32 %v1403, %v1491
        %v1493 = vpop.f32.mrf.mxu0
        %v1494 = vadd.f32 %v1405, %v1493
        %1495 = vmatmul.bf16.gmra.mxu0 %v999
        %v1496 = vpop.f32.mrf.mxu0
        %v1497 = vadd.f32 %v1408, %v1496
        %v1498 = vpop.f32.mrf.mxu0
        %v1499 = vadd.f32 %v1410, %v1498
        %1500 = vmatmul.bf16.gmra.mxu0 %v1004
        %v1501 = vpop.f32.mrf.mxu0
        %v1502 = vadd.f32 %v1413, %v1501
        %v1503 = vpop.f32.mrf.mxu0
        %v1504 = vadd.f32 %v1415, %v1503
        %1505 = vmatmul.bf16.gmra.mxu0 %v1009
        %v1506 = vpop.f32.mrf.mxu0
        %v1507 = vadd.f32 %v1418, %v1506
        %v1508 = vpop.f32.mrf.mxu0
        %v1509 = vadd.f32 %v1420, %v1508
        %1510 = vmatmul.bf16.gmra.mxu0 %v1014
        %v1511 = vpop.f32.mrf.mxu0
        %v1512 = vadd.f32 %v1423, %v1511
        %v1513 = vpop.f32.mrf.mxu0
        %v1514 = vadd.f32 %v1425, %v1513
        %1515 = vmatmul.bf16.gmra.mxu0 %v1019
        %v1516 = vpop.f32.mrf.mxu0
        %v1517 = vadd.f32 %v1428, %v1516
        %v1518 = vpop.f32.mrf.mxu0
        %v1519 = vadd.f32 %v1430, %v1518
        %1520 = vmatmul.bf16.gmra.mxu0 %v1024
        %v1521 = vpop.f32.mrf.mxu0
        %v1522 = vadd.f32 %v1433, %v1521
        %v1523 = vpop.f32.mrf.mxu0
        %v1524 = vadd.f32 %v1435, %v1523
        %1525 = vmatmul.bf16.gmra.mxu0 %v1029
        %v1526 = vpop.f32.mrf.mxu0
        %v1527 = vadd.f32 %v1438, %v1526
        %v1528 = vpop.f32.mrf.mxu0
        %v1529 = vadd.f32 %v1440, %v1528
        %1530 = vmatmul.bf16.gmra.mxu0 %v1034
        %v1531 = vpop.f32.mrf.mxu0
        %v1532 = vadd.f32 %v1443, %v1531
        %v1533 = vpop.f32.mrf.mxu0
        %v1534 = vadd.f32 %v1445, %v1533
        %1535 = vmatmul.bf16.gmra.mxu0 %v1039
        %v1536 = vpop.f32.mrf.mxu0
        %v1537 = vadd.f32 %v1448, %v1536
        %v1538 = vpop.f32.mrf.mxu0
        %v1539 = vadd.f32 %v1450, %v1538
        %1540 = vmatmul.bf16.gmra.mxu0 %v1044
        %v1541 = vpop.f32.mrf.mxu0
        %v1542 = vadd.f32 %v1453, %v1541
        %v1543 = vpop.f32.mrf.mxu0
        %v1544 = vadd.f32 %v1455, %v1543
        %1545 = vmatmul.bf16.gmra.mxu0 %v1049
        %v1546 = vpop.f32.mrf.mxu0
        %v1547 = vadd.f32 %v1458, %v1546
        %v1548 = vpop.f32.mrf.mxu0
        %v1549 = vadd.f32 %v1460, %v1548
        %1550 = vdwg.mxu0
        %1551 = vmatpush.bf16.msra.mxu0 %v1316
        %1552 = vmatpush.bf16.msra.mxu0 %v1315
        %1553 = vmatpush.bf16.msra.mxu0 %v1314
        %1554 = vmatpush.bf16.msra.mxu0 %v1313
        %1555 = vmatpush.bf16.msra.mxu0 %v1312
        %1556 = vmatpush.bf16.msra.mxu0 %v1311
        %1557 = vmatpush.bf16.msra.mxu0 %v1310
        %1558 = vmatpush.bf16.msra.mxu0 %v1309
        %1559 = vmatmul.bf16.gmra.mxu0 %v975
        %v1560 = vpop.f32.mrf.mxu0
        %v1561 = vadd.f32 %v1472, %v1560
        %v1562 = vpop.f32.mrf.mxu0
        %v1563 = vadd.f32 %v1474, %v1562
        %1564 = vmatmul.bf16.gmra.mxu0 %v980
        %v1565 = vpop.f32.mrf.mxu0
        %v1566 = vadd.f32 %v1477, %v1565
        %v1567 = vpop.f32.mrf.mxu0
        %v1568 = vadd.f32 %v1479, %v1567
        %1569 = vmatmul.bf16.gmra.mxu0 %v985
        %v1570 = vpop.f32.mrf.mxu0
        %v1571 = vadd.f32 %v1482, %v1570
        %v1572 = vpop.f32.mrf.mxu0
        %v1573 = vadd.f32 %v1484, %v1572
        %1574 = vmatmul.bf16.gmra.mxu0 %v990
        %v1575 = vpop.f32.mrf.mxu0
        %v1576 = vadd.f32 %v1487, %v1575
        %v1577 = vpop.f32.mrf.mxu0
        %v1578 = vadd.f32 %v1489, %v1577
        %1579 = vmatmul.bf16.gmra.mxu0 %v995
        %v1580 = vpop.f32.mrf.mxu0
        %v1581 = vadd.f32 %v1492, %v1580
        %v1582 = vpop.f32.mrf.mxu0
        %v1583 = vadd.f32 %v1494, %v1582
        %1584 = vmatmul.bf16.gmra.mxu0 %v1000
        %v1585 = vpop.f32.mrf.mxu0
        %v1586 = vadd.f32 %v1497, %v1585
        %v1587 = vpop.f32.mrf.mxu0
        %v1588 = vadd.f32 %v1499, %v1587
        %1589 = vmatmul.bf16.gmra.mxu0 %v1005
        %v1590 = vpop.f32.mrf.mxu0
        %v1591 = vadd.f32 %v1502, %v1590
        %v1592 = vpop.f32.mrf.mxu0
        %v1593 = vadd.f32 %v1504, %v1592
        %1594 = vmatmul.bf16.gmra.mxu0 %v1010
        %v1595 = vpop.f32.mrf.mxu0
        %v1596 = vadd.f32 %v1507, %v1595
        %v1597 = vpop.f32.mrf.mxu0
        %v1598 = vadd.f32 %v1509, %v1597
        %1599 = vmatmul.bf16.gmra.mxu0 %v1015
        %v1600 = vpop.f32.mrf.mxu0
        %v1601 = vadd.f32 %v1512, %v1600
        %v1602 = vpop.f32.mrf.mxu0
        %v1603 = vadd.f32 %v1514, %v1602
        %1604 = vmatmul.bf16.gmra.mxu0 %v1020
        %v1605 = vpop.f32.mrf.mxu0
        %v1606 = vadd.f32 %v1517, %v1605
        %v1607 = vpop.f32.mrf.mxu0
        %v1608 = vadd.f32 %v1519, %v1607
        %1609 = vmatmul.bf16.gmra.mxu0 %v1025
        %v1610 = vpop.f32.mrf.mxu0
        %v1611 = vadd.f32 %v1522, %v1610
        %v1612 = vpop.f32.mrf.mxu0
        %v1613 = vadd.f32 %v1524, %v1612
        %1614 = vmatmul.bf16.gmra.mxu0 %v1030
        %v1615 = vpop.f32.mrf.mxu0
        %v1616 = vadd.f32 %v1527, %v1615
        %v1617 = vpop.f32.mrf.mxu0
        %v1618 = vadd.f32 %v1529, %v1617
        %1619 = vmatmul.bf16.gmra.mxu0 %v1035
        %v1620 = vpop.f32.mrf.mxu0
        %v1621 = vadd.f32 %v1532, %v1620
        %v1622 = vpop.f32.mrf.mxu0
        %v1623 = vadd.f32 %v1534, %v1622
        %1624 = vmatmul.bf16.gmra.mxu0 %v1040
        %v1625 = vpop.f32.mrf.mxu0
        %v1626 = vadd.f32 %v1537, %v1625
        %v1627 = vpop.f32.mrf.mxu0
        %v1628 = vadd.f32 %v1539, %v1627
        %1629 = vmatmul.bf16.gmra.mxu0 %v1045
        %v1630 = vpop.f32.mrf.mxu0
        %v1631 = vadd.f32 %v1542, %v1630
        %v1632 = vpop.f32.mrf.mxu0
        %v1633 = vadd.f32 %v1544, %v1632
        %1634 = vmatmul.bf16.gmra.mxu0 %v1050
        %v1635 = vpop.f32.mrf.mxu0
        %v1636 = vadd.f32 %v1547, %v1635
        %v1637 = vpop.f32.mrf.mxu0
        %v1638 = vadd.f32 %v1549, %v1637
        %1639 = vdwg.mxu0
        %1640 = vmatpush.bf16.msra.mxu0 %v1324
        %1641 = vmatpush.bf16.msra.mxu0 %v1323
        %1642 = vmatpush.bf16.msra.mxu0 %v1322
        %1643 = vmatpush.bf16.msra.mxu0 %v1321
        %1644 = vmatpush.bf16.msra.mxu0 %v1320
        %1645 = vmatpush.bf16.msra.mxu0 %v1319
        %1646 = vmatpush.bf16.msra.mxu0 %v1318
        %1647 = vmatpush.bf16.msra.mxu0 %v1317
        %1648 = vmatmul.bf16.gmra.mxu0 %v976
        %v1649 = vpop.f32.mrf.mxu0
        %v1650 = vadd.f32 %v1561, %v1649
        %v1651 = vpop.f32.mrf.mxu0
        %v1652 = vadd.f32 %v1563, %v1651
        %1653 = vmatmul.bf16.gmra.mxu0 %v981
        %v1654 = vpop.f32.mrf.mxu0
        %v1655 = vadd.f32 %v1566, %v1654
        %v1656 = vpop.f32.mrf.mxu0
        %v1657 = vadd.f32 %v1568, %v1656
        %1658 = vmatmul.bf16.gmra.mxu0 %v986
        %v1659 = vpop.f32.mrf.mxu0
        %v1660 = vadd.f32 %v1571, %v1659
        %v1661 = vpop.f32.mrf.mxu0
        %v1662 = vadd.f32 %v1573, %v1661
        %1663 = vmatmul.bf16.gmra.mxu0 %v991
        %v1664 = vpop.f32.mrf.mxu0
        %v1665 = vadd.f32 %v1576, %v1664
        %v1666 = vpop.f32.mrf.mxu0
        %v1667 = vadd.f32 %v1578, %v1666
        %1668 = vmatmul.bf16.gmra.mxu0 %v996
        %v1669 = vpop.f32.mrf.mxu0
        %v1670 = vadd.f32 %v1581, %v1669
        %v1671 = vpop.f32.mrf.mxu0
        %v1672 = vadd.f32 %v1583, %v1671
        %1673 = vmatmul.bf16.gmra.mxu0 %v1001
        %v1674 = vpop.f32.mrf.mxu0
        %v1675 = vadd.f32 %v1586, %v1674
        %v1676 = vpop.f32.mrf.mxu0
        %v1677 = vadd.f32 %v1588, %v1676
        %1678 = vmatmul.bf16.gmra.mxu0 %v1006
        %v1679 = vpop.f32.mrf.mxu0
        %v1680 = vadd.f32 %v1591, %v1679
        %v1681 = vpop.f32.mrf.mxu0
        %v1682 = vadd.f32 %v1593, %v1681
        %1683 = vmatmul.bf16.gmra.mxu0 %v1011
        %v1684 = vpop.f32.mrf.mxu0
        %v1685 = vadd.f32 %v1596, %v1684
        %v1686 = vpop.f32.mrf.mxu0
        %v1687 = vadd.f32 %v1598, %v1686
        %1688 = vmatmul.bf16.gmra.mxu0 %v1016
        %v1689 = vpop.f32.mrf.mxu0
        %v1690 = vadd.f32 %v1601, %v1689
        %v1691 = vpop.f32.mrf.mxu0
        %v1692 = vadd.f32 %v1603, %v1691
        %1693 = vmatmul.bf16.gmra.mxu0 %v1021
        %v1694 = vpop.f32.mrf.mxu0
        %v1695 = vadd.f32 %v1606, %v1694
        %v1696 = vpop.f32.mrf.mxu0
        %v1697 = vadd.f32 %v1608, %v1696
        %1698 = vmatmul.bf16.gmra.mxu0 %v1026
        %v1699 = vpop.f32.mrf.mxu0
        %v1700 = vadd.f32 %v1611, %v1699
        %v1701 = vpop.f32.mrf.mxu0
        %v1702 = vadd.f32 %v1613, %v1701
        %1703 = vmatmul.bf16.gmra.mxu0 %v1031
        %v1704 = vpop.f32.mrf.mxu0
        %v1705 = vadd.f32 %v1616, %v1704
        %v1706 = vpop.f32.mrf.mxu0
        %v1707 = vadd.f32 %v1618, %v1706
        %1708 = vmatmul.bf16.gmra.mxu0 %v1036
        %v1709 = vpop.f32.mrf.mxu0
        %v1710 = vadd.f32 %v1621, %v1709
        %v1711 = vpop.f32.mrf.mxu0
        %v1712 = vadd.f32 %v1623, %v1711
        %1713 = vmatmul.bf16.gmra.mxu0 %v1041
        %v1714 = vpop.f32.mrf.mxu0
        %v1715 = vadd.f32 %v1626, %v1714
        %v1716 = vpop.f32.mrf.mxu0
        %v1717 = vadd.f32 %v1628, %v1716
        %1718 = vmatmul.bf16.gmra.mxu0 %v1046
        %v1719 = vpop.f32.mrf.mxu0
        %v1720 = vadd.f32 %v1631, %v1719
        %v1721 = vpop.f32.mrf.mxu0
        %v1722 = vadd.f32 %v1633, %v1721
        %1723 = vmatmul.bf16.gmra.mxu0 %v1051
        %v1724 = vpop.f32.mrf.mxu0
        %v1725 = vadd.f32 %v1636, %v1724
        %v1726 = vpop.f32.mrf.mxu0
        %v1727 = vadd.f32 %v1638, %v1726
        %1728 = vdwg.mxu0
        %1729 = vmatpush.bf16.msra.mxu0 %v1332
        %1730 = vmatpush.bf16.msra.mxu0 %v1331
        %1731 = vmatpush.bf16.msra.mxu0 %v1330
        %1732 = vmatpush.bf16.msra.mxu0 %v1329
        %1733 = vmatpush.bf16.msra.mxu0 %v1328
        %1734 = vmatpush.bf16.msra.mxu0 %v1327
        %1735 = vmatpush.bf16.msra.mxu0 %v1326
        %1736 = vmatpush.bf16.msra.mxu0 %v1325
        %1737 = vmatmul.bf16.gmra.mxu0 %v977
        %v1738 = vpop.f32.mrf.mxu0
        %v1739 = vadd.f32 %v1650, %v1738
        %v1740 = vpop.f32.mrf.mxu0
        %v1741 = vadd.f32 %v1652, %v1740
        %1742 = vmatmul.bf16.gmra.mxu0 %v982
        %v1743 = vpop.f32.mrf.mxu0
        %v1744 = vadd.f32 %v1655, %v1743
        %v1745 = vpop.f32.mrf.mxu0
        %v1746 = vadd.f32 %v1657, %v1745
        %1747 = vmatmul.bf16.gmra.mxu0 %v987
        %v1748 = vpop.f32.mrf.mxu0
        %v1749 = vadd.f32 %v1660, %v1748
        %v1750 = vpop.f32.mrf.mxu0
        %v1751 = vadd.f32 %v1662, %v1750
        %1752 = vmatmul.bf16.gmra.mxu0 %v992
        %v1753 = vpop.f32.mrf.mxu0
        %v1754 = vadd.f32 %v1665, %v1753
        %v1755 = vpop.f32.mrf.mxu0
        %v1756 = vadd.f32 %v1667, %v1755
        %1757 = vmatmul.bf16.gmra.mxu0 %v997
        %v1758 = vpop.f32.mrf.mxu0
        %v1759 = vadd.f32 %v1670, %v1758
        %v1760 = vpop.f32.mrf.mxu0
        %v1761 = vadd.f32 %v1672, %v1760
        %1762 = vmatmul.bf16.gmra.mxu0 %v1002
        %v1763 = vpop.f32.mrf.mxu0
        %v1764 = vadd.f32 %v1675, %v1763
        %v1765 = vpop.f32.mrf.mxu0
        %v1766 = vadd.f32 %v1677, %v1765
        %1767 = vmatmul.bf16.gmra.mxu0 %v1007
        %v1768 = vpop.f32.mrf.mxu0
        %v1769 = vadd.f32 %v1680, %v1768
        %v1770 = vpop.f32.mrf.mxu0
        %v1771 = vadd.f32 %v1682, %v1770
        %1772 = vmatmul.bf16.gmra.mxu0 %v1012
        %v1773 = vpop.f32.mrf.mxu0
        %v1774 = vadd.f32 %v1685, %v1773
        %v1775 = vpop.f32.mrf.mxu0
        %v1776 = vadd.f32 %v1687, %v1775
        %1777 = vmatmul.bf16.gmra.mxu0 %v1017
        %v1778 = vpop.f32.mrf.mxu0
        %v1779 = vadd.f32 %v1690, %v1778
        %v1780 = vpop.f32.mrf.mxu0
        %v1781 = vadd.f32 %v1692, %v1780
        %1782 = vmatmul.bf16.gmra.mxu0 %v1022
        %v1783 = vpop.f32.mrf.mxu0
        %v1784 = vadd.f32 %v1695, %v1783
        %v1785 = vpop.f32.mrf.mxu0
        %v1786 = vadd.f32 %v1697, %v1785
        %1787 = vmatmul.bf16.gmra.mxu0 %v1027
        %v1788 = vpop.f32.mrf.mxu0
        %v1789 = vadd.f32 %v1700, %v1788
        %v1790 = vpop.f32.mrf.mxu0
        %v1791 = vadd.f32 %v1702, %v1790
        %1792 = vmatmul.bf16.gmra.mxu0 %v1032
        %v1793 = vpop.f32.mrf.mxu0
        %v1794 = vadd.f32 %v1705, %v1793
        %v1795 = vpop.f32.mrf.mxu0
        %v1796 = vadd.f32 %v1707, %v1795
        %1797 = vmatmul.bf16.gmra.mxu0 %v1037
        %v1798 = vpop.f32.mrf.mxu0
        %v1799 = vadd.f32 %v1710, %v1798
        %v1800 = vpop.f32.mrf.mxu0
        %v1801 = vadd.f32 %v1712, %v1800
        %1802 = vmatmul.bf16.gmra.mxu0 %v1042
        %v1803 = vpop.f32.mrf.mxu0
        %v1804 = vadd.f32 %v1715, %v1803
        %v1805 = vpop.f32.mrf.mxu0
        %v1806 = vadd.f32 %v1717, %v1805
        %1807 = vmatmul.bf16.gmra.mxu0 %v1047
        %v1808 = vpop.f32.mrf.mxu0
        %v1809 = vadd.f32 %v1720, %v1808
        %v1810 = vpop.f32.mrf.mxu0
        %v1811 = vadd.f32 %v1722, %v1810
        %1812 = vmatmul.bf16.gmra.mxu0 %v1052
        %v1813 = vpop.f32.mrf.mxu0
        %v1814 = vadd.f32 %v1725, %v1813
        %v1815 = vpop.f32.mrf.mxu0
        %v1816 = vadd.f32 %v1727, %v1815
        %1817 = vdwg.mxu0
        %v1818 = vadd.f32 %v509, %v1739
        %v1819 = vadd.f32 %v510, %v1741
        %v1820 = vadd.f32 %v511, %v1744
        %v1821 = vadd.f32 %v512, %v1746
        %v1822 = vadd.f32 %v513, %v1749
        %v1823 = vadd.f32 %v514, %v1751
        %v1824 = vadd.f32 %v515, %v1754
        %v1825 = vadd.f32 %v516, %v1756
        %v1826 = vadd.f32 %v517, %v1759
        %v1827 = vadd.f32 %v518, %v1761
        %v1828 = vadd.f32 %v519, %v1764
        %v1829 = vadd.f32 %v520, %v1766
        %v1830 = vadd.f32 %v521, %v1769
        %v1831 = vadd.f32 %v522, %v1771
        %v1832 = vadd.f32 %v523, %v1774
        %v1833 = vadd.f32 %v524, %v1776
        %v1834 = vadd.f32 %v525, %v1779
        %v1835 = vadd.f32 %v526, %v1781
        %v1836 = vadd.f32 %v527, %v1784
        %v1837 = vadd.f32 %v528, %v1786
        %v1838 = vadd.f32 %v529, %v1789
        %v1839 = vadd.f32 %v530, %v1791
        %v1840 = vadd.f32 %v531, %v1794
        %v1841 = vadd.f32 %v532, %v1796
        %v1842 = vadd.f32 %v533, %v1799
        %v1843 = vadd.f32 %v534, %v1801
        %v1844 = vadd.f32 %v535, %v1804
        %v1845 = vadd.f32 %v536, %v1806
        %v1846 = vadd.f32 %v537, %v1809
        %v1847 = vadd.f32 %v538, %v1811
        %v1848 = vadd.f32 %v539, %v1814
        %v1849 = vadd.f32 %v540, %v1816
        %1850 = vst [vmem:[#allocation2] sm:$0xff] %v1818
        %1851 = vst [vmem:[#allocation2 + $0x8] sm:$0xff] %v1819
        %1852 = vst [vmem:[#allocation2 + $0x10] sm:$0xff] %v1820
        %1853 = vst [vmem:[#allocation2 + $0x18] sm:$0xff] %v1821
        %1854 = vst [vmem:[#allocation2 + $0x20] sm:$0xff] %v1822
        %1855 = vst [vmem:[#allocation2 + $0x28] sm:$0xff] %v1823
        %1856 = vst [vmem:[#allocation2 + $0x30] sm:$0xff] %v1824
        %1857 = vst [vmem:[#allocation2 + $0x38] sm:$0xff] %v1825
        %1858 = vst [vmem:[#allocation2 + $0x40] sm:$0xff] %v1826
        %1859 = vst [vmem:[#allocation2 + $0x48] sm:$0xff] %v1827
        %1860 = vst [vmem:[#allocation2 + $0x50] sm:$0xff] %v1828
        %1861 = vst [vmem:[#allocation2 + $0x58] sm:$0xff] %v1829
        %1862 = vst [vmem:[#allocation2 + $0x60] sm:$0xff] %v1830
        %1863 = vst [vmem:[#allocation2 + $0x68] sm:$0xff] %v1831
        %1864 = vst [vmem:[#allocation2 + $0x70] sm:$0xff] %v1832
        %1865 = vst [vmem:[#allocation2 + $0x78] sm:$0xff] %v1833
        %1866 = vst [vmem:[#allocation2 + $0x80] sm:$0xff] %v1834
        %1867 = vst [vmem:[#allocation2 + $0x88] sm:$0xff] %v1835
        %1868 = vst [vmem:[#allocation2 + $0x90] sm:$0xff] %v1836
        %1869 = vst [vmem:[#allocation2 + $0x98] sm:$0xff] %v1837
        %1870 = vst [vmem:[#allocation2 + $0xa0] sm:$0xff] %v1838
        %1871 = vst [vmem:[#allocation2 + $0xa8] sm:$0xff] %v1839
        %1872 = vst [vmem:[#allocation2 + $0xb0] sm:$0xff] %v1840
        %1873 = vst [vmem:[#allocation2 + $0xb8] sm:$0xff] %v1841
        %1874 = vst [vmem:[#allocation2 + $0xc0] sm:$0xff] %v1842
        %1875 = vst [vmem:[#allocation2 + $0xc8] sm:$0xff] %v1843
        %1876 = vst [vmem:[#allocation2 + $0xd0] sm:$0xff] %v1844
        %1877 = vst [vmem:[#allocation2 + $0xd8] sm:$0xff] %v1845
        %1878 = vst [vmem:[#allocation2 + $0xe0] sm:$0xff] %v1846
        %1879 = vst [vmem:[#allocation2 + $0xe8] sm:$0xff] %v1847
        %1880 = vst [vmem:[#allocation2 + $0xf0] sm:$0xff] %v1848
        %1881 = vst [vmem:[#allocation2 + $0xf8] sm:$0xff] %v1849
        %p1882 = scmp.eq.s32.totalorder %s21, 4
        // Predicated region
        $region63: #{cnn_forward.5} parent=53 // pred_check
          %p1883 = pneg %p1882
        $region64: #{cnn_forward.5} parent=53 // pred_check_branch
          %1885 = sbr.rel (%p1883) target = $region66
        $region65: #{cnn_forward.5} parent=53 // pred_region
          %v1886 = vld [vmem:[#allocation2] sm:$0xff]
          %v1887 = vld [vmem:[#allocation2 + $0x8] sm:$0xff]
          %v1888 = vld [vmem:[#allocation2 + $0x10] sm:$0xff]
          %v1889 = vld [vmem:[#allocation2 + $0x18] sm:$0xff]
          %v1890 = vld [vmem:[#allocation2 + $0x20] sm:$0xff]
          %v1891 = vld [vmem:[#allocation2 + $0x28] sm:$0xff]
          %v1892 = vld [vmem:[#allocation2 + $0x30] sm:$0xff]
          %v1893 = vld [vmem:[#allocation2 + $0x38] sm:$0xff]
          %v1894 = vld [vmem:[#allocation2 + $0x40] sm:$0xff]
          %v1895 = vld [vmem:[#allocation2 + $0x48] sm:$0xff]
          %v1896 = vld [vmem:[#allocation2 + $0x50] sm:$0xff]
          %v1897 = vld [vmem:[#allocation2 + $0x58] sm:$0xff]
          %v1898 = vld [vmem:[#allocation2 + $0x60] sm:$0xff]
          %v1899 = vld [vmem:[#allocation2 + $0x68] sm:$0xff]
          %v1900 = vld [vmem:[#allocation2 + $0x70] sm:$0xff]
          %v1901 = vld [vmem:[#allocation2 + $0x78] sm:$0xff]
          %v1902 = vld [vmem:[#allocation2 + $0x80] sm:$0xff]
          %v1903 = vld [vmem:[#allocation2 + $0x88] sm:$0xff]
          %v1904 = vld [vmem:[#allocation2 + $0x90] sm:$0xff]
          %v1905 = vld [vmem:[#allocation2 + $0x98] sm:$0xff]
          %v1906 = vld [vmem:[#allocation2 + $0xa0] sm:$0xff]
          %v1907 = vld [vmem:[#allocation2 + $0xa8] sm:$0xff]
          %v1908 = vld [vmem:[#allocation2 + $0xb0] sm:$0xff]
          %v1909 = vld [vmem:[#allocation2 + $0xb8] sm:$0xff]
          %v1910 = vld [vmem:[#allocation2 + $0xc0] sm:$0xff]
          %v1911 = vld [vmem:[#allocation2 + $0xc8] sm:$0xff]
          %v1912 = vld [vmem:[#allocation2 + $0xd0] sm:$0xff]
          %v1913 = vld [vmem:[#allocation2 + $0xd8] sm:$0xff]
          %v1914 = vld [vmem:[#allocation2 + $0xe0] sm:$0xff]
          %v1915 = vld [vmem:[#allocation2 + $0xe8] sm:$0xff]
          %v1916 = vld [vmem:[#allocation2 + $0xf0] sm:$0xff]
          %v1917 = vld [vmem:[#allocation2 + $0xf8] sm:$0xff]
          %v1918 = vld [vmem:[%s463] sm:$0x1]
          %v1920 = vperm.slane %v1918, 0
          %v1922 = vadd.f32 %v1886, %v1920
          %v1923 = vadd.f32 %v1887, %v1920
          %v1924 = vadd.f32 %v1888, %v1920
          %v1925 = vadd.f32 %v1889, %v1920
          %v1926 = vadd.f32 %v1890, %v1920
          %v1927 = vadd.f32 %v1891, %v1920
          %v1928 = vadd.f32 %v1892, %v1920
          %v1929 = vadd.f32 %v1893, %v1920
          %v1930 = vadd.f32 %v1894, %v1920
          %v1931 = vadd.f32 %v1895, %v1920
          %v1932 = vadd.f32 %v1896, %v1920
          %v1933 = vadd.f32 %v1897, %v1920
          %v1934 = vadd.f32 %v1898, %v1920
          %v1935 = vadd.f32 %v1899, %v1920
          %v1936 = vadd.f32 %v1900, %v1920
          %v1937 = vadd.f32 %v1901, %v1920
          %v1938 = vadd.f32 %v1902, %v1920
          %v1939 = vadd.f32 %v1903, %v1920
          %v1940 = vadd.f32 %v1904, %v1920
          %v1941 = vadd.f32 %v1905, %v1920
          %v1942 = vadd.f32 %v1906, %v1920
          %v1943 = vadd.f32 %v1907, %v1920
          %v1944 = vadd.f32 %v1908, %v1920
          %v1945 = vadd.f32 %v1909, %v1920
          %v1946 = vadd.f32 %v1910, %v1920
          %v1947 = vadd.f32 %v1911, %v1920
          %v1948 = vadd.f32 %v1912, %v1920
          %v1949 = vadd.f32 %v1913, %v1920
          %v1950 = vadd.f32 %v1914, %v1920
          %v1951 = vadd.f32 %v1915, %v1920
          %v1952 = vadd.f32 %v1916, %v1920
          %v1953 = vadd.f32 %v1917, %v1920
          %1954 = vst [vmem:[%s471] sm:$0xff] %v1922
          %1955 = vst [vmem:[%s471 + $0x8] sm:$0xff] %v1923
          %1956 = vst [vmem:[%s471 + $0x10] sm:$0xff] %v1924
          %1957 = vst [vmem:[%s471 + $0x18] sm:$0xff] %v1925
          %1958 = vst [vmem:[%s471 + $0x20] sm:$0xff] %v1926
          %1959 = vst [vmem:[%s471 + $0x28] sm:$0xff] %v1927
          %1960 = vst [vmem:[%s471 + $0x30] sm:$0xff] %v1928
          %1961 = vst [vmem:[%s471 + $0x38] sm:$0xff] %v1929
          %1962 = vst [vmem:[%s471 + $0x40] sm:$0xff] %v1930
          %1963 = vst [vmem:[%s471 + $0x48] sm:$0xff] %v1931
          %1964 = vst [vmem:[%s471 + $0x50] sm:$0xff] %v1932
          %1965 = vst [vmem:[%s471 + $0x58] sm:$0xff] %v1933
          %1966 = vst [vmem:[%s471 + $0x60] sm:$0xff] %v1934
          %1967 = vst [vmem:[%s471 + $0x68] sm:$0xff] %v1935
          %1968 = vst [vmem:[%s471 + $0x70] sm:$0xff] %v1936
          %1969 = vst [vmem:[%s471 + $0x78] sm:$0xff] %v1937
          %1970 = vst [vmem:[%s471 + $0x80] sm:$0xff] %v1938
          %1971 = vst [vmem:[%s471 + $0x88] sm:$0xff] %v1939
          %1972 = vst [vmem:[%s471 + $0x90] sm:$0xff] %v1940
          %1973 = vst [vmem:[%s471 + $0x98] sm:$0xff] %v1941
          %1974 = vst [vmem:[%s471 + $0xa0] sm:$0xff] %v1942
          %1975 = vst [vmem:[%s471 + $0xa8] sm:$0xff] %v1943
          %1976 = vst [vmem:[%s471 + $0xb0] sm:$0xff] %v1944
          %1977 = vst [vmem:[%s471 + $0xb8] sm:$0xff] %v1945
          %1978 = vst [vmem:[%s471 + $0xc0] sm:$0xff] %v1946
          %1979 = vst [vmem:[%s471 + $0xc8] sm:$0xff] %v1947
          %1980 = vst [vmem:[%s471 + $0xd0] sm:$0xff] %v1948
          %1981 = vst [vmem:[%s471 + $0xd8] sm:$0xff] %v1949
          %1982 = vst [vmem:[%s471 + $0xe0] sm:$0xff] %v1950
          %1983 = vst [vmem:[%s471 + $0xe8] sm:$0xff] %v1951
          %1984 = vst [vmem:[%s471 + $0xf0] sm:$0xff] %v1952
          %1985 = vst [vmem:[%s471 + $0xf8] sm:$0xff] %v1953
        $region66: #{cnn_forward.5} parent=53 // pred_fallthru
          _
        %s1986 = smul.u32 32, %s19
        %p1987 = scmp.lt.s32.totalorder %s1986, 63
        %s1988 = scalar_select %p1987, %s1986, 63
        %p1989 = scmp.lt.s32.totalorder %s20, 0
        %s1990 = scalar_select %p1989, %s20, 0
        %s1991 = sadd.s32 %s1990, %s1988
        %s1992 = smul.addr %s1991, 8
        %s1993 = scalar_lea.vmem %s3, %s1992
        // Predicated region
        $region67: #{cnn_forward.5} parent=53 // pred_check
          %p1994 = pneg %p135
        $region68: #{cnn_forward.5} parent=53 // pred_check_branch
          %1996 = sbr.rel (%p1994) target = $region70
        $region69: #{cnn_forward.5} parent=53 // pred_region
          %s1997 = smul.u32 32, %s19
        $region70: #{cnn_forward.5} parent=53 // pred_fallthru
          _
      $region54: #{cnn_forward.5} parent=5 // pred_fallthru
        _
      %p1998 = scmp.le.s32.totalorder 2, %s9
      // Predicated region
      $region71: #{cnn_forward.5} parent=5 // pred_check
        %p1999 = pneg %p1998
      $region72: #{cnn_forward.5} parent=5 // pred_check_branch
        %2001 = sbr.rel (%p1999) target = $region74
      $region73: #{cnn_forward.5} parent=5 // pred_region
        %s2002 = ssub.s32 %s9, 2
        // Predicated region
        $region75: #{cnn_forward.5} parent=73 // pred_check
          %p2003 = pneg %p141
        $region76: #{cnn_forward.5} parent=73 // pred_check_branch
          %2005 = sbr.rel (%p2003) target = $region78
        $region77: #{cnn_forward.5} parent=73 // pred_region
          %s2006 = smul.u32 32, %s22
          %p2007 = scmp.lt.s32.totalorder %s2006, 63
          %s2008 = scalar_select %p2007, %s2006, 63
          %p2009 = scmp.lt.s32.totalorder %s23, 0
          %s2010 = scalar_select %p2009, %s23, 0
          %s2011 = sadd.s32 %s2010, %s2008
          %s2012 = smul.addr %s2011, 8
          %s2013 = scalar_lea.vmem %s3, %s2012
        $region78: #{cnn_forward.5} parent=73 // pred_fallthru
          _
      $region74: #{cnn_forward.5} parent=5 // pred_fallthru
        _
    $region6: #{cnn_forward.5} parent=1 // loop_footer
      %s13 = sadd.s32 1, %s9
    $region7: #{cnn_forward.5} parent=1 // loop_footer_branch
      %8 = sbr.rel target = $region3
    $region8: #{cnn_forward.5} parent=1 // loop_exit
      _

</llo_original>
